<compile_context>
chip_gen: v7x
topology: tpu7x:2x2x1
jax: 0.10.0
libtpu: 0.0.40
codegen_flags: <defaults>
</compile_context>

<pallas_src>
import jax
import jax.numpy as jnp
import numpy as np
from jax import lax
from jax.experimental import pallas as pl
from jax.experimental.pallas import tpu as pltpu

LANE = 128  # padded output-channel width per path (lane-dense stores)


# ---------------------------------------------------------------------------
# Pallas kernels
# ---------------------------------------------------------------------------
def _gated_conv_kernel(p_ref, w_ref, o_ref):
    """o = (P @ Wa) * sigmoid(P @ Wg), with Wa|Wg fused column-wise.

    W packs [Wa*bn_scale_a | Wg*bn_scale_g] (each path zero-padded to 128
    lanes); its last row holds the folded bias/BN shift and is picked up by
    the trailing ones-column of P.  One MXU push covers both paths.
    """
    d = jnp.dot(p_ref[...], w_ref[...], preferred_element_type=jnp.float32)
    a = d[:, :LANE]          # vreg-aligned lane split
    g = d[:, LANE:]
    o_ref[...] = a * jax.nn.sigmoid(g)


def _plain_conv_kernel(p_ref, w_ref, o_ref):
    """o = P @ W (bias folded via the ones column), lane-padded to 128."""
    o_ref[...] = jnp.dot(p_ref[...], w_ref[...],
                         preferred_element_type=jnp.float32)


# ---------------------------------------------------------------------------
# pallas_call wrapper (one matmul per layer, rows tiled only if M > 1024)
# ---------------------------------------------------------------------------
def _pick_row_tile(m):
    n_blocks = -(-m // 1024)
    tm = -(-m // n_blocks)
    tm = ((tm + 7) // 8) * 8          # sublane-aligned row tile
    return tm, n_blocks * tm


def _run_fused_matmul(kernel, patches, w_fused):
    m, k = patches.shape
    tm, mp = _pick_row_tile(m)
    if mp != m:
        patches = jnp.pad(patches, ((0, mp - m), (0, 0)))
    out = pl.pallas_call(
        kernel,
        out_shape=jax.ShapeDtypeStruct((mp, LANE), jnp.float32),
        grid_spec=pltpu.PrefetchScalarGridSpec(
            num_scalar_prefetch=0,
            grid=(mp // tm,),
            in_specs=[
                pl.BlockSpec((tm, k), lambda i: (i, 0)),
                pl.BlockSpec(w_fused.shape, lambda i: (0, 0)),
            ],
            out_specs=pl.BlockSpec((tm, LANE), lambda i: (i, 0)),
        ),
        compiler_params=pltpu.CompilerParams(
            dimension_semantics=("arbitrary",)),
    )(patches, w_fused)
    return out[:m]


# ---------------------------------------------------------------------------
# Glue: NHWC im2col, K ordered as (kh, kw, C) with C innermost (plain JAX)
# ---------------------------------------------------------------------------
def _im2col_nhwc(x, kh, kw, sh, sw, ph, pw):
    n, h, w, c = x.shape
    xp = jnp.pad(x, ((0, 0), (ph, ph), (pw, pw), (0, 0)))
    ho = (h + 2 * ph - kh) // sh + 1
    wo = (w + 2 * pw - kw) // sw + 1
    cols = []
    for dh in range(kh):
        for dw in range(kw):
            cols.append(xp[:, dh:dh + sh * ho:sh, dw:dw + sw * wo:sw, :])
    cols = jnp.stack(cols, axis=3)                      # (n, ho, wo, kh*kw, c)
    patches = cols.reshape(n * ho * wo, kh * kw * c)
    # trailing ones column carries the folded bias / BN shift through the dot
    patches = jnp.pad(patches, ((0, 0), (0, 1)), constant_values=1.0)
    return patches, ho, wo


# ---------------------------------------------------------------------------
# Parameter construction (deterministic, PyTorch-like init) + weight folding
# ---------------------------------------------------------------------------
def _conv_init(key, cout, cin, kh, kw):
    k1, k2 = jax.random.split(key)
    fan_in = cin * kh * kw
    bound = 1.0 / np.sqrt(fan_in)
    w = jax.random.uniform(k1, (cout, cin, kh, kw), minval=-bound, maxval=bound,
                           dtype=jnp.float32)
    b = jax.random.uniform(k2, (cout,), minval=-bound, maxval=bound,
                           dtype=jnp.float32)
    return w, b


def _bn_init(key, c):
    k1, k2, k3 = jax.random.split(key, 3)
    gamma = 1.0 + 0.1 * jax.random.normal(k1, (c,), dtype=jnp.float32)
    beta = 0.1 * jax.random.normal(k2, (c,), dtype=jnp.float32)
    mean = 0.1 * jax.random.normal(k3, (c,), dtype=jnp.float32)
    var = jnp.ones((c,), jnp.float32)
    return gamma, beta, mean, var


def _fold_conv_bn(w, b, bn=None, eps=1e-5):
    """-> (K+1, 128): BN scale folded into W; bias/BN shift in the last row.

    K ordering is (kh, kw, Cin), Cin innermost, matching _im2col_nhwc.
    """
    cout, cin, kh, kw = w.shape
    wm = jnp.transpose(w, (2, 3, 1, 0)).reshape(kh * kw * cin, cout)  # (K, Cout)
    if bn is not None:
        gamma, beta, mean, var = bn
        s = gamma / jnp.sqrt(var + eps)
        wm = wm * s[None, :]
        t = beta + (b - mean) * s
    else:
        t = b
    full = jnp.concatenate([wm, t[None, :]], axis=0)                  # (K+1, Cout)
    return jnp.pad(full, ((0, 0), (0, LANE - cout)))                  # (K+1, 128)


def make_encoder_params(key):
    ks = jax.random.split(key, 14)
    p = {}
    cfgs = [
        ("l1", 1, 5, (3, 9), (1, 1), (1, 4)),
        ("l2", 5, 10, (4, 8), (2, 2), (1, 3)),
        ("l3", 10, 10, (4, 8), (2, 2), (1, 3)),
    ]
    ki = 0
    for name, cin, cout, k, s, pad in cfgs:
        w, b = _conv_init(ks[ki], cout, cin, *k); ki += 1
        bn = _bn_init(ks[ki], cout); ki += 1
        wg, bg = _conv_init(ks[ki], cout, cin, *k); ki += 1
        bng = _bn_init(ks[ki], cout); ki += 1
        w_fused = jnp.concatenate(
            [_fold_conv_bn(w, b, bn), _fold_conv_bn(wg, bg, bng)], axis=1)
        p[name] = dict(cfg=(k[0], k[1], s[0], s[1], pad[0], pad[1]),
                       cout=cout,
                       raw=(w, b, bn, wg, bg, bng),
                       w_fused=w_fused)                                # (K+1, 256)
    w4, b4 = _conv_init(ks[ki], 16, 10, 9, 5)
    p["l4"] = dict(cfg=(9, 5, 9, 1, 0, 2), cout=16, raw=(w4, b4),
                   w_fused=_fold_conv_bn(w4, b4))                      # (K+1, 128)
    return p


# ---------------------------------------------------------------------------
# Encoder forward (Pallas)
# ---------------------------------------------------------------------------
def encoder_forward(x, label, params):
    # `label` is unused — mirrors the PyTorch forward (id_bias_add_2d never called).
    del label
    h = jnp.transpose(x, (0, 2, 3, 1))                 # NCHW -> NHWC, once
    n = h.shape[0]
    for name in ("l1", "l2", "l3"):
        cfg = params[name]
        kh, kw, sh, sw, ph, pw = cfg["cfg"]
        patches, ho, wo = _im2col_nhwc(h, kh, kw, sh, sw, ph, pw)
        out = _run_fused_matmul(_gated_conv_kernel, patches, cfg["w_fused"])
        h = out[:, :cfg["cout"]].reshape(n, ho, wo, cfg["cout"])
    cfg = params["l4"]
    kh, kw, sh, sw, ph, pw = cfg["cfg"]
    patches, ho, wo = _im2col_nhwc(h, kh, kw, sh, sw, ph, pw)
    out = _run_fused_matmul(_plain_conv_kernel, patches, cfg["w_fused"])
    h4 = out[:, :16].reshape(n, ho, wo, 16)
    h4 = jnp.transpose(h4, (0, 3, 1, 2))               # NHWC -> NCHW (tiny)
    return h4[:, :8, :, :], h4[:, 8:, :, :]


# ---------------------------------------------------------------------------
# Pure-JAX reference (lax.conv, f32) for the correctness self-check
# ---------------------------------------------------------------------------
def _ref_conv(x, w, b, stride, pad):
    out = lax.conv_general_dilated(
        x, w, window_strides=stride, padding=[(pad[0], pad[0]), (pad[1], pad[1])],
        dimension_numbers=("NCHW", "OIHW", "NCHW"), precision=lax.Precision.HIGHEST)
    return out + b.reshape(1, -1, 1, 1)


def _ref_bn(x, gamma, beta, mean, var, eps=1e-5):
    sh = (1, -1, 1, 1)
    return (x - mean.reshape(sh)) / jnp.sqrt(var.reshape(sh) + eps) \
        * gamma.reshape(sh) + beta.reshape(sh)


def encoder_reference(x, params):
    h = x
    for name in ("l1", "l2", "l3"):
        kh, kw, sh_, sw, ph, pw = params[name]["cfg"]
        w, b, bn, wg, bg, bng = params[name]["raw"]
        a = _ref_bn(_ref_conv(h, w, b, (sh_, sw), (ph, pw)), *bn)
        g = _ref_bn(_ref_conv(h, wg, bg, (sh_, sw), (ph, pw)), *bng)
        h = a * jax.nn.sigmoid(g)
    w4, b4 = params["l4"]["raw"]
    h4 = _ref_conv(h, w4, b4, (9, 1), (0, 2))
    return h4[:, :8, :, :], h4[:, 8:, :, :]


# ---------------------------------------------------------------------------
if __name__ == "__main__":
    key = jax.random.PRNGKey(0)
    kp, kx, kl = jax.random.split(key, 3)
    params = make_encoder_params(kp)

    # (N, 1, H, W); H must reach 9 after two /2 downsamplings so the (9,5)/(9,1)
    # conv4 collapses H to 1 (same shapes as the PyTorch module expects).
    x = jax.random.normal(kx, (2, 1, 36, 32), dtype=jnp.float32)
    label = jax.nn.one_hot(jax.random.randint(kl, (2,), 0, 4), 4, dtype=jnp.float32)

    mu, logvar = jax.jit(lambda xx, ll: encoder_forward(xx, ll, params))(x, label)
    jax.block_until_ready((mu, logvar))

    # Tolerance accounts for default (single-pass bf16-input, f32-accumulate)
    # MXU precision in the kernel vs the f32 HIGHEST-precision reference.
    mu_ref, logvar_ref = encoder_reference(x, params)
    np.testing.assert_allclose(np.asarray(mu), np.asarray(mu_ref),
                               rtol=3e-2, atol=3e-2)
    np.testing.assert_allclose(np.asarray(logvar), np.asarray(logvar_ref),
                               rtol=3e-2, atol=3e-2)
    assert mu.shape == (2, 8, 1, 8) and logvar.shape == (2, 8, 1, 8)

    print("KERNEL_OK")
</pallas_src>

<mosaic_0001>
module attributes {stable_mosaic.version = 11 : i64} {
  func.func @_gated_conv_kernel(%arg0: i32, %arg1: memref<768x28xf32, #tpu.memory_space<vmem>>, %arg2: memref<28x256xf32, #tpu.memory_space<vmem>>, %arg3: memref<768x128xf32, #tpu.memory_space<vmem>>) attributes {dimension_semantics = [#tpu.dimension_semantics<arbitrary>], iteration_bounds = array<i64: 3>, scalar_prefetch = 0 : i64, scratch_operands = 0 : i64, tpu.core_type = #tpu.core_type<tc>, window_params = [{transform_indices = @transform_0, window_bounds = array<i64: 768, 28>}, {pipeline_mode = #tpu.pipeline_mode<synchronous>, transform_indices = @transform_1, window_bounds = array<i64: 28, 256>}, {transform_indices = @transform_2, window_bounds = array<i64: 768, 128>}]} {
    %c0 = arith.constant 0 : index
    %c0_0 = arith.constant 0 : index
    %0 = vector.load %arg1[%c0, %c0_0] : memref<768x28xf32, #tpu.memory_space<vmem>>, vector<768x28xf32>
    %c0_1 = arith.constant 0 : index
    %c0_2 = arith.constant 0 : index
    %1 = vector.load %arg2[%c0_1, %c0_2] : memref<28x256xf32, #tpu.memory_space<vmem>>, vector<28x256xf32>
    %cst = arith.constant dense<0.000000e+00> : vector<768x256xf32>
    %2 = tpu.matmul %0, %1, %cst {dimension_numbers = #tpu.dot_dimension_numbers<[1], [0], [0], [1], [0, 0, 1, 1], [], []>} : vector<768x28xf32>, vector<28x256xf32>, vector<768x256xf32> -> vector<768x256xf32>
    %3 = vector.extract_strided_slice %2 {offsets = [0, 0], sizes = [768, 128], strides = [1, 1]} : vector<768x256xf32> to vector<768x128xf32>
    %4 = vector.extract_strided_slice %2 {offsets = [0, 128], sizes = [768, 128], strides = [1, 1]} : vector<768x256xf32> to vector<768x128xf32>
    %5 = arith.negf %4 : vector<768x128xf32>
    %6 = math.exp %5 : vector<768x128xf32>
    %cst_3 = arith.constant 1.000000e+00 : f32
    %7 = vector.broadcast %cst_3 : f32 to vector<768x128xf32>
    %8 = arith.addf %7, %6 : vector<768x128xf32>
    %9 = arith.divf %7, %8 : vector<768x128xf32>
    %10 = arith.mulf %3, %9 : vector<768x128xf32>
    %c0_4 = arith.constant 0 : index
    %c0_5 = arith.constant 0 : index
    %11 = vector.load %arg3[%c0_4, %c0_5] : memref<768x128xf32, #tpu.memory_space<vmem>>, vector<768x128xf32>
    tpu.vector_store %arg3[%c0_4, %c0_5], %10 {strides = array<i32>} : memref<768x128xf32, #tpu.memory_space<vmem>>, vector<768x128xf32>,
    return
  }
  func.func @transform_0(%arg0: i32) -> (i32, i32) {
    %c0_i32 = arith.constant 0 : i32
    %c0_i32_0 = arith.constant 0 : i32
    return %arg0, %c0_i32 : i32, i32
  }
  func.func @transform_1(%arg0: i32) -> (i32, i32) {
    %c0_i32 = arith.constant 0 : i32
    %c0_i32_0 = arith.constant 0 : i32
    %c0_i32_1 = arith.constant 0 : i32
    return %c0_i32, %c0_i32_0 : i32, i32
  }
  func.func @transform_2(%arg0: i32) -> (i32, i32) {
    %c0_i32 = arith.constant 0 : i32
    %c0_i32_0 = arith.constant 0 : i32
    return %arg0, %c0_i32 : i32, i32
  }
}

module attributes {stable_mosaic.version = 11 : i64} {
  func.func @_gated_conv_kernel(%arg0: i32, %arg1: memref<576x161xf32, #tpu.memory_space<vmem>>, %arg2: memref<161x256xf32, #tpu.memory_space<vmem>>, %arg3: memref<576x128xf32, #tpu.memory_space<vmem>>) attributes {dimension_semantics = [#tpu.dimension_semantics<arbitrary>], iteration_bounds = array<i64: 1>, scalar_prefetch = 0 : i64, scratch_operands = 0 : i64, tpu.core_type = #tpu.core_type<tc>, window_params = [{transform_indices = @transform_0, window_bounds = array<i64: 576, 161>}, {pipeline_mode = #tpu.pipeline_mode<synchronous>, transform_indices = @transform_1, window_bounds = array<i64: 161, 256>}, {transform_indices = @transform_2, window_bounds = array<i64: 576, 128>}]} {
    %c0 = arith.constant 0 : index
    %c0_0 = arith.constant 0 : index
    %0 = vector.load %arg1[%c0, %c0_0] : memref<576x161xf32, #tpu.memory_space<vmem>>, vector<576x161xf32>
    %c0_1 = arith.constant 0 : index
    %c0_2 = arith.constant 0 : index
    %1 = vector.load %arg2[%c0_1, %c0_2] : memref<161x256xf32, #tpu.memory_space<vmem>>, vector<161x256xf32>
    %cst = arith.constant dense<0.000000e+00> : vector<576x256xf32>
    %2 = tpu.matmul %0, %1, %cst {dimension_numbers = #tpu.dot_dimension_numbers<[1], [0], [0], [1], [0, 0, 1, 1], [], []>} : vector<576x161xf32>, vector<161x256xf32>, vector<576x256xf32> -> vector<576x256xf32>
    %3 = vector.extract_strided_slice %2 {offsets = [0, 0], sizes = [576, 128], strides = [1, 1]} : vector<576x256xf32> to vector<576x128xf32>
    %4 = vector.extract_strided_slice %2 {offsets = [0, 128], sizes = [576, 128], strides = [1, 1]} : vector<576x256xf32> to vector<576x128xf32>
    %5 = arith.negf %4 : vector<576x128xf32>
    %6 = math.exp %5 : vector<576x128xf32>
    %cst_3 = arith.constant 1.000000e+00 : f32
    %7 = vector.broadcast %cst_3 : f32 to vector<576x128xf32>
    %8 = arith.addf %7, %6 : vector<576x128xf32>
    %9 = arith.divf %7, %8 : vector<576x128xf32>
    %10 = arith.mulf %3, %9 : vector<576x128xf32>
    %c0_4 = arith.constant 0 : index
    %c0_5 = arith.constant 0 : index
    %11 = vector.load %arg3[%c0_4, %c0_5] : memref<576x128xf32, #tpu.memory_space<vmem>>, vector<576x128xf32>
    tpu.vector_store %arg3[%c0_4, %c0_5], %10 {strides = array<i32>} : memref<576x128xf32, #tpu.memory_space<vmem>>, vector<576x128xf32>,
    return
  }
  func.func @transform_0(%arg0: i32) -> (i32, i32) {
    %c0_i32 = arith.constant 0 : i32
    %c0_i32_0 = arith.constant 0 : i32
    return %arg0, %c0_i32 : i32, i32
  }
  func.func @transform_1(%arg0: i32) -> (i32, i32) {
    %c0_i32 = arith.constant 0 : i32
    %c0_i32_0 = arith.constant 0 : i32
    %c0_i32_1 = arith.constant 0 : i32
    return %c0_i32, %c0_i32_0 : i32, i32
  }
  func.func @transform_2(%arg0: i32) -> (i32, i32) {
    %c0_i32 = arith.constant 0 : i32
    %c0_i32_0 = arith.constant 0 : i32
    return %arg0, %c0_i32 : i32, i32
  }
}

module attributes {stable_mosaic.version = 11 : i64} {
  func.func @_gated_conv_kernel(%arg0: i32, %arg1: memref<144x321xf32, #tpu.memory_space<vmem>>, %arg2: memref<321x256xf32, #tpu.memory_space<vmem>>, %arg3: memref<144x128xf32, #tpu.memory_space<vmem>>) attributes {dimension_semantics = [#tpu.dimension_semantics<arbitrary>], iteration_bounds = array<i64: 1>, scalar_prefetch = 0 : i64, scratch_operands = 0 : i64, tpu.core_type = #tpu.core_type<tc>, window_params = [{transform_indices = @transform_0, window_bounds = array<i64: 144, 321>}, {pipeline_mode = #tpu.pipeline_mode<synchronous>, transform_indices = @transform_1, window_bounds = array<i64: 321, 256>}, {transform_indices = @transform_2, window_bounds = array<i64: 144, 128>}]} {
    %c0 = arith.constant 0 : index
    %c0_0 = arith.constant 0 : index
    %0 = vector.load %arg1[%c0, %c0_0] : memref<144x321xf32, #tpu.memory_space<vmem>>, vector<144x321xf32>
    %c0_1 = arith.constant 0 : index
    %c0_2 = arith.constant 0 : index
    %1 = vector.load %arg2[%c0_1, %c0_2] : memref<321x256xf32, #tpu.memory_space<vmem>>, vector<321x256xf32>
    %cst = arith.constant dense<0.000000e+00> : vector<144x256xf32>
    %2 = tpu.matmul %0, %1, %cst {dimension_numbers = #tpu.dot_dimension_numbers<[1], [0], [0], [1], [0, 0, 1, 1], [], []>} : vector<144x321xf32>, vector<321x256xf32>, vector<144x256xf32> -> vector<144x256xf32>
    %3 = vector.extract_strided_slice %2 {offsets = [0, 0], sizes = [144, 128], strides = [1, 1]} : vector<144x256xf32> to vector<144x128xf32>
    %4 = vector.extract_strided_slice %2 {offsets = [0, 128], sizes = [144, 128], strides = [1, 1]} : vector<144x256xf32> to vector<144x128xf32>
    %5 = arith.negf %4 : vector<144x128xf32>
    %6 = math.exp %5 : vector<144x128xf32>
    %cst_3 = arith.constant 1.000000e+00 : f32
    %7 = vector.broadcast %cst_3 : f32 to vector<144x128xf32>
    %8 = arith.addf %7, %6 : vector<144x128xf32>
    %9 = arith.divf %7, %8 : vector<144x128xf32>
    %10 = arith.mulf %3, %9 : vector<144x128xf32>
    %c0_4 = arith.constant 0 : index
    %c0_5 = arith.constant 0 : index
    %11 = vector.load %arg3[%c0_4, %c0_5] : memref<144x128xf32, #tpu.memory_space<vmem>>, vector<144x128xf32>
    tpu.vector_store %arg3[%c0_4, %c0_5], %10 {strides = array<i32>} : memref<144x128xf32, #tpu.memory_space<vmem>>, vector<144x128xf32>,
    return
  }
  func.func @transform_0(%arg0: i32) -> (i32, i32) {
    %c0_i32 = arith.constant 0 : i32
    %c0_i32_0 = arith.constant 0 : i32
    return %arg0, %c0_i32 : i32, i32
  }
  func.func @transform_1(%arg0: i32) -> (i32, i32) {
    %c0_i32 = arith.constant 0 : i32
    %c0_i32_0 = arith.constant 0 : i32
    %c0_i32_1 = arith.constant 0 : i32
    return %c0_i32, %c0_i32_0 : i32, i32
  }
  func.func @transform_2(%arg0: i32) -> (i32, i32) {
    %c0_i32 = arith.constant 0 : i32
    %c0_i32_0 = arith.constant 0 : i32
    return %arg0, %c0_i32 : i32, i32
  }
}

module attributes {stable_mosaic.version = 11 : i64} {
  func.func @_plain_conv_kernel(%arg0: i32, %arg1: memref<16x451xf32, #tpu.memory_space<vmem>>, %arg2: memref<451x128xf32, #tpu.memory_space<vmem>>, %arg3: memref<16x128xf32, #tpu.memory_space<vmem>>) attributes {dimension_semantics = [#tpu.dimension_semantics<arbitrary>], iteration_bounds = array<i64: 1>, scalar_prefetch = 0 : i64, scratch_operands = 0 : i64, tpu.core_type = #tpu.core_type<tc>, window_params = [{transform_indices = @transform_0, window_bounds = array<i64: 16, 451>}, {pipeline_mode = #tpu.pipeline_mode<synchronous>, transform_indices = @transform_1, window_bounds = array<i64: 451, 128>}, {transform_indices = @transform_2, window_bounds = array<i64: 16, 128>}]} {
    %c0 = arith.constant 0 : index
    %c0_0 = arith.constant 0 : index
    %0 = vector.load %arg1[%c0, %c0_0] : memref<16x451xf32, #tpu.memory_space<vmem>>, vector<16x451xf32>
    %c0_1 = arith.constant 0 : index
    %c0_2 = arith.constant 0 : index
    %1 = vector.load %arg2[%c0_1, %c0_2] : memref<451x128xf32, #tpu.memory_space<vmem>>, vector<451x128xf32>
    %cst = arith.constant dense<0.000000e+00> : vector<16x128xf32>
    %2 = tpu.matmul %0, %1, %cst {dimension_numbers = #tpu.dot_dimension_numbers<[1], [0], [0], [1], [0, 0, 1, 1], [], []>} : vector<16x451xf32>, vector<451x128xf32>, vector<16x128xf32> -> vector<16x128xf32>
    %c0_3 = arith.constant 0 : index
    %c0_4 = arith.constant 0 : index
    %3 = vector.load %arg3[%c0_3, %c0_4] : memref<16x128xf32, #tpu.memory_space<vmem>>, vector<16x128xf32>
    tpu.vector_store %arg3[%c0_3, %c0_4], %2 {strides = array<i32>} : memref<16x128xf32, #tpu.memory_space<vmem>>, vector<16x128xf32>,
    return
  }
  func.func @transform_0(%arg0: i32) -> (i32, i32) {
    %c0_i32 = arith.constant 0 : i32
    %c0_i32_0 = arith.constant 0 : i32
    return %arg0, %c0_i32 : i32, i32
  }
  func.func @transform_1(%arg0: i32) -> (i32, i32) {
    %c0_i32 = arith.constant 0 : i32
    %c0_i32_0 = arith.constant 0 : i32
    %c0_i32_1 = arith.constant 0 : i32
    return %c0_i32, %c0_i32_0 : i32, i32
  }
  func.func @transform_2(%arg0: i32) -> (i32, i32) {
    %c0_i32 = arith.constant 0 : i32
    %c0_i32_0 = arith.constant 0 : i32
    return %arg0, %c0_i32 : i32, i32
  }
}

</mosaic_0001>

<llo_original>
// kernel: _lambda_.4
$region0: #{_lambda_.4}
  #allocation0 [shape = 'u32[]', space=smem, size = 0x4, offset = 0x4, fixed_abs, tag = 'smem constant byte address 0x4 - core index']
  #allocation1 [shape = 'u32[144,128]{1,0:T(1,128)}', space=vmem, size = 0x12000, scoped, tag = 'internal scratch']
  %s0 = inlined_call_operand.vmem [shape: f32[2304,28], index: 0, kind: input, shape index: {}]
  %s1 = inlined_call_operand.vmem [shape: f32[28,256], index: 1, kind: input, shape index: {}]
  %s2 = inlined_call_operand.vmem [shape: f32[2304,128], index: 2, kind: output, shape index: {}]
  %s3 = sld [smem:[#allocation0]]
  $region41: #{_lambda_.4} parent=0
    _
  %s5 = ssub.s32 1, %s3
  %s6 = scalar_select 0, %s5, %s3
  loop: start=0, step=1, limit=5
  $region2: #{_lambda_.4} parent=0 // loop_pre_header
    _
  $region3: #{_lambda_.4} parent=0 // loop_header
    %s8 = sphi 0, %s12
    %p9 = scmp.ge.s32.totalorder %s8, 5
    %s18 = sphi 0, %s20
    %s21 = sphi 0, %s18
    %s22 = sphi 0, %s21
    %s38 = sphi 0, %s22
    %s42 = sphi 0, %s42
    %s44 = sphi 0, %s42
    %s45 = sphi 0, %s44
    %s59 = sphi 0, %s45
    %s65 = sphi 0, %s67
    %s68 = sphi 0, %s65
    %s69 = sphi 0, %s68
    %s85 = sphi 0, %s69
  $region4: #{_lambda_.4} parent=0 // loop_header_branch
    %11 = sbr.rel (%p9) target = $region8
  $region5: #{_lambda_.4} parent=0 // loop_body
    %s13 = ssub.s32 %s8, 1
    %s14 = ssub.s32 %s8, 2
    %s15 = sadd.s32 %s8, 1
    %s16 = ssub.s32 %s8, %s15
    %p17 = scmp.eq.s32.totalorder %s16, 0
    %s19 = sadd.s32 %s18, 1
    %s20 = scalar_select %p17, %s18, %s19
    %p23 = pneg %p17
    %p24 = scmp.eq.s32.totalorder %s8, 2
    %p25 = por %p23, %p24
    %p26 = scmp.ne.s32.totalorder %s18, %s21
    %p27 = scmp.eq.s32.totalorder %s8, 0
    %p28 = por %p26, %p27
    %p29 = scmp.ne.s32.totalorder %s18, %s21
    %p30 = scmp.eq.s32.totalorder %s13, 2
    %p31 = por %p29, %p30
    %p32 = scmp.ne.s32.totalorder %s21, %s22
    %p33 = scmp.eq.s32.totalorder %s13, 0
    %p34 = por %p32, %p33
    %p35 = scmp.ne.s32.totalorder %s21, %s22
    %p36 = scmp.eq.s32.totalorder %s14, 2
    %p37 = por %p35, %p36
    %p39 = scmp.ne.s32.totalorder %s22, %s38
    %p40 = scmp.eq.s32.totalorder %s14, 0
    %p41 = por %p39, %p40
    %s43 = sadd.s32 %s42, 1
    %p46 = scmp.eq.s32.totalorder %s8, 2
    %p47 = scmp.ne.s32.totalorder %s42, %s44
    %p48 = scmp.eq.s32.totalorder %s8, 0
    %p49 = por %p47, %p48
    %p50 = scmp.ne.s32.totalorder %s42, %s44
    %p51 = scmp.eq.s32.totalorder %s13, 2
    %p52 = por %p50, %p51
    %p53 = scmp.ne.s32.totalorder %s44, %s45
    %p54 = scmp.eq.s32.totalorder %s13, 0
    %p55 = por %p53, %p54
    %p56 = scmp.ne.s32.totalorder %s44, %s45
    %p57 = scmp.eq.s32.totalorder %s14, 2
    %p58 = por %p56, %p57
    %p60 = scmp.ne.s32.totalorder %s45, %s59
    %p61 = scmp.eq.s32.totalorder %s14, 0
    %p62 = por %p60, %p61
    %s63 = ssub.s32 %s8, %s15
    %p64 = scmp.eq.s32.totalorder %s63, 0
    %s66 = sadd.s32 %s65, 1
    %s67 = scalar_select %p64, %s65, %s66
    %p70 = pneg %p64
    %p71 = scmp.eq.s32.totalorder %s8, 2
    %p72 = por %p70, %p71
    %p73 = scmp.ne.s32.totalorder %s65, %s68
    %p74 = scmp.eq.s32.totalorder %s8, 0
    %p75 = por %p73, %p74
    %p76 = scmp.ne.s32.totalorder %s65, %s68
    %p77 = scmp.eq.s32.totalorder %s13, 2
    %p78 = por %p76, %p77
    %p79 = scmp.ne.s32.totalorder %s68, %s69
    %p80 = scmp.eq.s32.totalorder %s13, 0
    %p81 = por %p79, %p80
    %p82 = scmp.ne.s32.totalorder %s68, %s69
    %p83 = scmp.eq.s32.totalorder %s14, 2
    %p84 = por %p82, %p83
    %p86 = scmp.ne.s32.totalorder %s69, %s85
    %p87 = scmp.eq.s32.totalorder %s14, 0
    %p88 = por %p86, %p87
    %p89 = scmp.le.s32.totalorder 1, %s8
    %p90 = scmp.lt.s32.totalorder %s8, 4
    %p91 = pnand %p89, %p90
    %p92 = pneg %p91
    // Predicated region
    $region9: #{_lambda_.4} parent=5 // pred_check
      _
    $region10: #{_lambda_.4} parent=5 // pred_check_branch
      %94 = sbr.rel (%p91) target = $region12
    $region11: #{_lambda_.4} parent=5 // pred_region
      %s95 = ssub.s32 %s8, 1
      // Predicated region
      $region13: #{_lambda_.4} parent=11 // pred_check
        %p96 = pneg %p55
      $region14: #{_lambda_.4} parent=11 // pred_check_branch
        %98 = sbr.rel (%p96) target = $region16
      $region15: #{_lambda_.4} parent=11 // pred_region
        _
      $region16: #{_lambda_.4} parent=11 // pred_fallthru
        _
    $region12: #{_lambda_.4} parent=5 // pred_fallthru
      _
    %p99 = scmp.lt.s32.totalorder %s8, 3
    // Predicated region
    $region17: #{_lambda_.4} parent=5 // pred_check
      %p100 = pneg %p99
    $region18: #{_lambda_.4} parent=5 // pred_check_branch
      %102 = sbr.rel (%p100) target = $region20
    $region19: #{_lambda_.4} parent=5 // pred_region
      // Predicated region
      $region21: #{_lambda_.4} parent=19 // pred_check
        %p103 = pneg %p28
      $region22: #{_lambda_.4} parent=19 // pred_check_branch
        %105 = sbr.rel (%p103) target = $region24
      $region23: #{_lambda_.4} parent=19 // pred_region
        %s106 = smul.u32 96, %s8
        %p107 = scmp.lt.s32.totalorder %s106, 287
        %s108 = scalar_select %p107, %s106, 287
        %s109 = smul.addr %s108, 8
        %s110 = scalar_lea.vmem %s0, %s109
        %s111 = smul.u32 96, %s8
      $region24: #{_lambda_.4} parent=19 // pred_fallthru
        _
    $region20: #{_lambda_.4} parent=5 // pred_fallthru
      _
    %p112 = scmp.le.s32.totalorder 1, %s8
    %p113 = scmp.lt.s32.totalorder %s8, 4
    %p114 = pnand %p112, %p113
    %p115 = pneg %p114
    // Predicated region
    $region25: #{_lambda_.4} parent=5 // pred_check
      _
    $region26: #{_lambda_.4} parent=5 // pred_check_branch
      %117 = sbr.rel (%p114) target = $region28
    $region27: #{_lambda_.4} parent=5 // pred_region
      %s118 = ssub.s32 %s8, 1
      %s119 = smul.u32 96, %s13
      %p120 = scmp.lt.s32.totalorder %s119, 287
      %s121 = scalar_select %p120, %s119, 287
      %s122 = smul.addr %s121, 8
      %s123 = scalar_lea.vmem %s0, %s122
      %p124 = pneg %p34
      %p125 = pneg %p31
      %p126 = pneg %p55
      %p127 = pneg %p52
      %p128 = pneg %p81
      %p129 = pneg %p78
      %s130 = smul.u32 96, %s13
      %p131 = scmp.lt.s32.totalorder %s130, 287
      %s132 = scalar_select %p131, %s130, 287
      %s133 = smul.addr %s132, 8
      %s134 = scalar_lea.vmem %s2, %s133
      %s135 = smul.u32 96, %s13
      %p136 = scmp.lt.s32.totalorder %s135, 287
      %s137 = scalar_select %p136, %s135, 287
      %s138 = smul.addr %s137, 8
      %s139 = scalar_lea.vmem %s0, %s138
      %s140 = smul.u32 96, %s13
      %s141 = smul.u32 96, %s13
      %p142 = scmp.lt.s32.totalorder %s141, 287
      %s143 = scalar_select %p142, %s141, 287
      %s144 = smul.addr %s143, 8
      %s145 = scalar_lea.vmem %s2, %s144
      %s146 = smul.u32 96, %s13
      %v147 = vld [vmem:[%s139] sm:$0xff]
      %v148 = vld [vmem:[%s139 + $0x8] sm:$0xff]
      %v149 = vld [vmem:[%s139 + $0x10] sm:$0xff]
      %v150 = vld [vmem:[%s139 + $0x18] sm:$0xff]
      %v151 = vld [vmem:[%s139 + $0x20] sm:$0xff]
      %v152 = vld [vmem:[%s139 + $0x28] sm:$0xff]
      %v153 = vld [vmem:[%s139 + $0x30] sm:$0xff]
      %v154 = vld [vmem:[%s139 + $0x38] sm:$0xff]
      %v155 = vld [vmem:[%s139 + $0x40] sm:$0xff]
      %v156 = vld [vmem:[%s139 + $0x48] sm:$0xff]
      %v157 = vld [vmem:[%s139 + $0x50] sm:$0xff]
      %v158 = vld [vmem:[%s139 + $0x58] sm:$0xff]
      %v159 = vld [vmem:[%s139 + $0x60] sm:$0xff]
      %v160 = vld [vmem:[%s139 + $0x68] sm:$0xff]
      %v161 = vld [vmem:[%s139 + $0x70] sm:$0xff]
      %v162 = vld [vmem:[%s139 + $0x78] sm:$0xff]
      %v163 = vld [vmem:[%s139 + $0x80] sm:$0xff]
      %v164 = vld [vmem:[%s139 + $0x88] sm:$0xff]
      %v165 = vld [vmem:[%s139 + $0x90] sm:$0xff]
      %v166 = vld [vmem:[%s139 + $0x98] sm:$0xff]
      %v167 = vld [vmem:[%s139 + $0xa0] sm:$0xff]
      %v168 = vld [vmem:[%s139 + $0xa8] sm:$0xff]
      %v169 = vld [vmem:[%s139 + $0xb0] sm:$0xff]
      %v170 = vld [vmem:[%s139 + $0xb8] sm:$0xff]
      %v171 = vld [vmem:[%s139 + $0xc0] sm:$0xff]
      %v172 = vld [vmem:[%s139 + $0xc8] sm:$0xff]
      %v173 = vld [vmem:[%s139 + $0xd0] sm:$0xff]
      %v174 = vld [vmem:[%s139 + $0xd8] sm:$0xff]
      %v175 = vld [vmem:[%s139 + $0xe0] sm:$0xff]
      %v176 = vld [vmem:[%s139 + $0xe8] sm:$0xff]
      %v177 = vld [vmem:[%s139 + $0xf0] sm:$0xff]
      %v178 = vld [vmem:[%s139 + $0xf8] sm:$0xff]
      %v179 = vld [vmem:[%s139 + $0x100] sm:$0xff]
      %v180 = vld [vmem:[%s139 + $0x108] sm:$0xff]
      %v181 = vld [vmem:[%s139 + $0x110] sm:$0xff]
      %v182 = vld [vmem:[%s139 + $0x118] sm:$0xff]
      %v183 = vld [vmem:[%s139 + $0x120] sm:$0xff]
      %v184 = vld [vmem:[%s139 + $0x128] sm:$0xff]
      %v185 = vld [vmem:[%s139 + $0x130] sm:$0xff]
      %v186 = vld [vmem:[%s139 + $0x138] sm:$0xff]
      %v187 = vld [vmem:[%s139 + $0x140] sm:$0xff]
      %v188 = vld [vmem:[%s139 + $0x148] sm:$0xff]
      %v189 = vld [vmem:[%s139 + $0x150] sm:$0xff]
      %v190 = vld [vmem:[%s139 + $0x158] sm:$0xff]
      %v191 = vld [vmem:[%s139 + $0x160] sm:$0xff]
      %v192 = vld [vmem:[%s139 + $0x168] sm:$0xff]
      %v193 = vld [vmem:[%s139 + $0x170] sm:$0xff]
      %v194 = vld [vmem:[%s139 + $0x178] sm:$0xff]
      %v195 = vld [vmem:[%s139 + $0x180] sm:$0xff]
      %v196 = vld [vmem:[%s139 + $0x188] sm:$0xff]
      %v197 = vld [vmem:[%s139 + $0x190] sm:$0xff]
      %v198 = vld [vmem:[%s139 + $0x198] sm:$0xff]
      %v199 = vld [vmem:[%s139 + $0x1a0] sm:$0xff]
      %v200 = vld [vmem:[%s139 + $0x1a8] sm:$0xff]
      %v201 = vld [vmem:[%s139 + $0x1b0] sm:$0xff]
      %v202 = vld [vmem:[%s139 + $0x1b8] sm:$0xff]
      %v203 = vld [vmem:[%s139 + $0x1c0] sm:$0xff]
      %v204 = vld [vmem:[%s139 + $0x1c8] sm:$0xff]
      %v205 = vld [vmem:[%s139 + $0x1d0] sm:$0xff]
      %v206 = vld [vmem:[%s139 + $0x1d8] sm:$0xff]
      %v207 = vld [vmem:[%s139 + $0x1e0] sm:$0xff]
      %v208 = vld [vmem:[%s139 + $0x1e8] sm:$0xff]
      %v209 = vld [vmem:[%s139 + $0x1f0] sm:$0xff]
      %v210 = vld [vmem:[%s139 + $0x1f8] sm:$0xff]
      %v211 = vld [vmem:[%s139 + $0x200] sm:$0xff]
      %v212 = vld [vmem:[%s139 + $0x208] sm:$0xff]
      %v213 = vld [vmem:[%s139 + $0x210] sm:$0xff]
      %v214 = vld [vmem:[%s139 + $0x218] sm:$0xff]
      %v215 = vld [vmem:[%s139 + $0x220] sm:$0xff]
      %v216 = vld [vmem:[%s139 + $0x228] sm:$0xff]
      %v217 = vld [vmem:[%s139 + $0x230] sm:$0xff]
      %v218 = vld [vmem:[%s139 + $0x238] sm:$0xff]
      %v219 = vld [vmem:[%s139 + $0x240] sm:$0xff]
      %v220 = vld [vmem:[%s139 + $0x248] sm:$0xff]
      %v221 = vld [vmem:[%s139 + $0x250] sm:$0xff]
      %v222 = vld [vmem:[%s139 + $0x258] sm:$0xff]
      %v223 = vld [vmem:[%s139 + $0x260] sm:$0xff]
      %v224 = vld [vmem:[%s139 + $0x268] sm:$0xff]
      %v225 = vld [vmem:[%s139 + $0x270] sm:$0xff]
      %v226 = vld [vmem:[%s139 + $0x278] sm:$0xff]
      %v227 = vld [vmem:[%s139 + $0x280] sm:$0xff]
      %v228 = vld [vmem:[%s139 + $0x288] sm:$0xff]
      %v229 = vld [vmem:[%s139 + $0x290] sm:$0xff]
      %v230 = vld [vmem:[%s139 + $0x298] sm:$0xff]
      %v231 = vld [vmem:[%s139 + $0x2a0] sm:$0xff]
      %v232 = vld [vmem:[%s139 + $0x2a8] sm:$0xff]
      %v233 = vld [vmem:[%s139 + $0x2b0] sm:$0xff]
      %v234 = vld [vmem:[%s139 + $0x2b8] sm:$0xff]
      %v235 = vld [vmem:[%s139 + $0x2c0] sm:$0xff]
      %v236 = vld [vmem:[%s139 + $0x2c8] sm:$0xff]
      %v237 = vld [vmem:[%s139 + $0x2d0] sm:$0xff]
      %v238 = vld [vmem:[%s139 + $0x2d8] sm:$0xff]
      %v239 = vld [vmem:[%s139 + $0x2e0] sm:$0xff]
      %v240 = vld [vmem:[%s139 + $0x2e8] sm:$0xff]
      %v241 = vld [vmem:[%s139 + $0x2f0] sm:$0xff]
      %v242 = vld [vmem:[%s139 + $0x2f8] sm:$0xff]
      %v243 = vld [vmem:[%s1] sm:$0xff]
      %v244 = vld [vmem:[%s1 + $0x8] sm:$0xff]
      %v245 = vld [vmem:[%s1 + $0x10] sm:$0xff]
      %v246 = vld [vmem:[%s1 + $0x18] sm:$0xff]
      %v247 = vld [vmem:[%s1 + $0x20] sm:$0xff]
      %v248 = vld [vmem:[%s1 + $0x28] sm:$0xff]
      %v249 = vld [vmem:[%s1 + $0x30] sm:$0xf]
      %v250 = vld [vmem:[%s1 + $0x38] sm:$0xf]
      %vm251 = vcmask 228352
      %v253 = vsel %vm251, %v147, 0
      %v256 = vsel %vm251, %v148, 0
      %v259 = vsel %vm251, %v149, 0
      %v262 = vsel %vm251, %v150, 0
      %v265 = vsel %vm251, %v151, 0
      %v268 = vsel %vm251, %v152, 0
      %v271 = vsel %vm251, %v153, 0
      %v274 = vsel %vm251, %v154, 0
      %v277 = vsel %vm251, %v155, 0
      %v280 = vsel %vm251, %v156, 0
      %v283 = vsel %vm251, %v157, 0
      %v286 = vsel %vm251, %v158, 0
      %v289 = vsel %vm251, %v159, 0
      %v292 = vsel %vm251, %v160, 0
      %v295 = vsel %vm251, %v161, 0
      %v298 = vsel %vm251, %v162, 0
      %v301 = vsel %vm251, %v163, 0
      %v304 = vsel %vm251, %v164, 0
      %v307 = vsel %vm251, %v165, 0
      %v310 = vsel %vm251, %v166, 0
      %v313 = vsel %vm251, %v167, 0
      %v316 = vsel %vm251, %v168, 0
      %v319 = vsel %vm251, %v169, 0
      %v322 = vsel %vm251, %v170, 0
      %v325 = vsel %vm251, %v171, 0
      %v328 = vsel %vm251, %v172, 0
      %v331 = vsel %vm251, %v173, 0
      %v334 = vsel %vm251, %v174, 0
      %v337 = vsel %vm251, %v175, 0
      %v340 = vsel %vm251, %v176, 0
      %v343 = vsel %vm251, %v177, 0
      %v346 = vsel %vm251, %v178, 0
      %v349 = vsel %vm251, %v179, 0
      %v352 = vsel %vm251, %v180, 0
      %v355 = vsel %vm251, %v181, 0
      %v358 = vsel %vm251, %v182, 0
      %v361 = vsel %vm251, %v183, 0
      %v364 = vsel %vm251, %v184, 0
      %v367 = vsel %vm251, %v185, 0
      %v370 = vsel %vm251, %v186, 0
      %v373 = vsel %vm251, %v187, 0
      %v376 = vsel %vm251, %v188, 0
      %v379 = vsel %vm251, %v189, 0
      %v382 = vsel %vm251, %v190, 0
      %v385 = vsel %vm251, %v191, 0
      %v388 = vsel %vm251, %v192, 0
      %v391 = vsel %vm251, %v193, 0
      %v394 = vsel %vm251, %v194, 0
      %v397 = vsel %vm251, %v195, 0
      %v400 = vsel %vm251, %v196, 0
      %v403 = vsel %vm251, %v197, 0
      %v406 = vsel %vm251, %v198, 0
      %v409 = vsel %vm251, %v199, 0
      %v412 = vsel %vm251, %v200, 0
      %v415 = vsel %vm251, %v201, 0
      %v418 = vsel %vm251, %v202, 0
      %v421 = vsel %vm251, %v203, 0
      %v424 = vsel %vm251, %v204, 0
      %v427 = vsel %vm251, %v205, 0
      %v430 = vsel %vm251, %v206, 0
      %v433 = vsel %vm251, %v207, 0
      %v436 = vsel %vm251, %v208, 0
      %v439 = vsel %vm251, %v209, 0
      %v442 = vsel %vm251, %v210, 0
      %v445 = vsel %vm251, %v211, 0
      %v448 = vsel %vm251, %v212, 0
      %v451 = vsel %vm251, %v213, 0
      %v454 = vsel %vm251, %v214, 0
      %v457 = vsel %vm251, %v215, 0
      %v460 = vsel %vm251, %v216, 0
      %v463 = vsel %vm251, %v217, 0
      %v466 = vsel %vm251, %v218, 0
      %v469 = vsel %vm251, %v219, 0
      %v472 = vsel %vm251, %v220, 0
      %v475 = vsel %vm251, %v221, 0
      %v478 = vsel %vm251, %v222, 0
      %v481 = vsel %vm251, %v223, 0
      %v484 = vsel %vm251, %v224, 0
      %v487 = vsel %vm251, %v225, 0
      %v490 = vsel %vm251, %v226, 0
      %v493 = vsel %vm251, %v227, 0
      %v496 = vsel %vm251, %v228, 0
      %v499 = vsel %vm251, %v229, 0
      %v502 = vsel %vm251, %v230, 0
      %v505 = vsel %vm251, %v231, 0
      %v508 = vsel %vm251, %v232, 0
      %v511 = vsel %vm251, %v233, 0
      %v514 = vsel %vm251, %v234, 0
      %v517 = vsel %vm251, %v235, 0
      %v520 = vsel %vm251, %v236, 0
      %v523 = vsel %vm251, %v237, 0
      %v526 = vsel %vm251, %v238, 0
      %v529 = vsel %vm251, %v239, 0
      %v532 = vsel %vm251, %v240, 0
      %v535 = vsel %vm251, %v241, 0
      %v538 = vsel %vm251, %v242, 0
      %vm540 = vcmask 1043456
      %v542 = vsel %vm540, %v249, 0
      %v545 = vsel %vm540, %v250, 0
      %547 = vmatprep.subr.mxu0 %v244
      %548 = vmatpush1.msra.mxu0 %v243
      %549 = vmatprep.subr.mxu0 %v246
      %550 = vmatpush1.msra.mxu0 %v245
      %551 = vmatprep.subr.mxu0 %v248
      %552 = vmatpush1.msra.mxu0 %v247
      %553 = vmatprep.subr.mxu0 %v545
      %554 = vmatpush1.msra.mxu0 %v542
      %555 = vmatprep.subr.mxu0 0.0
      %556 = vmatpush1.msra.mxu0 0.0
      %557 = vmatprep.subr.mxu0 0.0
      %558 = vmatpush1.msra.mxu0 0.0
      %559 = vmatprep.subr.mxu0 0.0
      %560 = vmatpush1.msra.mxu0 0.0
      %561 = vmatprep.subr.mxu0 0.0
      %562 = vmatpush1.msra.mxu0 0.0
      %563 = vmatprep.subr.mxu0 0.0
      %564 = vmatpush1.msra.mxu0 0.0
      %565 = vmatprep.subr.mxu0 0.0
      %566 = vmatpush1.msra.mxu0 0.0
      %567 = vmatprep.subr.mxu0 0.0
      %568 = vmatpush1.msra.mxu0 0.0
      %569 = vmatprep.subr.mxu0 0.0
      %570 = vmatpush1.msra.mxu0 0.0
      %571 = vmatprep.subr.mxu0 0.0
      %572 = vmatpush1.msra.mxu0 0.0
      %573 = vmatprep.subr.mxu0 0.0
      %574 = vmatpush1.msra.mxu0 0.0
      %575 = vmatprep.subr.mxu0 0.0
      %576 = vmatpush1.msra.mxu0 0.0
      %577 = vmatprep.subr.mxu0 0.0
      %578 = vmatpush1.msra.mxu0 0.0
      %579 = vmatprep.subr.mxu0 0.0
      %580 = vmatpush1.msra.mxu0 0.0
      %581 = vmatprep.subr.mxu0 0.0
      %582 = vmatpush1.msra.mxu0 0.0
      %583 = vmatprep.subr.mxu0 0.0
      %584 = vmatpush1.msra.mxu0 0.0
      %585 = vmatprep.subr.mxu0 0.0
      %586 = vmatpush1.msra.mxu0 0.0
      %587 = vmatprep.subr.mxu0 0.0
      %588 = vmatpush1.msra.mxu0 0.0
      %589 = vmatprep.subr.mxu0 0.0
      %590 = vmatpush1.msra.mxu0 0.0
      %591 = vmatprep.subr.mxu0 0.0
      %592 = vmatpush1.msra.mxu0 0.0
      %593 = vmatprep.subr.mxu0 0.0
      %594 = vmatpush1.msra.mxu0 0.0
      %595 = vmatprep.subr.mxu0 0.0
      %596 = vmatpush1.msra.mxu0 0.0
      %597 = vmatprep.subr.mxu0 0.0
      %598 = vmatpush1.msra.mxu0 0.0
      %599 = vmatprep.subr.mxu0 0.0
      %600 = vmatpush1.msra.mxu0 0.0
      %601 = vmatprep.subr.mxu0 0.0
      %602 = vmatpush1.msra.mxu0 0.0
      %603 = vmatprep.subr.mxu0 0.0
      %604 = vmatpush1.msra.mxu0 0.0
      %605 = vmatprep.subr.mxu0 0.0
      %606 = vmatpush1.msra.mxu0 0.0
      %607 = vmatprep.subr.mxu0 0.0
      %608 = vmatpush1.msra.mxu0 0.0
      %609 = vmatprep.subr.mxu0 0.0
      %610 = vmatpush1.msra.mxu0 0.0
      %611 = vmatprep.mubr.f32.mxu0 0.0
      %612 = vmatmul.mubr.f32.gmra.mrb[0].mxu0 %v253
      %v613 = vpop.f32.mrb[0].mxu0
      %v614 = vadd.f32 0.0, %v613
      %v615 = vpop.f32.mrb[0].mxu0
      %v616 = vadd.f32 0.0, %v615
      %617 = vmatprep.mubr.f32.mxu0 0.0
      %618 = vmatmul.mubr.f32.gmra.mrb[0].mxu0 %v256
      %v619 = vpop.f32.mrb[0].mxu0
      %v620 = vadd.f32 0.0, %v619
      %v621 = vpop.f32.mrb[0].mxu0
      %v622 = vadd.f32 0.0, %v621
      %623 = vmatprep.mubr.f32.mxu0 0.0
      %624 = vmatmul.mubr.f32.gmra.mrb[0].mxu0 %v259
      %v625 = vpop.f32.mrb[0].mxu0
      %v626 = vadd.f32 0.0, %v625
      %v627 = vpop.f32.mrb[0].mxu0
      %v628 = vadd.f32 0.0, %v627
      %629 = vmatprep.mubr.f32.mxu0 0.0
      %630 = vmatmul.mubr.f32.gmra.mrb[0].mxu0 %v262
      %v631 = vpop.f32.mrb[0].mxu0
      %v632 = vadd.f32 0.0, %v631
      %v633 = vpop.f32.mrb[0].mxu0
      %v634 = vadd.f32 0.0, %v633
      %635 = vmatprep.mubr.f32.mxu0 0.0
      %636 = vmatmul.mubr.f32.gmra.mrb[0].mxu0 %v265
      %v637 = vpop.f32.mrb[0].mxu0
      %v638 = vadd.f32 0.0, %v637
      %v639 = vpop.f32.mrb[0].mxu0
      %v640 = vadd.f32 0.0, %v639
      %641 = vmatprep.mubr.f32.mxu0 0.0
      %642 = vmatmul.mubr.f32.gmra.mrb[0].mxu0 %v268
      %v643 = vpop.f32.mrb[0].mxu0
      %v644 = vadd.f32 0.0, %v643
      %v645 = vpop.f32.mrb[0].mxu0
      %v646 = vadd.f32 0.0, %v645
      %647 = vmatprep.mubr.f32.mxu0 0.0
      %648 = vmatmul.mubr.f32.gmra.mrb[0].mxu0 %v271
      %v649 = vpop.f32.mrb[0].mxu0
      %v650 = vadd.f32 0.0, %v649
      %v651 = vpop.f32.mrb[0].mxu0
      %v652 = vadd.f32 0.0, %v651
      %653 = vmatprep.mubr.f32.mxu0 0.0
      %654 = vmatmul.mubr.f32.gmra.mrb[0].mxu0 %v274
      %v655 = vpop.f32.mrb[0].mxu0
      %v656 = vadd.f32 0.0, %v655
      %v657 = vpop.f32.mrb[0].mxu0
      %v658 = vadd.f32 0.0, %v657
      %659 = vmatprep.mubr.f32.mxu0 0.0
      %660 = vmatmul.mubr.f32.gmra.mrb[0].mxu0 %v277
      %v661 = vpop.f32.mrb[0].mxu0
      %v662 = vadd.f32 0.0, %v661
      %v663 = vpop.f32.mrb[0].mxu0
      %v664 = vadd.f32 0.0, %v663
      %665 = vmatprep.mubr.f32.mxu0 0.0
      %666 = vmatmul.mubr.f32.gmra.mrb[0].mxu0 %v280
      %v667 = vpop.f32.mrb[0].mxu0
      %v668 = vadd.f32 0.0, %v667
      %v669 = vpop.f32.mrb[0].mxu0
      %v670 = vadd.f32 0.0, %v669
      %671 = vmatprep.mubr.f32.mxu0 0.0
      %672 = vmatmul.mubr.f32.gmra.mrb[0].mxu0 %v283
      %v673 = vpop.f32.mrb[0].mxu0
      %v674 = vadd.f32 0.0, %v673
      %v675 = vpop.f32.mrb[0].mxu0
      %v676 = vadd.f32 0.0, %v675
      %677 = vmatprep.mubr.f32.mxu0 0.0
      %678 = vmatmul.mubr.f32.gmra.mrb[0].mxu0 %v286
      %v679 = vpop.f32.mrb[0].mxu0
      %v680 = vadd.f32 0.0, %v679
      %v681 = vpop.f32.mrb[0].mxu0
      %v682 = vadd.f32 0.0, %v681
      %683 = vmatprep.mubr.f32.mxu0 0.0
      %684 = vmatmul.mubr.f32.gmra.mrb[0].mxu0 %v289
      %v685 = vpop.f32.mrb[0].mxu0
      %v686 = vadd.f32 0.0, %v685
      %v687 = vpop.f32.mrb[0].mxu0
      %v688 = vadd.f32 0.0, %v687
      %689 = vmatprep.mubr.f32.mxu0 0.0
      %690 = vmatmul.mubr.f32.gmra.mrb[0].mxu0 %v292
      %v691 = vpop.f32.mrb[0].mxu0
      %v692 = vadd.f32 0.0, %v691
      %v693 = vpop.f32.mrb[0].mxu0
      %v694 = vadd.f32 0.0, %v693
      %695 = vmatprep.mubr.f32.mxu0 0.0
      %696 = vmatmul.mubr.f32.gmra.mrb[0].mxu0 %v295
      %v697 = vpop.f32.mrb[0].mxu0
      %v698 = vadd.f32 0.0, %v697
      %v699 = vpop.f32.mrb[0].mxu0
      %v700 = vadd.f32 0.0, %v699
      %701 = vmatprep.mubr.f32.mxu0 0.0
      %702 = vmatmul.mubr.f32.gmra.mrb[0].mxu0 %v298
      %v703 = vpop.f32.mrb[0].mxu0
      %v704 = vadd.f32 0.0, %v703
      %v705 = vpop.f32.mrb[0].mxu0
      %v706 = vadd.f32 0.0, %v705
      %707 = vmatprep.mubr.f32.mxu0 0.0
      %708 = vmatmul.mubr.f32.gmra.mrb[0].mxu0 %v301
      %v709 = vpop.f32.mrb[0].mxu0
      %v710 = vadd.f32 0.0, %v709
      %v711 = vpop.f32.mrb[0].mxu0
      %v712 = vadd.f32 0.0, %v711
      %713 = vmatprep.mubr.f32.mxu0 0.0
      %714 = vmatmul.mubr.f32.gmra.mrb[0].mxu0 %v304
      %v715 = vpop.f32.mrb[0].mxu0
      %v716 = vadd.f32 0.0, %v715
      %v717 = vpop.f32.mrb[0].mxu0
      %v718 = vadd.f32 0.0, %v717
      %719 = vmatprep.mubr.f32.mxu0 0.0
      %720 = vmatmul.mubr.f32.gmra.mrb[0].mxu0 %v307
      %v721 = vpop.f32.mrb[0].mxu0
      %v722 = vadd.f32 0.0, %v721
      %v723 = vpop.f32.mrb[0].mxu0
      %v724 = vadd.f32 0.0, %v723
      %725 = vmatprep.mubr.f32.mxu0 0.0
      %726 = vmatmul.mubr.f32.gmra.mrb[0].mxu0 %v310
      %v727 = vpop.f32.mrb[0].mxu0
      %v728 = vadd.f32 0.0, %v727
      %v729 = vpop.f32.mrb[0].mxu0
      %v730 = vadd.f32 0.0, %v729
      %731 = vmatprep.mubr.f32.mxu0 0.0
      %732 = vmatmul.mubr.f32.gmra.mrb[0].mxu0 %v313
      %v733 = vpop.f32.mrb[0].mxu0
      %v734 = vadd.f32 0.0, %v733
      %v735 = vpop.f32.mrb[0].mxu0
      %v736 = vadd.f32 0.0, %v735
      %737 = vmatprep.mubr.f32.mxu0 0.0
      %738 = vmatmul.mubr.f32.gmra.mrb[0].mxu0 %v316
      %v739 = vpop.f32.mrb[0].mxu0
      %v740 = vadd.f32 0.0, %v739
      %v741 = vpop.f32.mrb[0].mxu0
      %v742 = vadd.f32 0.0, %v741
      %743 = vmatprep.mubr.f32.mxu0 0.0
      %744 = vmatmul.mubr.f32.gmra.mrb[0].mxu0 %v319
      %v745 = vpop.f32.mrb[0].mxu0
      %v746 = vadd.f32 0.0, %v745
      %v747 = vpop.f32.mrb[0].mxu0
      %v748 = vadd.f32 0.0, %v747
      %749 = vmatprep.mubr.f32.mxu0 0.0
      %750 = vmatmul.mubr.f32.gmra.mrb[0].mxu0 %v322
      %v751 = vpop.f32.mrb[0].mxu0
      %v752 = vadd.f32 0.0, %v751
      %v753 = vpop.f32.mrb[0].mxu0
      %v754 = vadd.f32 0.0, %v753
      %755 = vmatprep.mubr.f32.mxu0 0.0
      %756 = vmatmul.mubr.f32.gmra.mrb[0].mxu0 %v325
      %v757 = vpop.f32.mrb[0].mxu0
      %v758 = vadd.f32 0.0, %v757
      %v759 = vpop.f32.mrb[0].mxu0
      %v760 = vadd.f32 0.0, %v759
      %761 = vmatprep.mubr.f32.mxu0 0.0
      %762 = vmatmul.mubr.f32.gmra.mrb[0].mxu0 %v328
      %v763 = vpop.f32.mrb[0].mxu0
      %v764 = vadd.f32 0.0, %v763
      %v765 = vpop.f32.mrb[0].mxu0
      %v766 = vadd.f32 0.0, %v765
      %767 = vmatprep.mubr.f32.mxu0 0.0
      %768 = vmatmul.mubr.f32.gmra.mrb[0].mxu0 %v331
      %v769 = vpop.f32.mrb[0].mxu0
      %v770 = vadd.f32 0.0, %v769
      %v771 = vpop.f32.mrb[0].mxu0
      %v772 = vadd.f32 0.0, %v771
      %773 = vmatprep.mubr.f32.mxu0 0.0
      %774 = vmatmul.mubr.f32.gmra.mrb[0].mxu0 %v334
      %v775 = vpop.f32.mrb[0].mxu0
      %v776 = vadd.f32 0.0, %v775
      %v777 = vpop.f32.mrb[0].mxu0
      %v778 = vadd.f32 0.0, %v777
      %779 = vmatprep.mubr.f32.mxu0 0.0
      %780 = vmatmul.mubr.f32.gmra.mrb[0].mxu0 %v337
      %v781 = vpop.f32.mrb[0].mxu0
      %v782 = vadd.f32 0.0, %v781
      %v783 = vpop.f32.mrb[0].mxu0
      %v784 = vadd.f32 0.0, %v783
      %785 = vmatprep.mubr.f32.mxu0 0.0
      %786 = vmatmul.mubr.f32.gmra.mrb[0].mxu0 %v340
      %v787 = vpop.f32.mrb[0].mxu0
      %v788 = vadd.f32 0.0, %v787
      %v789 = vpop.f32.mrb[0].mxu0
      %v790 = vadd.f32 0.0, %v789
      %791 = vmatprep.mubr.f32.mxu0 0.0
      %792 = vmatmul.mubr.f32.gmra.mrb[0].mxu0 %v343
      %v793 = vpop.f32.mrb[0].mxu0
      %v794 = vadd.f32 0.0, %v793
      %v795 = vpop.f32.mrb[0].mxu0
      %v796 = vadd.f32 0.0, %v795
      %797 = vmatprep.mubr.f32.mxu0 0.0
      %798 = vmatmul.mubr.f32.gmra.mrb[0].mxu0 %v346
      %v799 = vpop.f32.mrb[0].mxu0
      %v800 = vadd.f32 0.0, %v799
      %v801 = vpop.f32.mrb[0].mxu0
      %v802 = vadd.f32 0.0, %v801
      %803 = vmatprep.mubr.f32.mxu0 0.0
      %804 = vmatmul.mubr.f32.gmra.mrb[0].mxu0 %v349
      %v805 = vpop.f32.mrb[0].mxu0
      %v806 = vadd.f32 0.0, %v805
      %v807 = vpop.f32.mrb[0].mxu0
      %v808 = vadd.f32 0.0, %v807
      %809 = vmatprep.mubr.f32.mxu0 0.0
      %810 = vmatmul.mubr.f32.gmra.mrb[0].mxu0 %v352
      %v811 = vpop.f32.mrb[0].mxu0
      %v812 = vadd.f32 0.0, %v811
      %v813 = vpop.f32.mrb[0].mxu0
      %v814 = vadd.f32 0.0, %v813
      %815 = vmatprep.mubr.f32.mxu0 0.0
      %816 = vmatmul.mubr.f32.gmra.mrb[0].mxu0 %v355
      %v817 = vpop.f32.mrb[0].mxu0
      %v818 = vadd.f32 0.0, %v817
      %v819 = vpop.f32.mrb[0].mxu0
      %v820 = vadd.f32 0.0, %v819
      %821 = vmatprep.mubr.f32.mxu0 0.0
      %822 = vmatmul.mubr.f32.gmra.mrb[0].mxu0 %v358
      %v823 = vpop.f32.mrb[0].mxu0
      %v824 = vadd.f32 0.0, %v823
      %v825 = vpop.f32.mrb[0].mxu0
      %v826 = vadd.f32 0.0, %v825
      %827 = vmatprep.mubr.f32.mxu0 0.0
      %828 = vmatmul.mubr.f32.gmra.mrb[0].mxu0 %v361
      %v829 = vpop.f32.mrb[0].mxu0
      %v830 = vadd.f32 0.0, %v829
      %v831 = vpop.f32.mrb[0].mxu0
      %v832 = vadd.f32 0.0, %v831
      %833 = vmatprep.mubr.f32.mxu0 0.0
      %834 = vmatmul.mubr.f32.gmra.mrb[0].mxu0 %v364
      %v835 = vpop.f32.mrb[0].mxu0
      %v836 = vadd.f32 0.0, %v835
      %v837 = vpop.f32.mrb[0].mxu0
      %v838 = vadd.f32 0.0, %v837
      %839 = vmatprep.mubr.f32.mxu0 0.0
      %840 = vmatmul.mubr.f32.gmra.mrb[0].mxu0 %v367
      %v841 = vpop.f32.mrb[0].mxu0
      %v842 = vadd.f32 0.0, %v841
      %v843 = vpop.f32.mrb[0].mxu0
      %v844 = vadd.f32 0.0, %v843
      %845 = vmatprep.mubr.f32.mxu0 0.0
      %846 = vmatmul.mubr.f32.gmra.mrb[0].mxu0 %v370
      %v847 = vpop.f32.mrb[0].mxu0
      %v848 = vadd.f32 0.0, %v847
      %v849 = vpop.f32.mrb[0].mxu0
      %v850 = vadd.f32 0.0, %v849
      %851 = vmatprep.mubr.f32.mxu0 0.0
      %852 = vmatmul.mubr.f32.gmra.mrb[0].mxu0 %v373
      %v853 = vpop.f32.mrb[0].mxu0
      %v854 = vadd.f32 0.0, %v853
      %v855 = vpop.f32.mrb[0].mxu0
      %v856 = vadd.f32 0.0, %v855
      %857 = vmatprep.mubr.f32.mxu0 0.0
      %858 = vmatmul.mubr.f32.gmra.mrb[0].mxu0 %v376
      %v859 = vpop.f32.mrb[0].mxu0
      %v860 = vadd.f32 0.0, %v859
      %v861 = vpop.f32.mrb[0].mxu0
      %v862 = vadd.f32 0.0, %v861
      %863 = vmatprep.mubr.f32.mxu0 0.0
      %864 = vmatmul.mubr.f32.gmra.mrb[0].mxu0 %v379
      %v865 = vpop.f32.mrb[0].mxu0
      %v866 = vadd.f32 0.0, %v865
      %v867 = vpop.f32.mrb[0].mxu0
      %v868 = vadd.f32 0.0, %v867
      %869 = vmatprep.mubr.f32.mxu0 0.0
      %870 = vmatmul.mubr.f32.gmra.mrb[0].mxu0 %v382
      %v871 = vpop.f32.mrb[0].mxu0
      %v872 = vadd.f32 0.0, %v871
      %v873 = vpop.f32.mrb[0].mxu0
      %v874 = vadd.f32 0.0, %v873
      %875 = vmatprep.mubr.f32.mxu0 0.0
      %876 = vmatmul.mubr.f32.gmra.mrb[0].mxu0 %v385
      %v877 = vpop.f32.mrb[0].mxu0
      %v878 = vadd.f32 0.0, %v877
      %v879 = vpop.f32.mrb[0].mxu0
      %v880 = vadd.f32 0.0, %v879
      %881 = vmatprep.mubr.f32.mxu0 0.0
      %882 = vmatmul.mubr.f32.gmra.mrb[0].mxu0 %v388
      %v883 = vpop.f32.mrb[0].mxu0
      %v884 = vadd.f32 0.0, %v883
      %v885 = vpop.f32.mrb[0].mxu0
      %v886 = vadd.f32 0.0, %v885
      %887 = vmatprep.mubr.f32.mxu0 0.0
      %888 = vmatmul.mubr.f32.gmra.mrb[0].mxu0 %v391
      %v889 = vpop.f32.mrb[0].mxu0
      %v890 = vadd.f32 0.0, %v889
      %v891 = vpop.f32.mrb[0].mxu0
      %v892 = vadd.f32 0.0, %v891
      %893 = vmatprep.mubr.f32.mxu0 0.0
      %894 = vmatmul.mubr.f32.gmra.mrb[0].mxu0 %v394
      %v895 = vpop.f32.mrb[0].mxu0
      %v896 = vadd.f32 0.0, %v895
      %v897 = vpop.f32.mrb[0].mxu0
      %v898 = vadd.f32 0.0, %v897
      %899 = vmatprep.mubr.f32.mxu0 0.0
      %900 = vmatmul.mubr.f32.gmra.mrb[0].mxu0 %v397
      %v901 = vpop.f32.mrb[0].mxu0
      %v902 = vadd.f32 0.0, %v901
      %v903 = vpop.f32.mrb[0].mxu0
      %v904 = vadd.f32 0.0, %v903
      %905 = vmatprep.mubr.f32.mxu0 0.0
      %906 = vmatmul.mubr.f32.gmra.mrb[0].mxu0 %v400
      %v907 = vpop.f32.mrb[0].mxu0
      %v908 = vadd.f32 0.0, %v907
      %v909 = vpop.f32.mrb[0].mxu0
      %v910 = vadd.f32 0.0, %v909
      %911 = vmatprep.mubr.f32.mxu0 0.0
      %912 = vmatmul.mubr.f32.gmra.mrb[0].mxu0 %v403
      %v913 = vpop.f32.mrb[0].mxu0
      %v914 = vadd.f32 0.0, %v913
      %v915 = vpop.f32.mrb[0].mxu0
      %v916 = vadd.f32 0.0, %v915
      %917 = vmatprep.mubr.f32.mxu0 0.0
      %918 = vmatmul.mubr.f32.gmra.mrb[0].mxu0 %v406
      %v919 = vpop.f32.mrb[0].mxu0
      %v920 = vadd.f32 0.0, %v919
      %v921 = vpop.f32.mrb[0].mxu0
      %v922 = vadd.f32 0.0, %v921
      %923 = vmatprep.mubr.f32.mxu0 0.0
      %924 = vmatmul.mubr.f32.gmra.mrb[0].mxu0 %v409
      %v925 = vpop.f32.mrb[0].mxu0
      %v926 = vadd.f32 0.0, %v925
      %v927 = vpop.f32.mrb[0].mxu0
      %v928 = vadd.f32 0.0, %v927
      %929 = vmatprep.mubr.f32.mxu0 0.0
      %930 = vmatmul.mubr.f32.gmra.mrb[0].mxu0 %v412
      %v931 = vpop.f32.mrb[0].mxu0
      %v932 = vadd.f32 0.0, %v931
      %v933 = vpop.f32.mrb[0].mxu0
      %v934 = vadd.f32 0.0, %v933
      %935 = vmatprep.mubr.f32.mxu0 0.0
      %936 = vmatmul.mubr.f32.gmra.mrb[0].mxu0 %v415
      %v937 = vpop.f32.mrb[0].mxu0
      %v938 = vadd.f32 0.0, %v937
      %v939 = vpop.f32.mrb[0].mxu0
      %v940 = vadd.f32 0.0, %v939
      %941 = vmatprep.mubr.f32.mxu0 0.0
      %942 = vmatmul.mubr.f32.gmra.mrb[0].mxu0 %v418
      %v943 = vpop.f32.mrb[0].mxu0
      %v944 = vadd.f32 0.0, %v943
      %v945 = vpop.f32.mrb[0].mxu0
      %v946 = vadd.f32 0.0, %v945
      %947 = vmatprep.mubr.f32.mxu0 0.0
      %948 = vmatmul.mubr.f32.gmra.mrb[0].mxu0 %v421
      %v949 = vpop.f32.mrb[0].mxu0
      %v950 = vadd.f32 0.0, %v949
      %v951 = vpop.f32.mrb[0].mxu0
      %v952 = vadd.f32 0.0, %v951
      %953 = vmatprep.mubr.f32.mxu0 0.0
      %954 = vmatmul.mubr.f32.gmra.mrb[0].mxu0 %v424
      %v955 = vpop.f32.mrb[0].mxu0
      %v956 = vadd.f32 0.0, %v955
      %v957 = vpop.f32.mrb[0].mxu0
      %v958 = vadd.f32 0.0, %v957
      %959 = vmatprep.mubr.f32.mxu0 0.0
      %960 = vmatmul.mubr.f32.gmra.mrb[0].mxu0 %v427
      %v961 = vpop.f32.mrb[0].mxu0
      %v962 = vadd.f32 0.0, %v961
      %v963 = vpop.f32.mrb[0].mxu0
      %v964 = vadd.f32 0.0, %v963
      %965 = vmatprep.mubr.f32.mxu0 0.0
      %966 = vmatmul.mubr.f32.gmra.mrb[0].mxu0 %v430
      %v967 = vpop.f32.mrb[0].mxu0
      %v968 = vadd.f32 0.0, %v967
      %v969 = vpop.f32.mrb[0].mxu0
      %v970 = vadd.f32 0.0, %v969
      %971 = vmatprep.mubr.f32.mxu0 0.0
      %972 = vmatmul.mubr.f32.gmra.mrb[0].mxu0 %v433
      %v973 = vpop.f32.mrb[0].mxu0
      %v974 = vadd.f32 0.0, %v973
      %v975 = vpop.f32.mrb[0].mxu0
      %v976 = vadd.f32 0.0, %v975
      %977 = vmatprep.mubr.f32.mxu0 0.0
      %978 = vmatmul.mubr.f32.gmra.mrb[0].mxu0 %v436
      %v979 = vpop.f32.mrb[0].mxu0
      %v980 = vadd.f32 0.0, %v979
      %v981 = vpop.f32.mrb[0].mxu0
      %v982 = vadd.f32 0.0, %v981
      %983 = vmatprep.mubr.f32.mxu0 0.0
      %984 = vmatmul.mubr.f32.gmra.mrb[0].mxu0 %v439
      %v985 = vpop.f32.mrb[0].mxu0
      %v986 = vadd.f32 0.0, %v985
      %v987 = vpop.f32.mrb[0].mxu0
      %v988 = vadd.f32 0.0, %v987
      %989 = vmatprep.mubr.f32.mxu0 0.0
      %990 = vmatmul.mubr.f32.gmra.mrb[0].mxu0 %v442
      %v991 = vpop.f32.mrb[0].mxu0
      %v992 = vadd.f32 0.0, %v991
      %v993 = vpop.f32.mrb[0].mxu0
      %v994 = vadd.f32 0.0, %v993
      %995 = vmatprep.mubr.f32.mxu0 0.0
      %996 = vmatmul.mubr.f32.gmra.mrb[0].mxu0 %v445
      %v997 = vpop.f32.mrb[0].mxu0
      %v998 = vadd.f32 0.0, %v997
      %v999 = vpop.f32.mrb[0].mxu0
      %v1000 = vadd.f32 0.0, %v999
      %1001 = vmatprep.mubr.f32.mxu0 0.0
      %1002 = vmatmul.mubr.f32.gmra.mrb[0].mxu0 %v448
      %v1003 = vpop.f32.mrb[0].mxu0
      %v1004 = vadd.f32 0.0, %v1003
      %v1005 = vpop.f32.mrb[0].mxu0
      %v1006 = vadd.f32 0.0, %v1005
      %1007 = vmatprep.mubr.f32.mxu0 0.0
      %1008 = vmatmul.mubr.f32.gmra.mrb[0].mxu0 %v451
      %v1009 = vpop.f32.mrb[0].mxu0
      %v1010 = vadd.f32 0.0, %v1009
      %v1011 = vpop.f32.mrb[0].mxu0
      %v1012 = vadd.f32 0.0, %v1011
      %1013 = vmatprep.mubr.f32.mxu0 0.0
      %1014 = vmatmul.mubr.f32.gmra.mrb[0].mxu0 %v454
      %v1015 = vpop.f32.mrb[0].mxu0
      %v1016 = vadd.f32 0.0, %v1015
      %v1017 = vpop.f32.mrb[0].mxu0
      %v1018 = vadd.f32 0.0, %v1017
      %1019 = vmatprep.mubr.f32.mxu0 0.0
      %1020 = vmatmul.mubr.f32.gmra.mrb[0].mxu0 %v457
      %v1021 = vpop.f32.mrb[0].mxu0
      %v1022 = vadd.f32 0.0, %v1021
      %v1023 = vpop.f32.mrb[0].mxu0
      %v1024 = vadd.f32 0.0, %v1023
      %1025 = vmatprep.mubr.f32.mxu0 0.0
      %1026 = vmatmul.mubr.f32.gmra.mrb[0].mxu0 %v460
      %v1027 = vpop.f32.mrb[0].mxu0
      %v1028 = vadd.f32 0.0, %v1027
      %v1029 = vpop.f32.mrb[0].mxu0
      %v1030 = vadd.f32 0.0, %v1029
      %1031 = vmatprep.mubr.f32.mxu0 0.0
      %1032 = vmatmul.mubr.f32.gmra.mrb[0].mxu0 %v463
      %v1033 = vpop.f32.mrb[0].mxu0
      %v1034 = vadd.f32 0.0, %v1033
      %v1035 = vpop.f32.mrb[0].mxu0
      %v1036 = vadd.f32 0.0, %v1035
      %1037 = vmatprep.mubr.f32.mxu0 0.0
      %1038 = vmatmul.mubr.f32.gmra.mrb[0].mxu0 %v466
      %v1039 = vpop.f32.mrb[0].mxu0
      %v1040 = vadd.f32 0.0, %v1039
      %v1041 = vpop.f32.mrb[0].mxu0
      %v1042 = vadd.f32 0.0, %v1041
      %1043 = vmatprep.mubr.f32.mxu0 0.0
      %1044 = vmatmul.mubr.f32.gmra.mrb[0].mxu0 %v469
      %v1045 = vpop.f32.mrb[0].mxu0
      %v1046 = vadd.f32 0.0, %v1045
      %v1047 = vpop.f32.mrb[0].mxu0
      %v1048 = vadd.f32 0.0, %v1047
      %1049 = vmatprep.mubr.f32.mxu0 0.0
      %1050 = vmatmul.mubr.f32.gmra.mrb[0].mxu0 %v472
      %v1051 = vpop.f32.mrb[0].mxu0
      %v1052 = vadd.f32 0.0, %v1051
      %v1053 = vpop.f32.mrb[0].mxu0
      %v1054 = vadd.f32 0.0, %v1053
      %1055 = vmatprep.mubr.f32.mxu0 0.0
      %1056 = vmatmul.mubr.f32.gmra.mrb[0].mxu0 %v475
      %v1057 = vpop.f32.mrb[0].mxu0
      %v1058 = vadd.f32 0.0, %v1057
      %v1059 = vpop.f32.mrb[0].mxu0
      %v1060 = vadd.f32 0.0, %v1059
      %1061 = vmatprep.mubr.f32.mxu0 0.0
      %1062 = vmatmul.mubr.f32.gmra.mrb[0].mxu0 %v478
      %v1063 = vpop.f32.mrb[0].mxu0
      %v1064 = vadd.f32 0.0, %v1063
      %v1065 = vpop.f32.mrb[0].mxu0
      %v1066 = vadd.f32 0.0, %v1065
      %1067 = vmatprep.mubr.f32.mxu0 0.0
      %1068 = vmatmul.mubr.f32.gmra.mrb[0].mxu0 %v481
      %v1069 = vpop.f32.mrb[0].mxu0
      %v1070 = vadd.f32 0.0, %v1069
      %v1071 = vpop.f32.mrb[0].mxu0
      %v1072 = vadd.f32 0.0, %v1071
      %1073 = vmatprep.mubr.f32.mxu0 0.0
      %1074 = vmatmul.mubr.f32.gmra.mrb[0].mxu0 %v484
      %v1075 = vpop.f32.mrb[0].mxu0
      %v1076 = vadd.f32 0.0, %v1075
      %v1077 = vpop.f32.mrb[0].mxu0
      %v1078 = vadd.f32 0.0, %v1077
      %1079 = vmatprep.mubr.f32.mxu0 0.0
      %1080 = vmatmul.mubr.f32.gmra.mrb[0].mxu0 %v487
      %v1081 = vpop.f32.mrb[0].mxu0
      %v1082 = vadd.f32 0.0, %v1081
      %v1083 = vpop.f32.mrb[0].mxu0
      %v1084 = vadd.f32 0.0, %v1083
      %1085 = vmatprep.mubr.f32.mxu0 0.0
      %1086 = vmatmul.mubr.f32.gmra.mrb[0].mxu0 %v490
      %v1087 = vpop.f32.mrb[0].mxu0
      %v1088 = vadd.f32 0.0, %v1087
      %v1089 = vpop.f32.mrb[0].mxu0
      %v1090 = vadd.f32 0.0, %v1089
      %1091 = vmatprep.mubr.f32.mxu0 0.0
      %1092 = vmatmul.mubr.f32.gmra.mrb[0].mxu0 %v493
      %v1093 = vpop.f32.mrb[0].mxu0
      %v1094 = vadd.f32 0.0, %v1093
      %v1095 = vpop.f32.mrb[0].mxu0
      %v1096 = vadd.f32 0.0, %v1095
      %1097 = vmatprep.mubr.f32.mxu0 0.0
      %1098 = vmatmul.mubr.f32.gmra.mrb[0].mxu0 %v496
      %v1099 = vpop.f32.mrb[0].mxu0
      %v1100 = vadd.f32 0.0, %v1099
      %v1101 = vpop.f32.mrb[0].mxu0
      %v1102 = vadd.f32 0.0, %v1101
      %1103 = vmatprep.mubr.f32.mxu0 0.0
      %1104 = vmatmul.mubr.f32.gmra.mrb[0].mxu0 %v499
      %v1105 = vpop.f32.mrb[0].mxu0
      %v1106 = vadd.f32 0.0, %v1105
      %v1107 = vpop.f32.mrb[0].mxu0
      %v1108 = vadd.f32 0.0, %v1107
      %1109 = vmatprep.mubr.f32.mxu0 0.0
      %1110 = vmatmul.mubr.f32.gmra.mrb[0].mxu0 %v502
      %v1111 = vpop.f32.mrb[0].mxu0
      %v1112 = vadd.f32 0.0, %v1111
      %v1113 = vpop.f32.mrb[0].mxu0
      %v1114 = vadd.f32 0.0, %v1113
      %1115 = vmatprep.mubr.f32.mxu0 0.0
      %1116 = vmatmul.mubr.f32.gmra.mrb[0].mxu0 %v505
      %v1117 = vpop.f32.mrb[0].mxu0
      %v1118 = vadd.f32 0.0, %v1117
      %v1119 = vpop.f32.mrb[0].mxu0
      %v1120 = vadd.f32 0.0, %v1119
      %1121 = vmatprep.mubr.f32.mxu0 0.0
      %1122 = vmatmul.mubr.f32.gmra.mrb[0].mxu0 %v508
      %v1123 = vpop.f32.mrb[0].mxu0
      %v1124 = vadd.f32 0.0, %v1123
      %v1125 = vpop.f32.mrb[0].mxu0
      %v1126 = vadd.f32 0.0, %v1125
      %1127 = vmatprep.mubr.f32.mxu0 0.0
      %1128 = vmatmul.mubr.f32.gmra.mrb[0].mxu0 %v511
      %v1129 = vpop.f32.mrb[0].mxu0
      %v1130 = vadd.f32 0.0, %v1129
      %v1131 = vpop.f32.mrb[0].mxu0
      %v1132 = vadd.f32 0.0, %v1131
      %1133 = vmatprep.mubr.f32.mxu0 0.0
      %1134 = vmatmul.mubr.f32.gmra.mrb[0].mxu0 %v514
      %v1135 = vpop.f32.mrb[0].mxu0
      %v1136 = vadd.f32 0.0, %v1135
      %v1137 = vpop.f32.mrb[0].mxu0
      %v1138 = vadd.f32 0.0, %v1137
      %1139 = vmatprep.mubr.f32.mxu0 0.0
      %1140 = vmatmul.mubr.f32.gmra.mrb[0].mxu0 %v517
      %v1141 = vpop.f32.mrb[0].mxu0
      %v1142 = vadd.f32 0.0, %v1141
      %v1143 = vpop.f32.mrb[0].mxu0
      %v1144 = vadd.f32 0.0, %v1143
      %1145 = vmatprep.mubr.f32.mxu0 0.0
      %1146 = vmatmul.mubr.f32.gmra.mrb[0].mxu0 %v520
      %v1147 = vpop.f32.mrb[0].mxu0
      %v1148 = vadd.f32 0.0, %v1147
      %v1149 = vpop.f32.mrb[0].mxu0
      %v1150 = vadd.f32 0.0, %v1149
      %1151 = vmatprep.mubr.f32.mxu0 0.0
      %1152 = vmatmul.mubr.f32.gmra.mrb[0].mxu0 %v523
      %v1153 = vpop.f32.mrb[0].mxu0
      %v1154 = vadd.f32 0.0, %v1153
      %v1155 = vpop.f32.mrb[0].mxu0
      %v1156 = vadd.f32 0.0, %v1155
      %1157 = vmatprep.mubr.f32.mxu0 0.0
      %1158 = vmatmul.mubr.f32.gmra.mrb[0].mxu0 %v526
      %v1159 = vpop.f32.mrb[0].mxu0
      %v1160 = vadd.f32 0.0, %v1159
      %v1161 = vpop.f32.mrb[0].mxu0
      %v1162 = vadd.f32 0.0, %v1161
      %1163 = vmatprep.mubr.f32.mxu0 0.0
      %1164 = vmatmul.mubr.f32.gmra.mrb[0].mxu0 %v529
      %v1165 = vpop.f32.mrb[0].mxu0
      %v1166 = vadd.f32 0.0, %v1165
      %v1167 = vpop.f32.mrb[0].mxu0
      %v1168 = vadd.f32 0.0, %v1167
      %1169 = vmatprep.mubr.f32.mxu0 0.0
      %1170 = vmatmul.mubr.f32.gmra.mrb[0].mxu0 %v532
      %v1171 = vpop.f32.mrb[0].mxu0
      %v1172 = vadd.f32 0.0, %v1171
      %v1173 = vpop.f32.mrb[0].mxu0
      %v1174 = vadd.f32 0.0, %v1173
      %1175 = vmatprep.mubr.f32.mxu0 0.0
      %1176 = vmatmul.mubr.f32.gmra.mrb[0].mxu0 %v535
      %v1177 = vpop.f32.mrb[0].mxu0
      %v1178 = vadd.f32 0.0, %v1177
      %v1179 = vpop.f32.mrb[0].mxu0
      %v1180 = vadd.f32 0.0, %v1179
      %1181 = vmatprep.mubr.f32.mxu0 0.0
      %1182 = vmatmul.mubr.f32.gmra.mrb[0].mxu0 %v538
      %v1183 = vpop.f32.mrb[0].mxu0
      %v1184 = vadd.f32 0.0, %v1183
      %v1185 = vpop.f32.mrb[0].mxu0
      %v1186 = vadd.f32 0.0, %v1185
      %1187 = vdwg.mxu0
      %v1188 = vxor.u32 %v616, 2147483648
      %v1189 = vxor.u32 %v622, 2147483648
      %v1190 = vxor.u32 %v628, 2147483648
      %v1191 = vxor.u32 %v634, 2147483648
      %v1192 = vxor.u32 %v640, 2147483648
      %v1193 = vxor.u32 %v646, 2147483648
      %v1194 = vxor.u32 %v652, 2147483648
      %v1195 = vxor.u32 %v658, 2147483648
      %v1196 = vxor.u32 %v664, 2147483648
      %v1197 = vxor.u32 %v670, 2147483648
      %v1198 = vxor.u32 %v676, 2147483648
      %v1199 = vxor.u32 %v682, 2147483648
      %v1200 = vxor.u32 %v688, 2147483648
      %v1201 = vxor.u32 %v694, 2147483648
      %v1202 = vxor.u32 %v700, 2147483648
      %v1203 = vxor.u32 %v706, 2147483648
      %v1204 = vxor.u32 %v712, 2147483648
      %v1205 = vxor.u32 %v718, 2147483648
      %v1206 = vxor.u32 %v724, 2147483648
      %v1207 = vxor.u32 %v730, 2147483648
      %v1208 = vxor.u32 %v736, 2147483648
      %v1209 = vxor.u32 %v742, 2147483648
      %v1210 = vxor.u32 %v748, 2147483648
      %v1211 = vxor.u32 %v754, 2147483648
      %v1212 = vxor.u32 %v760, 2147483648
      %v1213 = vxor.u32 %v766, 2147483648
      %v1214 = vxor.u32 %v772, 2147483648
      %v1215 = vxor.u32 %v778, 2147483648
      %v1216 = vxor.u32 %v784, 2147483648
      %v1217 = vxor.u32 %v790, 2147483648
      %v1218 = vxor.u32 %v796, 2147483648
      %v1219 = vxor.u32 %v802, 2147483648
      %v1220 = vxor.u32 %v808, 2147483648
      %v1221 = vxor.u32 %v814, 2147483648
      %v1222 = vxor.u32 %v820, 2147483648
      %v1223 = vxor.u32 %v826, 2147483648
      %v1224 = vxor.u32 %v832, 2147483648
      %v1225 = vxor.u32 %v838, 2147483648
      %v1226 = vxor.u32 %v844, 2147483648
      %v1227 = vxor.u32 %v850, 2147483648
      %v1228 = vxor.u32 %v856, 2147483648
      %v1229 = vxor.u32 %v862, 2147483648
      %v1230 = vxor.u32 %v868, 2147483648
      %v1231 = vxor.u32 %v874, 2147483648
      %v1232 = vxor.u32 %v880, 2147483648
      %v1233 = vxor.u32 %v886, 2147483648
      %v1234 = vxor.u32 %v892, 2147483648
      %v1235 = vxor.u32 %v898, 2147483648
      %v1236 = vxor.u32 %v904, 2147483648
      %v1237 = vxor.u32 %v910, 2147483648
      %v1238 = vxor.u32 %v916, 2147483648
      %v1239 = vxor.u32 %v922, 2147483648
      %v1240 = vxor.u32 %v928, 2147483648
      %v1241 = vxor.u32 %v934, 2147483648
      %v1242 = vxor.u32 %v940, 2147483648
      %v1243 = vxor.u32 %v946, 2147483648
      %v1244 = vxor.u32 %v952, 2147483648
      %v1245 = vxor.u32 %v958, 2147483648
      %v1246 = vxor.u32 %v964, 2147483648
      %v1247 = vxor.u32 %v970, 2147483648
      %v1248 = vxor.u32 %v976, 2147483648
      %v1249 = vxor.u32 %v982, 2147483648
      %v1250 = vxor.u32 %v988, 2147483648
      %v1251 = vxor.u32 %v994, 2147483648
      %v1252 = vxor.u32 %v1000, 2147483648
      %v1253 = vxor.u32 %v1006, 2147483648
      %v1254 = vxor.u32 %v1012, 2147483648
      %v1255 = vxor.u32 %v1018, 2147483648
      %v1256 = vxor.u32 %v1024, 2147483648
      %v1257 = vxor.u32 %v1030, 2147483648
      %v1258 = vxor.u32 %v1036, 2147483648
      %v1259 = vxor.u32 %v1042, 2147483648
      %v1260 = vxor.u32 %v1048, 2147483648
      %v1261 = vxor.u32 %v1054, 2147483648
      %v1262 = vxor.u32 %v1060, 2147483648
      %v1263 = vxor.u32 %v1066, 2147483648
      %v1264 = vxor.u32 %v1072, 2147483648
      %v1265 = vxor.u32 %v1078, 2147483648
      %v1266 = vxor.u32 %v1084, 2147483648
      %v1267 = vxor.u32 %v1090, 2147483648
      %v1268 = vxor.u32 %v1096, 2147483648
      %v1269 = vxor.u32 %v1102, 2147483648
      %v1270 = vxor.u32 %v1108, 2147483648
      %v1271 = vxor.u32 %v1114, 2147483648
      %v1272 = vxor.u32 %v1120, 2147483648
      %v1273 = vxor.u32 %v1126, 2147483648
      %v1274 = vxor.u32 %v1132, 2147483648
      %v1275 = vxor.u32 %v1138, 2147483648
      %v1276 = vxor.u32 %v1144, 2147483648
      %v1277 = vxor.u32 %v1150, 2147483648
      %v1278 = vxor.u32 %v1156, 2147483648
      %v1279 = vxor.u32 %v1162, 2147483648
      %v1280 = vxor.u32 %v1168, 2147483648
      %v1281 = vxor.u32 %v1174, 2147483648
      %v1282 = vxor.u32 %v1180, 2147483648
      %v1283 = vxor.u32 %v1186, 2147483648
      %v1284 = vmul.f32 %v1188, 1.442695
      %v1285 = vpow.pop %v1284
      %v1286 = vmul.f32 %v1189, 1.442695
      %v1287 = vpow.pop %v1286
      %v1288 = vmul.f32 %v1190, 1.442695
      %v1289 = vpow.pop %v1288
      %v1290 = vmul.f32 %v1191, 1.442695
      %v1291 = vpow.pop %v1290
      %v1292 = vmul.f32 %v1192, 1.442695
      %v1293 = vpow.pop %v1292
      %v1294 = vmul.f32 %v1193, 1.442695
      %v1295 = vpow.pop %v1294
      %v1296 = vmul.f32 %v1194, 1.442695
      %v1297 = vpow.pop %v1296
      %v1298 = vmul.f32 %v1195, 1.442695
      %v1299 = vpow.pop %v1298
      %v1300 = vmul.f32 %v1196, 1.442695
      %v1301 = vpow.pop %v1300
      %v1302 = vmul.f32 %v1197, 1.442695
      %v1303 = vpow.pop %v1302
      %v1304 = vmul.f32 %v1198, 1.442695
      %v1305 = vpow.pop %v1304
      %v1306 = vmul.f32 %v1199, 1.442695
      %v1307 = vpow.pop %v1306
      %v1308 = vmul.f32 %v1200, 1.442695
      %v1309 = vpow.pop %v1308
      %v1310 = vmul.f32 %v1201, 1.442695
      %v1311 = vpow.pop %v1310
      %v1312 = vmul.f32 %v1202, 1.442695
      %v1313 = vpow.pop %v1312
      %v1314 = vmul.f32 %v1203, 1.442695
      %v1315 = vpow.pop %v1314
      %v1316 = vmul.f32 %v1204, 1.442695
      %v1317 = vpow.pop %v1316
      %v1318 = vmul.f32 %v1205, 1.442695
      %v1319 = vpow.pop %v1318
      %v1320 = vmul.f32 %v1206, 1.442695
      %v1321 = vpow.pop %v1320
      %v1322 = vmul.f32 %v1207, 1.442695
      %v1323 = vpow.pop %v1322
      %v1324 = vmul.f32 %v1208, 1.442695
      %v1325 = vpow.pop %v1324
      %v1326 = vmul.f32 %v1209, 1.442695
      %v1327 = vpow.pop %v1326
      %v1328 = vmul.f32 %v1210, 1.442695
      %v1329 = vpow.pop %v1328
      %v1330 = vmul.f32 %v1211, 1.442695
      %v1331 = vpow.pop %v1330
      %v1332 = vmul.f32 %v1212, 1.442695
      %v1333 = vpow.pop %v1332
      %v1334 = vmul.f32 %v1213, 1.442695
      %v1335 = vpow.pop %v1334
      %v1336 = vmul.f32 %v1214, 1.442695
      %v1337 = vpow.pop %v1336
      %v1338 = vmul.f32 %v1215, 1.442695
      %v1339 = vpow.pop %v1338
      %v1340 = vmul.f32 %v1216, 1.442695
      %v1341 = vpow.pop %v1340
      %v1342 = vmul.f32 %v1217, 1.442695
      %v1343 = vpow.pop %v1342
      %v1344 = vmul.f32 %v1218, 1.442695
      %v1345 = vpow.pop %v1344
      %v1346 = vmul.f32 %v1219, 1.442695
      %v1347 = vpow.pop %v1346
      %v1348 = vmul.f32 %v1220, 1.442695
      %v1349 = vpow.pop %v1348
      %v1350 = vmul.f32 %v1221, 1.442695
      %v1351 = vpow.pop %v1350
      %v1352 = vmul.f32 %v1222, 1.442695
      %v1353 = vpow.pop %v1352
      %v1354 = vmul.f32 %v1223, 1.442695
      %v1355 = vpow.pop %v1354
      %v1356 = vmul.f32 %v1224, 1.442695
      %v1357 = vpow.pop %v1356
      %v1358 = vmul.f32 %v1225, 1.442695
      %v1359 = vpow.pop %v1358
      %v1360 = vmul.f32 %v1226, 1.442695
      %v1361 = vpow.pop %v1360
      %v1362 = vmul.f32 %v1227, 1.442695
      %v1363 = vpow.pop %v1362
      %v1364 = vmul.f32 %v1228, 1.442695
      %v1365 = vpow.pop %v1364
      %v1366 = vmul.f32 %v1229, 1.442695
      %v1367 = vpow.pop %v1366
      %v1368 = vmul.f32 %v1230, 1.442695
      %v1369 = vpow.pop %v1368
      %v1370 = vmul.f32 %v1231, 1.442695
      %v1371 = vpow.pop %v1370
      %v1372 = vmul.f32 %v1232, 1.442695
      %v1373 = vpow.pop %v1372
      %v1374 = vmul.f32 %v1233, 1.442695
      %v1375 = vpow.pop %v1374
      %v1376 = vmul.f32 %v1234, 1.442695
      %v1377 = vpow.pop %v1376
      %v1378 = vmul.f32 %v1235, 1.442695
      %v1379 = vpow.pop %v1378
      %v1380 = vmul.f32 %v1236, 1.442695
      %v1381 = vpow.pop %v1380
      %v1382 = vmul.f32 %v1237, 1.442695
      %v1383 = vpow.pop %v1382
      %v1384 = vmul.f32 %v1238, 1.442695
      %v1385 = vpow.pop %v1384
      %v1386 = vmul.f32 %v1239, 1.442695
      %v1387 = vpow.pop %v1386
      %v1388 = vmul.f32 %v1240, 1.442695
      %v1389 = vpow.pop %v1388
      %v1390 = vmul.f32 %v1241, 1.442695
      %v1391 = vpow.pop %v1390
      %v1392 = vmul.f32 %v1242, 1.442695
      %v1393 = vpow.pop %v1392
      %v1394 = vmul.f32 %v1243, 1.442695
      %v1395 = vpow.pop %v1394
      %v1396 = vmul.f32 %v1244, 1.442695
      %v1397 = vpow.pop %v1396
      %v1398 = vmul.f32 %v1245, 1.442695
      %v1399 = vpow.pop %v1398
      %v1400 = vmul.f32 %v1246, 1.442695
      %v1401 = vpow.pop %v1400
      %v1402 = vmul.f32 %v1247, 1.442695
      %v1403 = vpow.pop %v1402
      %v1404 = vmul.f32 %v1248, 1.442695
      %v1405 = vpow.pop %v1404
      %v1406 = vmul.f32 %v1249, 1.442695
      %v1407 = vpow.pop %v1406
      %v1408 = vmul.f32 %v1250, 1.442695
      %v1409 = vpow.pop %v1408
      %v1410 = vmul.f32 %v1251, 1.442695
      %v1411 = vpow.pop %v1410
      %v1412 = vmul.f32 %v1252, 1.442695
      %v1413 = vpow.pop %v1412
      %v1414 = vmul.f32 %v1253, 1.442695
      %v1415 = vpow.pop %v1414
      %v1416 = vmul.f32 %v1254, 1.442695
      %v1417 = vpow.pop %v1416
      %v1418 = vmul.f32 %v1255, 1.442695
      %v1419 = vpow.pop %v1418
      %v1420 = vmul.f32 %v1256, 1.442695
      %v1421 = vpow.pop %v1420
      %v1422 = vmul.f32 %v1257, 1.442695
      %v1423 = vpow.pop %v1422
      %v1424 = vmul.f32 %v1258, 1.442695
      %v1425 = vpow.pop %v1424
      %v1426 = vmul.f32 %v1259, 1.442695
      %v1427 = vpow.pop %v1426
      %v1428 = vmul.f32 %v1260, 1.442695
      %v1429 = vpow.pop %v1428
      %v1430 = vmul.f32 %v1261, 1.442695
      %v1431 = vpow.pop %v1430
      %v1432 = vmul.f32 %v1262, 1.442695
      %v1433 = vpow.pop %v1432
      %v1434 = vmul.f32 %v1263, 1.442695
      %v1435 = vpow.pop %v1434
      %v1436 = vmul.f32 %v1264, 1.442695
      %v1437 = vpow.pop %v1436
      %v1438 = vmul.f32 %v1265, 1.442695
      %v1439 = vpow.pop %v1438
      %v1440 = vmul.f32 %v1266, 1.442695
      %v1441 = vpow.pop %v1440
      %v1442 = vmul.f32 %v1267, 1.442695
      %v1443 = vpow.pop %v1442
      %v1444 = vmul.f32 %v1268, 1.442695
      %v1445 = vpow.pop %v1444
      %v1446 = vmul.f32 %v1269, 1.442695
      %v1447 = vpow.pop %v1446
      %v1448 = vmul.f32 %v1270, 1.442695
      %v1449 = vpow.pop %v1448
      %v1450 = vmul.f32 %v1271, 1.442695
      %v1451 = vpow.pop %v1450
      %v1452 = vmul.f32 %v1272, 1.442695
      %v1453 = vpow.pop %v1452
      %v1454 = vmul.f32 %v1273, 1.442695
      %v1455 = vpow.pop %v1454
      %v1456 = vmul.f32 %v1274, 1.442695
      %v1457 = vpow.pop %v1456
      %v1458 = vmul.f32 %v1275, 1.442695
      %v1459 = vpow.pop %v1458
      %v1460 = vmul.f32 %v1276, 1.442695
      %v1461 = vpow.pop %v1460
      %v1462 = vmul.f32 %v1277, 1.442695
      %v1463 = vpow.pop %v1462
      %v1464 = vmul.f32 %v1278, 1.442695
      %v1465 = vpow.pop %v1464
      %v1466 = vmul.f32 %v1279, 1.442695
      %v1467 = vpow.pop %v1466
      %v1468 = vmul.f32 %v1280, 1.442695
      %v1469 = vpow.pop %v1468
      %v1470 = vmul.f32 %v1281, 1.442695
      %v1471 = vpow.pop %v1470
      %v1472 = vmul.f32 %v1282, 1.442695
      %v1473 = vpow.pop %v1472
      %v1474 = vmul.f32 %v1283, 1.442695
      %v1475 = vpow.pop %v1474
      %v1476 = vadd.f32 %v1285, 1.0
      %v1477 = vadd.f32 %v1287, 1.0
      %v1478 = vadd.f32 %v1289, 1.0
      %v1479 = vadd.f32 %v1291, 1.0
      %v1480 = vadd.f32 %v1293, 1.0
      %v1481 = vadd.f32 %v1295, 1.0
      %v1482 = vadd.f32 %v1297, 1.0
      %v1483 = vadd.f32 %v1299, 1.0
      %v1484 = vadd.f32 %v1301, 1.0
      %v1485 = vadd.f32 %v1303, 1.0
      %v1486 = vadd.f32 %v1305, 1.0
      %v1487 = vadd.f32 %v1307, 1.0
      %v1488 = vadd.f32 %v1309, 1.0
      %v1489 = vadd.f32 %v1311, 1.0
      %v1490 = vadd.f32 %v1313, 1.0
      %v1491 = vadd.f32 %v1315, 1.0
      %v1492 = vadd.f32 %v1317, 1.0
      %v1493 = vadd.f32 %v1319, 1.0
      %v1494 = vadd.f32 %v1321, 1.0
      %v1495 = vadd.f32 %v1323, 1.0
      %v1496 = vadd.f32 %v1325, 1.0
      %v1497 = vadd.f32 %v1327, 1.0
      %v1498 = vadd.f32 %v1329, 1.0
      %v1499 = vadd.f32 %v1331, 1.0
      %v1500 = vadd.f32 %v1333, 1.0
      %v1501 = vadd.f32 %v1335, 1.0
      %v1502 = vadd.f32 %v1337, 1.0
      %v1503 = vadd.f32 %v1339, 1.0
      %v1504 = vadd.f32 %v1341, 1.0
      %v1505 = vadd.f32 %v1343, 1.0
      %v1506 = vadd.f32 %v1345, 1.0
      %v1507 = vadd.f32 %v1347, 1.0
      %v1508 = vadd.f32 %v1349, 1.0
      %v1509 = vadd.f32 %v1351, 1.0
      %v1510 = vadd.f32 %v1353, 1.0
      %v1511 = vadd.f32 %v1355, 1.0
      %v1512 = vadd.f32 %v1357, 1.0
      %v1513 = vadd.f32 %v1359, 1.0
      %v1514 = vadd.f32 %v1361, 1.0
      %v1515 = vadd.f32 %v1363, 1.0
      %v1516 = vadd.f32 %v1365, 1.0
      %v1517 = vadd.f32 %v1367, 1.0
      %v1518 = vadd.f32 %v1369, 1.0
      %v1519 = vadd.f32 %v1371, 1.0
      %v1520 = vadd.f32 %v1373, 1.0
      %v1521 = vadd.f32 %v1375, 1.0
      %v1522 = vadd.f32 %v1377, 1.0
      %v1523 = vadd.f32 %v1379, 1.0
      %v1524 = vadd.f32 %v1381, 1.0
      %v1525 = vadd.f32 %v1383, 1.0
      %v1526 = vadd.f32 %v1385, 1.0
      %v1527 = vadd.f32 %v1387, 1.0
      %v1528 = vadd.f32 %v1389, 1.0
      %v1529 = vadd.f32 %v1391, 1.0
      %v1530 = vadd.f32 %v1393, 1.0
      %v1531 = vadd.f32 %v1395, 1.0
      %v1532 = vadd.f32 %v1397, 1.0
      %v1533 = vadd.f32 %v1399, 1.0
      %v1534 = vadd.f32 %v1401, 1.0
      %v1535 = vadd.f32 %v1403, 1.0
      %v1536 = vadd.f32 %v1405, 1.0
      %v1537 = vadd.f32 %v1407, 1.0
      %v1538 = vadd.f32 %v1409, 1.0
      %v1539 = vadd.f32 %v1411, 1.0
      %v1540 = vadd.f32 %v1413, 1.0
      %v1541 = vadd.f32 %v1415, 1.0
      %v1542 = vadd.f32 %v1417, 1.0
      %v1543 = vadd.f32 %v1419, 1.0
      %v1544 = vadd.f32 %v1421, 1.0
      %v1545 = vadd.f32 %v1423, 1.0
      %v1546 = vadd.f32 %v1425, 1.0
      %v1547 = vadd.f32 %v1427, 1.0
      %v1548 = vadd.f32 %v1429, 1.0
      %v1549 = vadd.f32 %v1431, 1.0
      %v1550 = vadd.f32 %v1433, 1.0
      %v1551 = vadd.f32 %v1435, 1.0
      %v1552 = vadd.f32 %v1437, 1.0
      %v1553 = vadd.f32 %v1439, 1.0
      %v1554 = vadd.f32 %v1441, 1.0
      %v1555 = vadd.f32 %v1443, 1.0
      %v1556 = vadd.f32 %v1445, 1.0
      %v1557 = vadd.f32 %v1447, 1.0
      %v1558 = vadd.f32 %v1449, 1.0
      %v1559 = vadd.f32 %v1451, 1.0
      %v1560 = vadd.f32 %v1453, 1.0
      %v1561 = vadd.f32 %v1455, 1.0
      %v1562 = vadd.f32 %v1457, 1.0
      %v1563 = vadd.f32 %v1459, 1.0
      %v1564 = vadd.f32 %v1461, 1.0
      %v1565 = vadd.f32 %v1463, 1.0
      %v1566 = vadd.f32 %v1465, 1.0
      %v1567 = vadd.f32 %v1467, 1.0
      %v1568 = vadd.f32 %v1469, 1.0
      %v1569 = vadd.f32 %v1471, 1.0
      %v1570 = vadd.f32 %v1473, 1.0
      %v1571 = vadd.f32 %v1475, 1.0
      %v1572 = vrcp.pop %v1476
      %v1573 = vmul.f32 1.0, %v1572
      %v1574 = vrcp.pop %v1477
      %v1575 = vmul.f32 1.0, %v1574
      %v1576 = vrcp.pop %v1478
      %v1577 = vmul.f32 1.0, %v1576
      %v1578 = vrcp.pop %v1479
      %v1579 = vmul.f32 1.0, %v1578
      %v1580 = vrcp.pop %v1480
      %v1581 = vmul.f32 1.0, %v1580
      %v1582 = vrcp.pop %v1481
      %v1583 = vmul.f32 1.0, %v1582
      %v1584 = vrcp.pop %v1482
      %v1585 = vmul.f32 1.0, %v1584
      %v1586 = vrcp.pop %v1483
      %v1587 = vmul.f32 1.0, %v1586
      %v1588 = vrcp.pop %v1484
      %v1589 = vmul.f32 1.0, %v1588
      %v1590 = vrcp.pop %v1485
      %v1591 = vmul.f32 1.0, %v1590
      %v1592 = vrcp.pop %v1486
      %v1593 = vmul.f32 1.0, %v1592
      %v1594 = vrcp.pop %v1487
      %v1595 = vmul.f32 1.0, %v1594
      %v1596 = vrcp.pop %v1488
      %v1597 = vmul.f32 1.0, %v1596
      %v1598 = vrcp.pop %v1489
      %v1599 = vmul.f32 1.0, %v1598
      %v1600 = vrcp.pop %v1490
      %v1601 = vmul.f32 1.0, %v1600
      %v1602 = vrcp.pop %v1491
      %v1603 = vmul.f32 1.0, %v1602
      %v1604 = vrcp.pop %v1492
      %v1605 = vmul.f32 1.0, %v1604
      %v1606 = vrcp.pop %v1493
      %v1607 = vmul.f32 1.0, %v1606
      %v1608 = vrcp.pop %v1494
      %v1609 = vmul.f32 1.0, %v1608
      %v1610 = vrcp.pop %v1495
      %v1611 = vmul.f32 1.0, %v1610
      %v1612 = vrcp.pop %v1496
      %v1613 = vmul.f32 1.0, %v1612
      %v1614 = vrcp.pop %v1497
      %v1615 = vmul.f32 1.0, %v1614
      %v1616 = vrcp.pop %v1498
      %v1617 = vmul.f32 1.0, %v1616
      %v1618 = vrcp.pop %v1499
      %v1619 = vmul.f32 1.0, %v1618
      %v1620 = vrcp.pop %v1500
      %v1621 = vmul.f32 1.0, %v1620
      %v1622 = vrcp.pop %v1501
      %v1623 = vmul.f32 1.0, %v1622
      %v1624 = vrcp.pop %v1502
      %v1625 = vmul.f32 1.0, %v1624
      %v1626 = vrcp.pop %v1503
      %v1627 = vmul.f32 1.0, %v1626
      %v1628 = vrcp.pop %v1504
      %v1629 = vmul.f32 1.0, %v1628
      %v1630 = vrcp.pop %v1505
      %v1631 = vmul.f32 1.0, %v1630
      %v1632 = vrcp.pop %v1506
      %v1633 = vmul.f32 1.0, %v1632
      %v1634 = vrcp.pop %v1507
      %v1635 = vmul.f32 1.0, %v1634
      %v1636 = vrcp.pop %v1508
      %v1637 = vmul.f32 1.0, %v1636
      %v1638 = vrcp.pop %v1509
      %v1639 = vmul.f32 1.0, %v1638
      %v1640 = vrcp.pop %v1510
      %v1641 = vmul.f32 1.0, %v1640
      %v1642 = vrcp.pop %v1511
      %v1643 = vmul.f32 1.0, %v1642
      %v1644 = vrcp.pop %v1512
      %v1645 = vmul.f32 1.0, %v1644
      %v1646 = vrcp.pop %v1513
      %v1647 = vmul.f32 1.0, %v1646
      %v1648 = vrcp.pop %v1514
      %v1649 = vmul.f32 1.0, %v1648
      %v1650 = vrcp.pop %v1515
      %v1651 = vmul.f32 1.0, %v1650
      %v1652 = vrcp.pop %v1516
      %v1653 = vmul.f32 1.0, %v1652
      %v1654 = vrcp.pop %v1517
      %v1655 = vmul.f32 1.0, %v1654
      %v1656 = vrcp.pop %v1518
      %v1657 = vmul.f32 1.0, %v1656
      %v1658 = vrcp.pop %v1519
      %v1659 = vmul.f32 1.0, %v1658
      %v1660 = vrcp.pop %v1520
      %v1661 = vmul.f32 1.0, %v1660
      %v1662 = vrcp.pop %v1521
      %v1663 = vmul.f32 1.0, %v1662
      %v1664 = vrcp.pop %v1522
      %v1665 = vmul.f32 1.0, %v1664
      %v1666 = vrcp.pop %v1523
      %v1667 = vmul.f32 1.0, %v1666
      %v1668 = vrcp.pop %v1524
      %v1669 = vmul.f32 1.0, %v1668
      %v1670 = vrcp.pop %v1525
      %v1671 = vmul.f32 1.0, %v1670
      %v1672 = vrcp.pop %v1526
      %v1673 = vmul.f32 1.0, %v1672
      %v1674 = vrcp.pop %v1527
      %v1675 = vmul.f32 1.0, %v1674
      %v1676 = vrcp.pop %v1528
      %v1677 = vmul.f32 1.0, %v1676
      %v1678 = vrcp.pop %v1529
      %v1679 = vmul.f32 1.0, %v1678
      %v1680 = vrcp.pop %v1530
      %v1681 = vmul.f32 1.0, %v1680
      %v1682 = vrcp.pop %v1531
      %v1683 = vmul.f32 1.0, %v1682
      %v1684 = vrcp.pop %v1532
      %v1685 = vmul.f32 1.0, %v1684
      %v1686 = vrcp.pop %v1533
      %v1687 = vmul.f32 1.0, %v1686
      %v1688 = vrcp.pop %v1534
      %v1689 = vmul.f32 1.0, %v1688
      %v1690 = vrcp.pop %v1535
      %v1691 = vmul.f32 1.0, %v1690
      %v1692 = vrcp.pop %v1536
      %v1693 = vmul.f32 1.0, %v1692
      %v1694 = vrcp.pop %v1537
      %v1695 = vmul.f32 1.0, %v1694
      %v1696 = vrcp.pop %v1538
      %v1697 = vmul.f32 1.0, %v1696
      %v1698 = vrcp.pop %v1539
      %v1699 = vmul.f32 1.0, %v1698
      %v1700 = vrcp.pop %v1540
      %v1701 = vmul.f32 1.0, %v1700
      %v1702 = vrcp.pop %v1541
      %v1703 = vmul.f32 1.0, %v1702
      %v1704 = vrcp.pop %v1542
      %v1705 = vmul.f32 1.0, %v1704
      %v1706 = vrcp.pop %v1543
      %v1707 = vmul.f32 1.0, %v1706
      %v1708 = vrcp.pop %v1544
      %v1709 = vmul.f32 1.0, %v1708
      %v1710 = vrcp.pop %v1545
      %v1711 = vmul.f32 1.0, %v1710
      %v1712 = vrcp.pop %v1546
      %v1713 = vmul.f32 1.0, %v1712
      %v1714 = vrcp.pop %v1547
      %v1715 = vmul.f32 1.0, %v1714
      %v1716 = vrcp.pop %v1548
      %v1717 = vmul.f32 1.0, %v1716
      %v1718 = vrcp.pop %v1549
      %v1719 = vmul.f32 1.0, %v1718
      %v1720 = vrcp.pop %v1550
      %v1721 = vmul.f32 1.0, %v1720
      %v1722 = vrcp.pop %v1551
      %v1723 = vmul.f32 1.0, %v1722
      %v1724 = vrcp.pop %v1552
      %v1725 = vmul.f32 1.0, %v1724
      %v1726 = vrcp.pop %v1553
      %v1727 = vmul.f32 1.0, %v1726
      %v1728 = vrcp.pop %v1554
      %v1729 = vmul.f32 1.0, %v1728
      %v1730 = vrcp.pop %v1555
      %v1731 = vmul.f32 1.0, %v1730
      %v1732 = vrcp.pop %v1556
      %v1733 = vmul.f32 1.0, %v1732
      %v1734 = vrcp.pop %v1557
      %v1735 = vmul.f32 1.0, %v1734
      %v1736 = vrcp.pop %v1558
      %v1737 = vmul.f32 1.0, %v1736
      %v1738 = vrcp.pop %v1559
      %v1739 = vmul.f32 1.0, %v1738
      %v1740 = vrcp.pop %v1560
      %v1741 = vmul.f32 1.0, %v1740
      %v1742 = vrcp.pop %v1561
      %v1743 = vmul.f32 1.0, %v1742
      %v1744 = vrcp.pop %v1562
      %v1745 = vmul.f32 1.0, %v1744
      %v1746 = vrcp.pop %v1563
      %v1747 = vmul.f32 1.0, %v1746
      %v1748 = vrcp.pop %v1564
      %v1749 = vmul.f32 1.0, %v1748
      %v1750 = vrcp.pop %v1565
      %v1751 = vmul.f32 1.0, %v1750
      %v1752 = vrcp.pop %v1566
      %v1753 = vmul.f32 1.0, %v1752
      %v1754 = vrcp.pop %v1567
      %v1755 = vmul.f32 1.0, %v1754
      %v1756 = vrcp.pop %v1568
      %v1757 = vmul.f32 1.0, %v1756
      %v1758 = vrcp.pop %v1569
      %v1759 = vmul.f32 1.0, %v1758
      %v1760 = vrcp.pop %v1570
      %v1761 = vmul.f32 1.0, %v1760
      %v1762 = vrcp.pop %v1571
      %v1763 = vmul.f32 1.0, %v1762
      %v1764 = vmul.f32 %v614, %v1573
      %v1765 = vmul.f32 %v620, %v1575
      %v1766 = vmul.f32 %v626, %v1577
      %v1767 = vmul.f32 %v632, %v1579
      %v1768 = vmul.f32 %v638, %v1581
      %v1769 = vmul.f32 %v644, %v1583
      %v1770 = vmul.f32 %v650, %v1585
      %v1771 = vmul.f32 %v656, %v1587
      %v1772 = vmul.f32 %v662, %v1589
      %v1773 = vmul.f32 %v668, %v1591
      %v1774 = vmul.f32 %v674, %v1593
      %v1775 = vmul.f32 %v680, %v1595
      %v1776 = vmul.f32 %v686, %v1597
      %v1777 = vmul.f32 %v692, %v1599
      %v1778 = vmul.f32 %v698, %v1601
      %v1779 = vmul.f32 %v704, %v1603
      %v1780 = vmul.f32 %v710, %v1605
      %v1781 = vmul.f32 %v716, %v1607
      %v1782 = vmul.f32 %v722, %v1609
      %v1783 = vmul.f32 %v728, %v1611
      %v1784 = vmul.f32 %v734, %v1613
      %v1785 = vmul.f32 %v740, %v1615
      %v1786 = vmul.f32 %v746, %v1617
      %v1787 = vmul.f32 %v752, %v1619
      %v1788 = vmul.f32 %v758, %v1621
      %v1789 = vmul.f32 %v764, %v1623
      %v1790 = vmul.f32 %v770, %v1625
      %v1791 = vmul.f32 %v776, %v1627
      %v1792 = vmul.f32 %v782, %v1629
      %v1793 = vmul.f32 %v788, %v1631
      %v1794 = vmul.f32 %v794, %v1633
      %v1795 = vmul.f32 %v800, %v1635
      %v1796 = vmul.f32 %v806, %v1637
      %v1797 = vmul.f32 %v812, %v1639
      %v1798 = vmul.f32 %v818, %v1641
      %v1799 = vmul.f32 %v824, %v1643
      %v1800 = vmul.f32 %v830, %v1645
      %v1801 = vmul.f32 %v836, %v1647
      %v1802 = vmul.f32 %v842, %v1649
      %v1803 = vmul.f32 %v848, %v1651
      %v1804 = vmul.f32 %v854, %v1653
      %v1805 = vmul.f32 %v860, %v1655
      %v1806 = vmul.f32 %v866, %v1657
      %v1807 = vmul.f32 %v872, %v1659
      %v1808 = vmul.f32 %v878, %v1661
      %v1809 = vmul.f32 %v884, %v1663
      %v1810 = vmul.f32 %v890, %v1665
      %v1811 = vmul.f32 %v896, %v1667
      %v1812 = vmul.f32 %v902, %v1669
      %v1813 = vmul.f32 %v908, %v1671
      %v1814 = vmul.f32 %v914, %v1673
      %v1815 = vmul.f32 %v920, %v1675
      %v1816 = vmul.f32 %v926, %v1677
      %v1817 = vmul.f32 %v932, %v1679
      %v1818 = vmul.f32 %v938, %v1681
      %v1819 = vmul.f32 %v944, %v1683
      %v1820 = vmul.f32 %v950, %v1685
      %v1821 = vmul.f32 %v956, %v1687
      %v1822 = vmul.f32 %v962, %v1689
      %v1823 = vmul.f32 %v968, %v1691
      %v1824 = vmul.f32 %v974, %v1693
      %v1825 = vmul.f32 %v980, %v1695
      %v1826 = vmul.f32 %v986, %v1697
      %v1827 = vmul.f32 %v992, %v1699
      %v1828 = vmul.f32 %v998, %v1701
      %v1829 = vmul.f32 %v1004, %v1703
      %v1830 = vmul.f32 %v1010, %v1705
      %v1831 = vmul.f32 %v1016, %v1707
      %v1832 = vmul.f32 %v1022, %v1709
      %v1833 = vmul.f32 %v1028, %v1711
      %v1834 = vmul.f32 %v1034, %v1713
      %v1835 = vmul.f32 %v1040, %v1715
      %v1836 = vmul.f32 %v1046, %v1717
      %v1837 = vmul.f32 %v1052, %v1719
      %v1838 = vmul.f32 %v1058, %v1721
      %v1839 = vmul.f32 %v1064, %v1723
      %v1840 = vmul.f32 %v1070, %v1725
      %v1841 = vmul.f32 %v1076, %v1727
      %v1842 = vmul.f32 %v1082, %v1729
      %v1843 = vmul.f32 %v1088, %v1731
      %v1844 = vmul.f32 %v1094, %v1733
      %v1845 = vmul.f32 %v1100, %v1735
      %v1846 = vmul.f32 %v1106, %v1737
      %v1847 = vmul.f32 %v1112, %v1739
      %v1848 = vmul.f32 %v1118, %v1741
      %v1849 = vmul.f32 %v1124, %v1743
      %v1850 = vmul.f32 %v1130, %v1745
      %v1851 = vmul.f32 %v1136, %v1747
      %v1852 = vmul.f32 %v1142, %v1749
      %v1853 = vmul.f32 %v1148, %v1751
      %v1854 = vmul.f32 %v1154, %v1753
      %v1855 = vmul.f32 %v1160, %v1755
      %v1856 = vmul.f32 %v1166, %v1757
      %v1857 = vmul.f32 %v1172, %v1759
      %v1858 = vmul.f32 %v1178, %v1761
      %v1859 = vmul.f32 %v1184, %v1763
      %1860 = vst [vmem:[%s145] sm:$0xff] %v1764
      %1861 = vst [vmem:[%s145 + $0x8] sm:$0xff] %v1765
      %1862 = vst [vmem:[%s145 + $0x10] sm:$0xff] %v1766
      %1863 = vst [vmem:[%s145 + $0x18] sm:$0xff] %v1767
      %1864 = vst [vmem:[%s145 + $0x20] sm:$0xff] %v1768
      %1865 = vst [vmem:[%s145 + $0x28] sm:$0xff] %v1769
      %1866 = vst [vmem:[%s145 + $0x30] sm:$0xff] %v1770
      %1867 = vst [vmem:[%s145 + $0x38] sm:$0xff] %v1771
      %1868 = vst [vmem:[%s145 + $0x40] sm:$0xff] %v1772
      %1869 = vst [vmem:[%s145 + $0x48] sm:$0xff] %v1773
      %1870 = vst [vmem:[%s145 + $0x50] sm:$0xff] %v1774
      %1871 = vst [vmem:[%s145 + $0x58] sm:$0xff] %v1775
      %1872 = vst [vmem:[%s145 + $0x60] sm:$0xff] %v1776
      %1873 = vst [vmem:[%s145 + $0x68] sm:$0xff] %v1777
      %1874 = vst [vmem:[%s145 + $0x70] sm:$0xff] %v1778
      %1875 = vst [vmem:[%s145 + $0x78] sm:$0xff] %v1779
      %1876 = vst [vmem:[%s145 + $0x80] sm:$0xff] %v1780
      %1877 = vst [vmem:[%s145 + $0x88] sm:$0xff] %v1781
      %1878 = vst [vmem:[%s145 + $0x90] sm:$0xff] %v1782
      %1879 = vst [vmem:[%s145 + $0x98] sm:$0xff] %v1783
      %1880 = vst [vmem:[%s145 + $0xa0] sm:$0xff] %v1784
      %1881 = vst [vmem:[%s145 + $0xa8] sm:$0xff] %v1785
      %1882 = vst [vmem:[%s145 + $0xb0] sm:$0xff] %v1786
      %1883 = vst [vmem:[%s145 + $0xb8] sm:$0xff] %v1787
      %1884 = vst [vmem:[%s145 + $0xc0] sm:$0xff] %v1788
      %1885 = vst [vmem:[%s145 + $0xc8] sm:$0xff] %v1789
      %1886 = vst [vmem:[%s145 + $0xd0] sm:$0xff] %v1790
      %1887 = vst [vmem:[%s145 + $0xd8] sm:$0xff] %v1791
      %1888 = vst [vmem:[%s145 + $0xe0] sm:$0xff] %v1792
      %1889 = vst [vmem:[%s145 + $0xe8] sm:$0xff] %v1793
      %1890 = vst [vmem:[%s145 + $0xf0] sm:$0xff] %v1794
      %1891 = vst [vmem:[%s145 + $0xf8] sm:$0xff] %v1795
      %1892 = vst [vmem:[%s145 + $0x100] sm:$0xff] %v1796
      %1893 = vst [vmem:[%s145 + $0x108] sm:$0xff] %v1797
      %1894 = vst [vmem:[%s145 + $0x110] sm:$0xff] %v1798
      %1895 = vst [vmem:[%s145 + $0x118] sm:$0xff] %v1799
      %1896 = vst [vmem:[%s145 + $0x120] sm:$0xff] %v1800
      %1897 = vst [vmem:[%s145 + $0x128] sm:$0xff] %v1801
      %1898 = vst [vmem:[%s145 + $0x130] sm:$0xff] %v1802
      %1899 = vst [vmem:[%s145 + $0x138] sm:$0xff] %v1803
      %1900 = vst [vmem:[%s145 + $0x140] sm:$0xff] %v1804
      %1901 = vst [vmem:[%s145 + $0x148] sm:$0xff] %v1805
      %1902 = vst [vmem:[%s145 + $0x150] sm:$0xff] %v1806
      %1903 = vst [vmem:[%s145 + $0x158] sm:$0xff] %v1807
      %1904 = vst [vmem:[%s145 + $0x160] sm:$0xff] %v1808
      %1905 = vst [vmem:[%s145 + $0x168] sm:$0xff] %v1809
      %1906 = vst [vmem:[%s145 + $0x170] sm:$0xff] %v1810
      %1907 = vst [vmem:[%s145 + $0x178] sm:$0xff] %v1811
      %1908 = vst [vmem:[%s145 + $0x180] sm:$0xff] %v1812
      %1909 = vst [vmem:[%s145 + $0x188] sm:$0xff] %v1813
      %1910 = vst [vmem:[%s145 + $0x190] sm:$0xff] %v1814
      %1911 = vst [vmem:[%s145 + $0x198] sm:$0xff] %v1815
      %1912 = vst [vmem:[%s145 + $0x1a0] sm:$0xff] %v1816
      %1913 = vst [vmem:[%s145 + $0x1a8] sm:$0xff] %v1817
      %1914 = vst [vmem:[%s145 + $0x1b0] sm:$0xff] %v1818
      %1915 = vst [vmem:[%s145 + $0x1b8] sm:$0xff] %v1819
      %1916 = vst [vmem:[%s145 + $0x1c0] sm:$0xff] %v1820
      %1917 = vst [vmem:[%s145 + $0x1c8] sm:$0xff] %v1821
      %1918 = vst [vmem:[%s145 + $0x1d0] sm:$0xff] %v1822
      %1919 = vst [vmem:[%s145 + $0x1d8] sm:$0xff] %v1823
      %1920 = vst [vmem:[%s145 + $0x1e0] sm:$0xff] %v1824
      %1921 = vst [vmem:[%s145 + $0x1e8] sm:$0xff] %v1825
      %1922 = vst [vmem:[%s145 + $0x1f0] sm:$0xff] %v1826
      %1923 = vst [vmem:[%s145 + $0x1f8] sm:$0xff] %v1827
      %1924 = vst [vmem:[%s145 + $0x200] sm:$0xff] %v1828
      %1925 = vst [vmem:[%s145 + $0x208] sm:$0xff] %v1829
      %1926 = vst [vmem:[%s145 + $0x210] sm:$0xff] %v1830
      %1927 = vst [vmem:[%s145 + $0x218] sm:$0xff] %v1831
      %1928 = vst [vmem:[%s145 + $0x220] sm:$0xff] %v1832
      %1929 = vst [vmem:[%s145 + $0x228] sm:$0xff] %v1833
      %1930 = vst [vmem:[%s145 + $0x230] sm:$0xff] %v1834
      %1931 = vst [vmem:[%s145 + $0x238] sm:$0xff] %v1835
      %1932 = vst [vmem:[%s145 + $0x240] sm:$0xff] %v1836
      %1933 = vst [vmem:[%s145 + $0x248] sm:$0xff] %v1837
      %1934 = vst [vmem:[%s145 + $0x250] sm:$0xff] %v1838
      %1935 = vst [vmem:[%s145 + $0x258] sm:$0xff] %v1839
      %1936 = vst [vmem:[%s145 + $0x260] sm:$0xff] %v1840
      %1937 = vst [vmem:[%s145 + $0x268] sm:$0xff] %v1841
      %1938 = vst [vmem:[%s145 + $0x270] sm:$0xff] %v1842
      %1939 = vst [vmem:[%s145 + $0x278] sm:$0xff] %v1843
      %1940 = vst [vmem:[%s145 + $0x280] sm:$0xff] %v1844
      %1941 = vst [vmem:[%s145 + $0x288] sm:$0xff] %v1845
      %1942 = vst [vmem:[%s145 + $0x290] sm:$0xff] %v1846
      %1943 = vst [vmem:[%s145 + $0x298] sm:$0xff] %v1847
      %1944 = vst [vmem:[%s145 + $0x2a0] sm:$0xff] %v1848
      %1945 = vst [vmem:[%s145 + $0x2a8] sm:$0xff] %v1849
      %1946 = vst [vmem:[%s145 + $0x2b0] sm:$0xff] %v1850
      %1947 = vst [vmem:[%s145 + $0x2b8] sm:$0xff] %v1851
      %1948 = vst [vmem:[%s145 + $0x2c0] sm:$0xff] %v1852
      %1949 = vst [vmem:[%s145 + $0x2c8] sm:$0xff] %v1853
      %1950 = vst [vmem:[%s145 + $0x2d0] sm:$0xff] %v1854
      %1951 = vst [vmem:[%s145 + $0x2d8] sm:$0xff] %v1855
      %1952 = vst [vmem:[%s145 + $0x2e0] sm:$0xff] %v1856
      %1953 = vst [vmem:[%s145 + $0x2e8] sm:$0xff] %v1857
      %1954 = vst [vmem:[%s145 + $0x2f0] sm:$0xff] %v1858
      %1955 = vst [vmem:[%s145 + $0x2f8] sm:$0xff] %v1859
      %s1956 = smul.u32 96, %s13
      %p1957 = scmp.lt.s32.totalorder %s1956, 287
      %s1958 = scalar_select %p1957, %s1956, 287
      %s1959 = smul.addr %s1958, 8
      %s1960 = scalar_lea.vmem %s2, %s1959
      // Predicated region
      $region29: #{_lambda_.4} parent=27 // pred_check
        %p1961 = pneg %p78
      $region30: #{_lambda_.4} parent=27 // pred_check_branch
        %1963 = sbr.rel (%p1961) target = $region32
      $region31: #{_lambda_.4} parent=27 // pred_region
        %s1964 = smul.u32 96, %s13
      $region32: #{_lambda_.4} parent=27 // pred_fallthru
        _
    $region28: #{_lambda_.4} parent=5 // pred_fallthru
      _
    %p1965 = scmp.le.s32.totalorder 2, %s8
    // Predicated region
    $region33: #{_lambda_.4} parent=5 // pred_check
      %p1966 = pneg %p1965
    $region34: #{_lambda_.4} parent=5 // pred_check_branch
      %1968 = sbr.rel (%p1966) target = $region36
    $region35: #{_lambda_.4} parent=5 // pred_region
      %s1969 = ssub.s32 %s8, 2
      // Predicated region
      $region37: #{_lambda_.4} parent=35 // pred_check
        %p1970 = pneg %p84
      $region38: #{_lambda_.4} parent=35 // pred_check_branch
        %1972 = sbr.rel (%p1970) target = $region40
      $region39: #{_lambda_.4} parent=35 // pred_region
        %s1973 = smul.u32 96, %s14
        %p1974 = scmp.lt.s32.totalorder %s1973, 287
        %s1975 = scalar_select %p1974, %s1973, 287
        %s1976 = smul.addr %s1975, 8
        %s1977 = scalar_lea.vmem %s2, %s1976
      $region40: #{_lambda_.4} parent=35 // pred_fallthru
        _
    $region36: #{_lambda_.4} parent=5 // pred_fallthru
      _
  $region6: #{_lambda_.4} parent=0 // loop_footer
    %s12 = sadd.s32 1, %s8
  $region7: #{_lambda_.4} parent=0 // loop_footer_branch
    %7 = sbr.rel target = $region3
  $region8: #{_lambda_.4} parent=0 // loop_exit
    _

// kernel: _lambda_.5
$region0: #{_lambda_.5}
  #allocation0 [shape = 'u32[]', space=smem, size = 0x4, offset = 0x4, fixed_abs, tag = 'smem constant byte address 0x4 - core index']
  #allocation1 [shape = 'u32[144,128]{1,0:T(1,128)}', space=vmem, size = 0x12000, scoped, tag = 'internal scratch']
  %s0 = inlined_call_operand.vmem [shape: f32[576,161], index: 0, kind: input, shape index: {}]
  %s1 = inlined_call_operand.vmem [shape: f32[161,256], index: 1, kind: input, shape index: {}]
  %s2 = inlined_call_operand.vmem [shape: f32[576,128], index: 2, kind: output, shape index: {}]
  %s3 = sld [smem:[#allocation0]]
  $region18: #{_lambda_.5} parent=0
    _
  %s5 = ssub.s32 1, %s3
  %s6 = scalar_select 0, %s5, %s3
  // Predicated region
  $region2: #{_lambda_.5} parent=0 // pred_check
    _
  $region3: #{_lambda_.5} parent=0 // pred_check_branch
    %8 = sbr.rel (0) target = $region5
  $region4: #{_lambda_.5} parent=0 // pred_region
    _
  $region5: #{_lambda_.5} parent=0 // pred_fallthru
    _
  // Predicated region
  $region6: #{_lambda_.5} parent=0 // pred_check
    _
  $region7: #{_lambda_.5} parent=0 // pred_check_branch
    %10 = sbr.rel (0) target = $region9
  $region8: #{_lambda_.5} parent=0 // pred_region
    _
  $region9: #{_lambda_.5} parent=0 // pred_fallthru
    _
  %v11 = vld [vmem:[%s0] sm:$0xff]
  %v12 = vld [vmem:[%s0 + $0x8] sm:$0xff]
  %v13 = vld [vmem:[%s0 + $0x10] sm:$0xff]
  %v14 = vld [vmem:[%s0 + $0x18] sm:$0xff]
  %v15 = vld [vmem:[%s0 + $0x20] sm:$0xff]
  %v16 = vld [vmem:[%s0 + $0x28] sm:$0xff]
  %v17 = vld [vmem:[%s0 + $0x30] sm:$0xff]
  %v18 = vld [vmem:[%s0 + $0x38] sm:$0xff]
  %v19 = vld [vmem:[%s0 + $0x40] sm:$0xff]
  %v20 = vld [vmem:[%s0 + $0x48] sm:$0xff]
  %v21 = vld [vmem:[%s0 + $0x50] sm:$0xff]
  %v22 = vld [vmem:[%s0 + $0x58] sm:$0xff]
  %v23 = vld [vmem:[%s0 + $0x60] sm:$0xff]
  %v24 = vld [vmem:[%s0 + $0x68] sm:$0xff]
  %v25 = vld [vmem:[%s0 + $0x70] sm:$0xff]
  %v26 = vld [vmem:[%s0 + $0x78] sm:$0xff]
  %v27 = vld [vmem:[%s0 + $0x80] sm:$0xff]
  %v28 = vld [vmem:[%s0 + $0x88] sm:$0xff]
  %v29 = vld [vmem:[%s0 + $0x90] sm:$0xff]
  %v30 = vld [vmem:[%s0 + $0x98] sm:$0xff]
  %v31 = vld [vmem:[%s0 + $0xa0] sm:$0xff]
  %v32 = vld [vmem:[%s0 + $0xa8] sm:$0xff]
  %v33 = vld [vmem:[%s0 + $0xb0] sm:$0xff]
  %v34 = vld [vmem:[%s0 + $0xb8] sm:$0xff]
  %v35 = vld [vmem:[%s0 + $0xc0] sm:$0xff]
  %v36 = vld [vmem:[%s0 + $0xc8] sm:$0xff]
  %v37 = vld [vmem:[%s0 + $0xd0] sm:$0xff]
  %v38 = vld [vmem:[%s0 + $0xd8] sm:$0xff]
  %v39 = vld [vmem:[%s0 + $0xe0] sm:$0xff]
  %v40 = vld [vmem:[%s0 + $0xe8] sm:$0xff]
  %v41 = vld [vmem:[%s0 + $0xf0] sm:$0xff]
  %v42 = vld [vmem:[%s0 + $0xf8] sm:$0xff]
  %v43 = vld [vmem:[%s0 + $0x100] sm:$0xff]
  %v44 = vld [vmem:[%s0 + $0x108] sm:$0xff]
  %v45 = vld [vmem:[%s0 + $0x110] sm:$0xff]
  %v46 = vld [vmem:[%s0 + $0x118] sm:$0xff]
  %v47 = vld [vmem:[%s0 + $0x120] sm:$0xff]
  %v48 = vld [vmem:[%s0 + $0x128] sm:$0xff]
  %v49 = vld [vmem:[%s0 + $0x130] sm:$0xff]
  %v50 = vld [vmem:[%s0 + $0x138] sm:$0xff]
  %v51 = vld [vmem:[%s0 + $0x140] sm:$0xff]
  %v52 = vld [vmem:[%s0 + $0x148] sm:$0xff]
  %v53 = vld [vmem:[%s0 + $0x150] sm:$0xff]
  %v54 = vld [vmem:[%s0 + $0x158] sm:$0xff]
  %v55 = vld [vmem:[%s0 + $0x160] sm:$0xff]
  %v56 = vld [vmem:[%s0 + $0x168] sm:$0xff]
  %v57 = vld [vmem:[%s0 + $0x170] sm:$0xff]
  %v58 = vld [vmem:[%s0 + $0x178] sm:$0xff]
  %v59 = vld [vmem:[%s0 + $0x180] sm:$0xff]
  %v60 = vld [vmem:[%s0 + $0x188] sm:$0xff]
  %v61 = vld [vmem:[%s0 + $0x190] sm:$0xff]
  %v62 = vld [vmem:[%s0 + $0x198] sm:$0xff]
  %v63 = vld [vmem:[%s0 + $0x1a0] sm:$0xff]
  %v64 = vld [vmem:[%s0 + $0x1a8] sm:$0xff]
  %v65 = vld [vmem:[%s0 + $0x1b0] sm:$0xff]
  %v66 = vld [vmem:[%s0 + $0x1b8] sm:$0xff]
  %v67 = vld [vmem:[%s0 + $0x1c0] sm:$0xff]
  %v68 = vld [vmem:[%s0 + $0x1c8] sm:$0xff]
  %v69 = vld [vmem:[%s0 + $0x1d0] sm:$0xff]
  %v70 = vld [vmem:[%s0 + $0x1d8] sm:$0xff]
  %v71 = vld [vmem:[%s0 + $0x1e0] sm:$0xff]
  %v72 = vld [vmem:[%s0 + $0x1e8] sm:$0xff]
  %v73 = vld [vmem:[%s0 + $0x1f0] sm:$0xff]
  %v74 = vld [vmem:[%s0 + $0x1f8] sm:$0xff]
  %v75 = vld [vmem:[%s0 + $0x200] sm:$0xff]
  %v76 = vld [vmem:[%s0 + $0x208] sm:$0xff]
  %v77 = vld [vmem:[%s0 + $0x210] sm:$0xff]
  %v78 = vld [vmem:[%s0 + $0x218] sm:$0xff]
  %v79 = vld [vmem:[%s0 + $0x220] sm:$0xff]
  %v80 = vld [vmem:[%s0 + $0x228] sm:$0xff]
  %v81 = vld [vmem:[%s0 + $0x230] sm:$0xff]
  %v82 = vld [vmem:[%s0 + $0x238] sm:$0xff]
  %v83 = vld [vmem:[%s0 + $0x240] sm:$0xff]
  %v84 = vld [vmem:[%s0 + $0x248] sm:$0xff]
  %v85 = vld [vmem:[%s0 + $0x250] sm:$0xff]
  %v86 = vld [vmem:[%s0 + $0x258] sm:$0xff]
  %v87 = vld [vmem:[%s0 + $0x260] sm:$0xff]
  %v88 = vld [vmem:[%s0 + $0x268] sm:$0xff]
  %v89 = vld [vmem:[%s0 + $0x270] sm:$0xff]
  %v90 = vld [vmem:[%s0 + $0x278] sm:$0xff]
  %v91 = vld [vmem:[%s0 + $0x280] sm:$0xff]
  %v92 = vld [vmem:[%s0 + $0x288] sm:$0xff]
  %v93 = vld [vmem:[%s0 + $0x290] sm:$0xff]
  %v94 = vld [vmem:[%s0 + $0x298] sm:$0xff]
  %v95 = vld [vmem:[%s0 + $0x2a0] sm:$0xff]
  %v96 = vld [vmem:[%s0 + $0x2a8] sm:$0xff]
  %v97 = vld [vmem:[%s0 + $0x2b0] sm:$0xff]
  %v98 = vld [vmem:[%s0 + $0x2b8] sm:$0xff]
  %v99 = vld [vmem:[%s0 + $0x2c0] sm:$0xff]
  %v100 = vld [vmem:[%s0 + $0x2c8] sm:$0xff]
  %v101 = vld [vmem:[%s0 + $0x2d0] sm:$0xff]
  %v102 = vld [vmem:[%s0 + $0x2d8] sm:$0xff]
  %v103 = vld [vmem:[%s0 + $0x2e0] sm:$0xff]
  %v104 = vld [vmem:[%s0 + $0x2e8] sm:$0xff]
  %v105 = vld [vmem:[%s0 + $0x2f0] sm:$0xff]
  %v106 = vld [vmem:[%s0 + $0x2f8] sm:$0xff]
  %v107 = vld [vmem:[%s0 + $0x300] sm:$0xff]
  %v108 = vld [vmem:[%s0 + $0x308] sm:$0xff]
  %v109 = vld [vmem:[%s0 + $0x310] sm:$0xff]
  %v110 = vld [vmem:[%s0 + $0x318] sm:$0xff]
  %v111 = vld [vmem:[%s0 + $0x320] sm:$0xff]
  %v112 = vld [vmem:[%s0 + $0x328] sm:$0xff]
  %v113 = vld [vmem:[%s0 + $0x330] sm:$0xff]
  %v114 = vld [vmem:[%s0 + $0x338] sm:$0xff]
  %v115 = vld [vmem:[%s0 + $0x340] sm:$0xff]
  %v116 = vld [vmem:[%s0 + $0x348] sm:$0xff]
  %v117 = vld [vmem:[%s0 + $0x350] sm:$0xff]
  %v118 = vld [vmem:[%s0 + $0x358] sm:$0xff]
  %v119 = vld [vmem:[%s0 + $0x360] sm:$0xff]
  %v120 = vld [vmem:[%s0 + $0x368] sm:$0xff]
  %v121 = vld [vmem:[%s0 + $0x370] sm:$0xff]
  %v122 = vld [vmem:[%s0 + $0x378] sm:$0xff]
  %v123 = vld [vmem:[%s0 + $0x380] sm:$0xff]
  %v124 = vld [vmem:[%s0 + $0x388] sm:$0xff]
  %v125 = vld [vmem:[%s0 + $0x390] sm:$0xff]
  %v126 = vld [vmem:[%s0 + $0x398] sm:$0xff]
  %v127 = vld [vmem:[%s0 + $0x3a0] sm:$0xff]
  %v128 = vld [vmem:[%s0 + $0x3a8] sm:$0xff]
  %v129 = vld [vmem:[%s0 + $0x3b0] sm:$0xff]
  %v130 = vld [vmem:[%s0 + $0x3b8] sm:$0xff]
  %v131 = vld [vmem:[%s0 + $0x3c0] sm:$0xff]
  %v132 = vld [vmem:[%s0 + $0x3c8] sm:$0xff]
  %v133 = vld [vmem:[%s0 + $0x3d0] sm:$0xff]
  %v134 = vld [vmem:[%s0 + $0x3d8] sm:$0xff]
  %v135 = vld [vmem:[%s0 + $0x3e0] sm:$0xff]
  %v136 = vld [vmem:[%s0 + $0x3e8] sm:$0xff]
  %v137 = vld [vmem:[%s0 + $0x3f0] sm:$0xff]
  %v138 = vld [vmem:[%s0 + $0x3f8] sm:$0xff]
  %v139 = vld [vmem:[%s0 + $0x400] sm:$0xff]
  %v140 = vld [vmem:[%s0 + $0x408] sm:$0xff]
  %v141 = vld [vmem:[%s0 + $0x410] sm:$0xff]
  %v142 = vld [vmem:[%s0 + $0x418] sm:$0xff]
  %v143 = vld [vmem:[%s0 + $0x420] sm:$0xff]
  %v144 = vld [vmem:[%s0 + $0x428] sm:$0xff]
  %v145 = vld [vmem:[%s0 + $0x430] sm:$0xff]
  %v146 = vld [vmem:[%s0 + $0x438] sm:$0xff]
  %v147 = vld [vmem:[%s0 + $0x440] sm:$0xff]
  %v148 = vld [vmem:[%s0 + $0x448] sm:$0xff]
  %v149 = vld [vmem:[%s0 + $0x450] sm:$0xff]
  %v150 = vld [vmem:[%s0 + $0x458] sm:$0xff]
  %v151 = vld [vmem:[%s0 + $0x460] sm:$0xff]
  %v152 = vld [vmem:[%s0 + $0x468] sm:$0xff]
  %v153 = vld [vmem:[%s0 + $0x470] sm:$0xff]
  %v154 = vld [vmem:[%s0 + $0x478] sm:$0xff]
  %v155 = vld [vmem:[%s1] sm:$0xff]
  %v156 = vld [vmem:[%s1 + $0x8] sm:$0xff]
  %v157 = vld [vmem:[%s1 + $0x10] sm:$0xff]
  %v158 = vld [vmem:[%s1 + $0x18] sm:$0xff]
  %v159 = vld [vmem:[%s1 + $0x20] sm:$0xff]
  %v160 = vld [vmem:[%s1 + $0x28] sm:$0xff]
  %v161 = vld [vmem:[%s1 + $0x30] sm:$0xff]
  %v162 = vld [vmem:[%s1 + $0x38] sm:$0xff]
  %v163 = vld [vmem:[%s1 + $0x40] sm:$0xff]
  %v164 = vld [vmem:[%s1 + $0x48] sm:$0xff]
  %v165 = vld [vmem:[%s1 + $0x50] sm:$0xff]
  %v166 = vld [vmem:[%s1 + $0x58] sm:$0xff]
  %v167 = vld [vmem:[%s1 + $0x60] sm:$0xff]
  %v168 = vld [vmem:[%s1 + $0x68] sm:$0xff]
  %v169 = vld [vmem:[%s1 + $0x70] sm:$0xff]
  %v170 = vld [vmem:[%s1 + $0x78] sm:$0xff]
  %v171 = vld [vmem:[%s1 + $0x80] sm:$0xff]
  %v172 = vld [vmem:[%s1 + $0x88] sm:$0xff]
  %v173 = vld [vmem:[%s1 + $0x90] sm:$0xff]
  %v174 = vld [vmem:[%s1 + $0x98] sm:$0xff]
  %v175 = vld [vmem:[%s1 + $0xa0] sm:$0xff]
  %v176 = vld [vmem:[%s1 + $0xa8] sm:$0xff]
  %v177 = vld [vmem:[%s1 + $0xb0] sm:$0xff]
  %v178 = vld [vmem:[%s1 + $0xb8] sm:$0xff]
  %v179 = vld [vmem:[%s1 + $0xc0] sm:$0xff]
  %v180 = vld [vmem:[%s1 + $0xc8] sm:$0xff]
  %v181 = vld [vmem:[%s1 + $0xd0] sm:$0xff]
  %v182 = vld [vmem:[%s1 + $0xd8] sm:$0xff]
  %v183 = vld [vmem:[%s1 + $0xe0] sm:$0xff]
  %v184 = vld [vmem:[%s1 + $0xe8] sm:$0xff]
  %v185 = vld [vmem:[%s1 + $0xf0] sm:$0xff]
  %v186 = vld [vmem:[%s1 + $0xf8] sm:$0xff]
  %v187 = vld [vmem:[%s1 + $0x100] sm:$0xff]
  %v188 = vld [vmem:[%s1 + $0x108] sm:$0xff]
  %v189 = vld [vmem:[%s1 + $0x110] sm:$0xff]
  %v190 = vld [vmem:[%s1 + $0x118] sm:$0xff]
  %v191 = vld [vmem:[%s1 + $0x120] sm:$0xff]
  %v192 = vld [vmem:[%s1 + $0x128] sm:$0xff]
  %v193 = vld [vmem:[%s1 + $0x130] sm:$0xff]
  %v194 = vld [vmem:[%s1 + $0x138] sm:$0xff]
  %v195 = vld [vmem:[%s1 + $0x140] sm:$0x1]
  %v196 = vld [vmem:[%s1 + $0x148] sm:$0x1]
  %vm197 = vcmask 269312
  %v199 = vsel %vm197, %v12, 0
  %v202 = vsel %vm197, %v14, 0
  %v205 = vsel %vm197, %v16, 0
  %v208 = vsel %vm197, %v18, 0
  %v211 = vsel %vm197, %v20, 0
  %v214 = vsel %vm197, %v22, 0
  %v217 = vsel %vm197, %v24, 0
  %v220 = vsel %vm197, %v26, 0
  %v223 = vsel %vm197, %v28, 0
  %v226 = vsel %vm197, %v30, 0
  %v229 = vsel %vm197, %v32, 0
  %v232 = vsel %vm197, %v34, 0
  %v235 = vsel %vm197, %v36, 0
  %v238 = vsel %vm197, %v38, 0
  %v241 = vsel %vm197, %v40, 0
  %v244 = vsel %vm197, %v42, 0
  %v247 = vsel %vm197, %v44, 0
  %v250 = vsel %vm197, %v46, 0
  %v253 = vsel %vm197, %v48, 0
  %v256 = vsel %vm197, %v50, 0
  %v259 = vsel %vm197, %v52, 0
  %v262 = vsel %vm197, %v54, 0
  %v265 = vsel %vm197, %v56, 0
  %v268 = vsel %vm197, %v58, 0
  %v271 = vsel %vm197, %v60, 0
  %v274 = vsel %vm197, %v62, 0
  %v277 = vsel %vm197, %v64, 0
  %v280 = vsel %vm197, %v66, 0
  %v283 = vsel %vm197, %v68, 0
  %v286 = vsel %vm197, %v70, 0
  %v289 = vsel %vm197, %v72, 0
  %v292 = vsel %vm197, %v74, 0
  %v295 = vsel %vm197, %v76, 0
  %v298 = vsel %vm197, %v78, 0
  %v301 = vsel %vm197, %v80, 0
  %v304 = vsel %vm197, %v82, 0
  %v307 = vsel %vm197, %v84, 0
  %v310 = vsel %vm197, %v86, 0
  %v313 = vsel %vm197, %v88, 0
  %v316 = vsel %vm197, %v90, 0
  %v319 = vsel %vm197, %v92, 0
  %v322 = vsel %vm197, %v94, 0
  %v325 = vsel %vm197, %v96, 0
  %v328 = vsel %vm197, %v98, 0
  %v331 = vsel %vm197, %v100, 0
  %v334 = vsel %vm197, %v102, 0
  %v337 = vsel %vm197, %v104, 0
  %v340 = vsel %vm197, %v106, 0
  %v343 = vsel %vm197, %v108, 0
  %v346 = vsel %vm197, %v110, 0
  %v349 = vsel %vm197, %v112, 0
  %v352 = vsel %vm197, %v114, 0
  %v355 = vsel %vm197, %v116, 0
  %v358 = vsel %vm197, %v118, 0
  %v361 = vsel %vm197, %v120, 0
  %v364 = vsel %vm197, %v122, 0
  %v367 = vsel %vm197, %v124, 0
  %v370 = vsel %vm197, %v126, 0
  %v373 = vsel %vm197, %v128, 0
  %v376 = vsel %vm197, %v130, 0
  %v379 = vsel %vm197, %v132, 0
  %v382 = vsel %vm197, %v134, 0
  %v385 = vsel %vm197, %v136, 0
  %v388 = vsel %vm197, %v138, 0
  %v391 = vsel %vm197, %v140, 0
  %v394 = vsel %vm197, %v142, 0
  %v397 = vsel %vm197, %v144, 0
  %v400 = vsel %vm197, %v146, 0
  %v403 = vsel %vm197, %v148, 0
  %v406 = vsel %vm197, %v150, 0
  %v409 = vsel %vm197, %v152, 0
  %v412 = vsel %vm197, %v154, 0
  %vm414 = vcmask 1040384
  %v416 = vsel %vm414, %v195, 0
  %v419 = vsel %vm414, %v196, 0
  %421 = vmatprep.subr.mxu0 %v156
  %422 = vmatpush1.msra.mxu0 %v155
  %423 = vmatprep.subr.mxu0 %v158
  %424 = vmatpush1.msra.mxu0 %v157
  %425 = vmatprep.subr.mxu0 %v160
  %426 = vmatpush1.msra.mxu0 %v159
  %427 = vmatprep.subr.mxu0 %v162
  %428 = vmatpush1.msra.mxu0 %v161
  %429 = vmatprep.subr.mxu0 %v164
  %430 = vmatpush1.msra.mxu0 %v163
  %431 = vmatprep.subr.mxu0 %v166
  %432 = vmatpush1.msra.mxu0 %v165
  %433 = vmatprep.subr.mxu0 %v168
  %434 = vmatpush1.msra.mxu0 %v167
  %435 = vmatprep.subr.mxu0 %v170
  %436 = vmatpush1.msra.mxu0 %v169
  %437 = vmatprep.subr.mxu0 %v172
  %438 = vmatpush1.msra.mxu0 %v171
  %439 = vmatprep.subr.mxu0 %v174
  %440 = vmatpush1.msra.mxu0 %v173
  %441 = vmatprep.subr.mxu0 %v176
  %442 = vmatpush1.msra.mxu0 %v175
  %443 = vmatprep.subr.mxu0 %v178
  %444 = vmatpush1.msra.mxu0 %v177
  %445 = vmatprep.subr.mxu0 %v180
  %446 = vmatpush1.msra.mxu0 %v179
  %447 = vmatprep.subr.mxu0 %v182
  %448 = vmatpush1.msra.mxu0 %v181
  %449 = vmatprep.subr.mxu0 %v184
  %450 = vmatpush1.msra.mxu0 %v183
  %451 = vmatprep.subr.mxu0 %v186
  %452 = vmatpush1.msra.mxu0 %v185
  %453 = vmatprep.subr.mxu0 %v188
  %454 = vmatpush1.msra.mxu0 %v187
  %455 = vmatprep.subr.mxu0 %v190
  %456 = vmatpush1.msra.mxu0 %v189
  %457 = vmatprep.subr.mxu0 %v192
  %458 = vmatpush1.msra.mxu0 %v191
  %459 = vmatprep.subr.mxu0 %v194
  %460 = vmatpush1.msra.mxu0 %v193
  %461 = vmatprep.subr.mxu0 %v419
  %462 = vmatpush1.msra.mxu0 %v416
  %463 = vmatprep.subr.mxu0 0.0
  %464 = vmatpush1.msra.mxu0 0.0
  %465 = vmatprep.subr.mxu0 0.0
  %466 = vmatpush1.msra.mxu0 0.0
  %467 = vmatprep.subr.mxu0 0.0
  %468 = vmatpush1.msra.mxu0 0.0
  %469 = vmatprep.subr.mxu0 0.0
  %470 = vmatpush1.msra.mxu0 0.0
  %471 = vmatprep.subr.mxu0 0.0
  %472 = vmatpush1.msra.mxu0 0.0
  %473 = vmatprep.subr.mxu0 0.0
  %474 = vmatpush1.msra.mxu0 0.0
  %475 = vmatprep.subr.mxu0 0.0
  %476 = vmatpush1.msra.mxu0 0.0
  %477 = vmatprep.subr.mxu0 0.0
  %478 = vmatpush1.msra.mxu0 0.0
  %479 = vmatprep.subr.mxu0 0.0
  %480 = vmatpush1.msra.mxu0 0.0
  %481 = vmatprep.subr.mxu0 0.0
  %482 = vmatpush1.msra.mxu0 0.0
  %483 = vmatprep.subr.mxu0 0.0
  %484 = vmatpush1.msra.mxu0 0.0
  %485 = vmatprep.mubr.f32.mxu0 %v199
  %486 = vmatmul.mubr.f32.gmra.mrb[0].mxu0 %v11
  %v487 = vpop.f32.mrb[0].mxu0
  %v488 = vadd.f32 0.0, %v487
  %v489 = vpop.f32.mrb[0].mxu0
  %v490 = vadd.f32 0.0, %v489
  %491 = vmatprep.mubr.f32.mxu0 %v202
  %492 = vmatmul.mubr.f32.gmra.mrb[0].mxu0 %v13
  %v493 = vpop.f32.mrb[0].mxu0
  %v494 = vadd.f32 0.0, %v493
  %v495 = vpop.f32.mrb[0].mxu0
  %v496 = vadd.f32 0.0, %v495
  %497 = vmatprep.mubr.f32.mxu0 %v205
  %498 = vmatmul.mubr.f32.gmra.mrb[0].mxu0 %v15
  %v499 = vpop.f32.mrb[0].mxu0
  %v500 = vadd.f32 0.0, %v499
  %v501 = vpop.f32.mrb[0].mxu0
  %v502 = vadd.f32 0.0, %v501
  %503 = vmatprep.mubr.f32.mxu0 %v208
  %504 = vmatmul.mubr.f32.gmra.mrb[0].mxu0 %v17
  %v505 = vpop.f32.mrb[0].mxu0
  %v506 = vadd.f32 0.0, %v505
  %v507 = vpop.f32.mrb[0].mxu0
  %v508 = vadd.f32 0.0, %v507
  %509 = vmatprep.mubr.f32.mxu0 %v211
  %510 = vmatmul.mubr.f32.gmra.mrb[0].mxu0 %v19
  %v511 = vpop.f32.mrb[0].mxu0
  %v512 = vadd.f32 0.0, %v511
  %v513 = vpop.f32.mrb[0].mxu0
  %v514 = vadd.f32 0.0, %v513
  %515 = vmatprep.mubr.f32.mxu0 %v214
  %516 = vmatmul.mubr.f32.gmra.mrb[0].mxu0 %v21
  %v517 = vpop.f32.mrb[0].mxu0
  %v518 = vadd.f32 0.0, %v517
  %v519 = vpop.f32.mrb[0].mxu0
  %v520 = vadd.f32 0.0, %v519
  %521 = vmatprep.mubr.f32.mxu0 %v217
  %522 = vmatmul.mubr.f32.gmra.mrb[0].mxu0 %v23
  %v523 = vpop.f32.mrb[0].mxu0
  %v524 = vadd.f32 0.0, %v523
  %v525 = vpop.f32.mrb[0].mxu0
  %v526 = vadd.f32 0.0, %v525
  %527 = vmatprep.mubr.f32.mxu0 %v220
  %528 = vmatmul.mubr.f32.gmra.mrb[0].mxu0 %v25
  %v529 = vpop.f32.mrb[0].mxu0
  %v530 = vadd.f32 0.0, %v529
  %v531 = vpop.f32.mrb[0].mxu0
  %v532 = vadd.f32 0.0, %v531
  %533 = vmatprep.mubr.f32.mxu0 %v223
  %534 = vmatmul.mubr.f32.gmra.mrb[0].mxu0 %v27
  %v535 = vpop.f32.mrb[0].mxu0
  %v536 = vadd.f32 0.0, %v535
  %v537 = vpop.f32.mrb[0].mxu0
  %v538 = vadd.f32 0.0, %v537
  %539 = vmatprep.mubr.f32.mxu0 %v226
  %540 = vmatmul.mubr.f32.gmra.mrb[0].mxu0 %v29
  %v541 = vpop.f32.mrb[0].mxu0
  %v542 = vadd.f32 0.0, %v541
  %v543 = vpop.f32.mrb[0].mxu0
  %v544 = vadd.f32 0.0, %v543
  %545 = vmatprep.mubr.f32.mxu0 %v229
  %546 = vmatmul.mubr.f32.gmra.mrb[0].mxu0 %v31
  %v547 = vpop.f32.mrb[0].mxu0
  %v548 = vadd.f32 0.0, %v547
  %v549 = vpop.f32.mrb[0].mxu0
  %v550 = vadd.f32 0.0, %v549
  %551 = vmatprep.mubr.f32.mxu0 %v232
  %552 = vmatmul.mubr.f32.gmra.mrb[0].mxu0 %v33
  %v553 = vpop.f32.mrb[0].mxu0
  %v554 = vadd.f32 0.0, %v553
  %v555 = vpop.f32.mrb[0].mxu0
  %v556 = vadd.f32 0.0, %v555
  %557 = vmatprep.mubr.f32.mxu0 %v235
  %558 = vmatmul.mubr.f32.gmra.mrb[0].mxu0 %v35
  %v559 = vpop.f32.mrb[0].mxu0
  %v560 = vadd.f32 0.0, %v559
  %v561 = vpop.f32.mrb[0].mxu0
  %v562 = vadd.f32 0.0, %v561
  %563 = vmatprep.mubr.f32.mxu0 %v238
  %564 = vmatmul.mubr.f32.gmra.mrb[0].mxu0 %v37
  %v565 = vpop.f32.mrb[0].mxu0
  %v566 = vadd.f32 0.0, %v565
  %v567 = vpop.f32.mrb[0].mxu0
  %v568 = vadd.f32 0.0, %v567
  %569 = vmatprep.mubr.f32.mxu0 %v241
  %570 = vmatmul.mubr.f32.gmra.mrb[0].mxu0 %v39
  %v571 = vpop.f32.mrb[0].mxu0
  %v572 = vadd.f32 0.0, %v571
  %v573 = vpop.f32.mrb[0].mxu0
  %v574 = vadd.f32 0.0, %v573
  %575 = vmatprep.mubr.f32.mxu0 %v244
  %576 = vmatmul.mubr.f32.gmra.mrb[0].mxu0 %v41
  %v577 = vpop.f32.mrb[0].mxu0
  %v578 = vadd.f32 0.0, %v577
  %v579 = vpop.f32.mrb[0].mxu0
  %v580 = vadd.f32 0.0, %v579
  %581 = vmatprep.mubr.f32.mxu0 %v247
  %582 = vmatmul.mubr.f32.gmra.mrb[0].mxu0 %v43
  %v583 = vpop.f32.mrb[0].mxu0
  %v584 = vadd.f32 0.0, %v583
  %v585 = vpop.f32.mrb[0].mxu0
  %v586 = vadd.f32 0.0, %v585
  %587 = vmatprep.mubr.f32.mxu0 %v250
  %588 = vmatmul.mubr.f32.gmra.mrb[0].mxu0 %v45
  %v589 = vpop.f32.mrb[0].mxu0
  %v590 = vadd.f32 0.0, %v589
  %v591 = vpop.f32.mrb[0].mxu0
  %v592 = vadd.f32 0.0, %v591
  %593 = vmatprep.mubr.f32.mxu0 %v253
  %594 = vmatmul.mubr.f32.gmra.mrb[0].mxu0 %v47
  %v595 = vpop.f32.mrb[0].mxu0
  %v596 = vadd.f32 0.0, %v595
  %v597 = vpop.f32.mrb[0].mxu0
  %v598 = vadd.f32 0.0, %v597
  %599 = vmatprep.mubr.f32.mxu0 %v256
  %600 = vmatmul.mubr.f32.gmra.mrb[0].mxu0 %v49
  %v601 = vpop.f32.mrb[0].mxu0
  %v602 = vadd.f32 0.0, %v601
  %v603 = vpop.f32.mrb[0].mxu0
  %v604 = vadd.f32 0.0, %v603
  %605 = vmatprep.mubr.f32.mxu0 %v259
  %606 = vmatmul.mubr.f32.gmra.mrb[0].mxu0 %v51
  %v607 = vpop.f32.mrb[0].mxu0
  %v608 = vadd.f32 0.0, %v607
  %v609 = vpop.f32.mrb[0].mxu0
  %v610 = vadd.f32 0.0, %v609
  %611 = vmatprep.mubr.f32.mxu0 %v262
  %612 = vmatmul.mubr.f32.gmra.mrb[0].mxu0 %v53
  %v613 = vpop.f32.mrb[0].mxu0
  %v614 = vadd.f32 0.0, %v613
  %v615 = vpop.f32.mrb[0].mxu0
  %v616 = vadd.f32 0.0, %v615
  %617 = vmatprep.mubr.f32.mxu0 %v265
  %618 = vmatmul.mubr.f32.gmra.mrb[0].mxu0 %v55
  %v619 = vpop.f32.mrb[0].mxu0
  %v620 = vadd.f32 0.0, %v619
  %v621 = vpop.f32.mrb[0].mxu0
  %v622 = vadd.f32 0.0, %v621
  %623 = vmatprep.mubr.f32.mxu0 %v268
  %624 = vmatmul.mubr.f32.gmra.mrb[0].mxu0 %v57
  %v625 = vpop.f32.mrb[0].mxu0
  %v626 = vadd.f32 0.0, %v625
  %v627 = vpop.f32.mrb[0].mxu0
  %v628 = vadd.f32 0.0, %v627
  %629 = vmatprep.mubr.f32.mxu0 %v271
  %630 = vmatmul.mubr.f32.gmra.mrb[0].mxu0 %v59
  %v631 = vpop.f32.mrb[0].mxu0
  %v632 = vadd.f32 0.0, %v631
  %v633 = vpop.f32.mrb[0].mxu0
  %v634 = vadd.f32 0.0, %v633
  %635 = vmatprep.mubr.f32.mxu0 %v274
  %636 = vmatmul.mubr.f32.gmra.mrb[0].mxu0 %v61
  %v637 = vpop.f32.mrb[0].mxu0
  %v638 = vadd.f32 0.0, %v637
  %v639 = vpop.f32.mrb[0].mxu0
  %v640 = vadd.f32 0.0, %v639
  %641 = vmatprep.mubr.f32.mxu0 %v277
  %642 = vmatmul.mubr.f32.gmra.mrb[0].mxu0 %v63
  %v643 = vpop.f32.mrb[0].mxu0
  %v644 = vadd.f32 0.0, %v643
  %v645 = vpop.f32.mrb[0].mxu0
  %v646 = vadd.f32 0.0, %v645
  %647 = vmatprep.mubr.f32.mxu0 %v280
  %648 = vmatmul.mubr.f32.gmra.mrb[0].mxu0 %v65
  %v649 = vpop.f32.mrb[0].mxu0
  %v650 = vadd.f32 0.0, %v649
  %v651 = vpop.f32.mrb[0].mxu0
  %v652 = vadd.f32 0.0, %v651
  %653 = vmatprep.mubr.f32.mxu0 %v283
  %654 = vmatmul.mubr.f32.gmra.mrb[0].mxu0 %v67
  %v655 = vpop.f32.mrb[0].mxu0
  %v656 = vadd.f32 0.0, %v655
  %v657 = vpop.f32.mrb[0].mxu0
  %v658 = vadd.f32 0.0, %v657
  %659 = vmatprep.mubr.f32.mxu0 %v286
  %660 = vmatmul.mubr.f32.gmra.mrb[0].mxu0 %v69
  %v661 = vpop.f32.mrb[0].mxu0
  %v662 = vadd.f32 0.0, %v661
  %v663 = vpop.f32.mrb[0].mxu0
  %v664 = vadd.f32 0.0, %v663
  %665 = vmatprep.mubr.f32.mxu0 %v289
  %666 = vmatmul.mubr.f32.gmra.mrb[0].mxu0 %v71
  %v667 = vpop.f32.mrb[0].mxu0
  %v668 = vadd.f32 0.0, %v667
  %v669 = vpop.f32.mrb[0].mxu0
  %v670 = vadd.f32 0.0, %v669
  %671 = vmatprep.mubr.f32.mxu0 %v292
  %672 = vmatmul.mubr.f32.gmra.mrb[0].mxu0 %v73
  %v673 = vpop.f32.mrb[0].mxu0
  %v674 = vadd.f32 0.0, %v673
  %v675 = vpop.f32.mrb[0].mxu0
  %v676 = vadd.f32 0.0, %v675
  %677 = vmatprep.mubr.f32.mxu0 %v295
  %678 = vmatmul.mubr.f32.gmra.mrb[0].mxu0 %v75
  %v679 = vpop.f32.mrb[0].mxu0
  %v680 = vadd.f32 0.0, %v679
  %v681 = vpop.f32.mrb[0].mxu0
  %v682 = vadd.f32 0.0, %v681
  %683 = vmatprep.mubr.f32.mxu0 %v298
  %684 = vmatmul.mubr.f32.gmra.mrb[0].mxu0 %v77
  %v685 = vpop.f32.mrb[0].mxu0
  %v686 = vadd.f32 0.0, %v685
  %v687 = vpop.f32.mrb[0].mxu0
  %v688 = vadd.f32 0.0, %v687
  %689 = vmatprep.mubr.f32.mxu0 %v301
  %690 = vmatmul.mubr.f32.gmra.mrb[0].mxu0 %v79
  %v691 = vpop.f32.mrb[0].mxu0
  %v692 = vadd.f32 0.0, %v691
  %v693 = vpop.f32.mrb[0].mxu0
  %v694 = vadd.f32 0.0, %v693
  %695 = vmatprep.mubr.f32.mxu0 %v304
  %696 = vmatmul.mubr.f32.gmra.mrb[0].mxu0 %v81
  %v697 = vpop.f32.mrb[0].mxu0
  %v698 = vadd.f32 0.0, %v697
  %v699 = vpop.f32.mrb[0].mxu0
  %v700 = vadd.f32 0.0, %v699
  %701 = vmatprep.mubr.f32.mxu0 %v307
  %702 = vmatmul.mubr.f32.gmra.mrb[0].mxu0 %v83
  %v703 = vpop.f32.mrb[0].mxu0
  %v704 = vadd.f32 0.0, %v703
  %v705 = vpop.f32.mrb[0].mxu0
  %v706 = vadd.f32 0.0, %v705
  %707 = vmatprep.mubr.f32.mxu0 %v310
  %708 = vmatmul.mubr.f32.gmra.mrb[0].mxu0 %v85
  %v709 = vpop.f32.mrb[0].mxu0
  %v710 = vadd.f32 0.0, %v709
  %v711 = vpop.f32.mrb[0].mxu0
  %v712 = vadd.f32 0.0, %v711
  %713 = vmatprep.mubr.f32.mxu0 %v313
  %714 = vmatmul.mubr.f32.gmra.mrb[0].mxu0 %v87
  %v715 = vpop.f32.mrb[0].mxu0
  %v716 = vadd.f32 0.0, %v715
  %v717 = vpop.f32.mrb[0].mxu0
  %v718 = vadd.f32 0.0, %v717
  %719 = vmatprep.mubr.f32.mxu0 %v316
  %720 = vmatmul.mubr.f32.gmra.mrb[0].mxu0 %v89
  %v721 = vpop.f32.mrb[0].mxu0
  %v722 = vadd.f32 0.0, %v721
  %v723 = vpop.f32.mrb[0].mxu0
  %v724 = vadd.f32 0.0, %v723
  %725 = vmatprep.mubr.f32.mxu0 %v319
  %726 = vmatmul.mubr.f32.gmra.mrb[0].mxu0 %v91
  %v727 = vpop.f32.mrb[0].mxu0
  %v728 = vadd.f32 0.0, %v727
  %v729 = vpop.f32.mrb[0].mxu0
  %v730 = vadd.f32 0.0, %v729
  %731 = vmatprep.mubr.f32.mxu0 %v322
  %732 = vmatmul.mubr.f32.gmra.mrb[0].mxu0 %v93
  %v733 = vpop.f32.mrb[0].mxu0
  %v734 = vadd.f32 0.0, %v733
  %v735 = vpop.f32.mrb[0].mxu0
  %v736 = vadd.f32 0.0, %v735
  %737 = vmatprep.mubr.f32.mxu0 %v325
  %738 = vmatmul.mubr.f32.gmra.mrb[0].mxu0 %v95
  %v739 = vpop.f32.mrb[0].mxu0
  %v740 = vadd.f32 0.0, %v739
  %v741 = vpop.f32.mrb[0].mxu0
  %v742 = vadd.f32 0.0, %v741
  %743 = vmatprep.mubr.f32.mxu0 %v328
  %744 = vmatmul.mubr.f32.gmra.mrb[0].mxu0 %v97
  %v745 = vpop.f32.mrb[0].mxu0
  %v746 = vadd.f32 0.0, %v745
  %v747 = vpop.f32.mrb[0].mxu0
  %v748 = vadd.f32 0.0, %v747
  %749 = vmatprep.mubr.f32.mxu0 %v331
  %750 = vmatmul.mubr.f32.gmra.mrb[0].mxu0 %v99
  %v751 = vpop.f32.mrb[0].mxu0
  %v752 = vadd.f32 0.0, %v751
  %v753 = vpop.f32.mrb[0].mxu0
  %v754 = vadd.f32 0.0, %v753
  %755 = vmatprep.mubr.f32.mxu0 %v334
  %756 = vmatmul.mubr.f32.gmra.mrb[0].mxu0 %v101
  %v757 = vpop.f32.mrb[0].mxu0
  %v758 = vadd.f32 0.0, %v757
  %v759 = vpop.f32.mrb[0].mxu0
  %v760 = vadd.f32 0.0, %v759
  %761 = vmatprep.mubr.f32.mxu0 %v337
  %762 = vmatmul.mubr.f32.gmra.mrb[0].mxu0 %v103
  %v763 = vpop.f32.mrb[0].mxu0
  %v764 = vadd.f32 0.0, %v763
  %v765 = vpop.f32.mrb[0].mxu0
  %v766 = vadd.f32 0.0, %v765
  %767 = vmatprep.mubr.f32.mxu0 %v340
  %768 = vmatmul.mubr.f32.gmra.mrb[0].mxu0 %v105
  %v769 = vpop.f32.mrb[0].mxu0
  %v770 = vadd.f32 0.0, %v769
  %v771 = vpop.f32.mrb[0].mxu0
  %v772 = vadd.f32 0.0, %v771
  %773 = vmatprep.mubr.f32.mxu0 %v343
  %774 = vmatmul.mubr.f32.gmra.mrb[0].mxu0 %v107
  %v775 = vpop.f32.mrb[0].mxu0
  %v776 = vadd.f32 0.0, %v775
  %v777 = vpop.f32.mrb[0].mxu0
  %v778 = vadd.f32 0.0, %v777
  %779 = vmatprep.mubr.f32.mxu0 %v346
  %780 = vmatmul.mubr.f32.gmra.mrb[0].mxu0 %v109
  %v781 = vpop.f32.mrb[0].mxu0
  %v782 = vadd.f32 0.0, %v781
  %v783 = vpop.f32.mrb[0].mxu0
  %v784 = vadd.f32 0.0, %v783
  %785 = vmatprep.mubr.f32.mxu0 %v349
  %786 = vmatmul.mubr.f32.gmra.mrb[0].mxu0 %v111
  %v787 = vpop.f32.mrb[0].mxu0
  %v788 = vadd.f32 0.0, %v787
  %v789 = vpop.f32.mrb[0].mxu0
  %v790 = vadd.f32 0.0, %v789
  %791 = vmatprep.mubr.f32.mxu0 %v352
  %792 = vmatmul.mubr.f32.gmra.mrb[0].mxu0 %v113
  %v793 = vpop.f32.mrb[0].mxu0
  %v794 = vadd.f32 0.0, %v793
  %v795 = vpop.f32.mrb[0].mxu0
  %v796 = vadd.f32 0.0, %v795
  %797 = vmatprep.mubr.f32.mxu0 %v355
  %798 = vmatmul.mubr.f32.gmra.mrb[0].mxu0 %v115
  %v799 = vpop.f32.mrb[0].mxu0
  %v800 = vadd.f32 0.0, %v799
  %v801 = vpop.f32.mrb[0].mxu0
  %v802 = vadd.f32 0.0, %v801
  %803 = vmatprep.mubr.f32.mxu0 %v358
  %804 = vmatmul.mubr.f32.gmra.mrb[0].mxu0 %v117
  %v805 = vpop.f32.mrb[0].mxu0
  %v806 = vadd.f32 0.0, %v805
  %v807 = vpop.f32.mrb[0].mxu0
  %v808 = vadd.f32 0.0, %v807
  %809 = vmatprep.mubr.f32.mxu0 %v361
  %810 = vmatmul.mubr.f32.gmra.mrb[0].mxu0 %v119
  %v811 = vpop.f32.mrb[0].mxu0
  %v812 = vadd.f32 0.0, %v811
  %v813 = vpop.f32.mrb[0].mxu0
  %v814 = vadd.f32 0.0, %v813
  %815 = vmatprep.mubr.f32.mxu0 %v364
  %816 = vmatmul.mubr.f32.gmra.mrb[0].mxu0 %v121
  %v817 = vpop.f32.mrb[0].mxu0
  %v818 = vadd.f32 0.0, %v817
  %v819 = vpop.f32.mrb[0].mxu0
  %v820 = vadd.f32 0.0, %v819
  %821 = vmatprep.mubr.f32.mxu0 %v367
  %822 = vmatmul.mubr.f32.gmra.mrb[0].mxu0 %v123
  %v823 = vpop.f32.mrb[0].mxu0
  %v824 = vadd.f32 0.0, %v823
  %v825 = vpop.f32.mrb[0].mxu0
  %v826 = vadd.f32 0.0, %v825
  %827 = vmatprep.mubr.f32.mxu0 %v370
  %828 = vmatmul.mubr.f32.gmra.mrb[0].mxu0 %v125
  %v829 = vpop.f32.mrb[0].mxu0
  %v830 = vadd.f32 0.0, %v829
  %v831 = vpop.f32.mrb[0].mxu0
  %v832 = vadd.f32 0.0, %v831
  %833 = vmatprep.mubr.f32.mxu0 %v373
  %834 = vmatmul.mubr.f32.gmra.mrb[0].mxu0 %v127
  %v835 = vpop.f32.mrb[0].mxu0
  %v836 = vadd.f32 0.0, %v835
  %v837 = vpop.f32.mrb[0].mxu0
  %v838 = vadd.f32 0.0, %v837
  %839 = vmatprep.mubr.f32.mxu0 %v376
  %840 = vmatmul.mubr.f32.gmra.mrb[0].mxu0 %v129
  %v841 = vpop.f32.mrb[0].mxu0
  %v842 = vadd.f32 0.0, %v841
  %v843 = vpop.f32.mrb[0].mxu0
  %v844 = vadd.f32 0.0, %v843
  %845 = vmatprep.mubr.f32.mxu0 %v379
  %846 = vmatmul.mubr.f32.gmra.mrb[0].mxu0 %v131
  %v847 = vpop.f32.mrb[0].mxu0
  %v848 = vadd.f32 0.0, %v847
  %v849 = vpop.f32.mrb[0].mxu0
  %v850 = vadd.f32 0.0, %v849
  %851 = vmatprep.mubr.f32.mxu0 %v382
  %852 = vmatmul.mubr.f32.gmra.mrb[0].mxu0 %v133
  %v853 = vpop.f32.mrb[0].mxu0
  %v854 = vadd.f32 0.0, %v853
  %v855 = vpop.f32.mrb[0].mxu0
  %v856 = vadd.f32 0.0, %v855
  %857 = vmatprep.mubr.f32.mxu0 %v385
  %858 = vmatmul.mubr.f32.gmra.mrb[0].mxu0 %v135
  %v859 = vpop.f32.mrb[0].mxu0
  %v860 = vadd.f32 0.0, %v859
  %v861 = vpop.f32.mrb[0].mxu0
  %v862 = vadd.f32 0.0, %v861
  %863 = vmatprep.mubr.f32.mxu0 %v388
  %864 = vmatmul.mubr.f32.gmra.mrb[0].mxu0 %v137
  %v865 = vpop.f32.mrb[0].mxu0
  %v866 = vadd.f32 0.0, %v865
  %v867 = vpop.f32.mrb[0].mxu0
  %v868 = vadd.f32 0.0, %v867
  %869 = vmatprep.mubr.f32.mxu0 %v391
  %870 = vmatmul.mubr.f32.gmra.mrb[0].mxu0 %v139
  %v871 = vpop.f32.mrb[0].mxu0
  %v872 = vadd.f32 0.0, %v871
  %v873 = vpop.f32.mrb[0].mxu0
  %v874 = vadd.f32 0.0, %v873
  %875 = vmatprep.mubr.f32.mxu0 %v394
  %876 = vmatmul.mubr.f32.gmra.mrb[0].mxu0 %v141
  %v877 = vpop.f32.mrb[0].mxu0
  %v878 = vadd.f32 0.0, %v877
  %v879 = vpop.f32.mrb[0].mxu0
  %v880 = vadd.f32 0.0, %v879
  %881 = vmatprep.mubr.f32.mxu0 %v397
  %882 = vmatmul.mubr.f32.gmra.mrb[0].mxu0 %v143
  %v883 = vpop.f32.mrb[0].mxu0
  %v884 = vadd.f32 0.0, %v883
  %v885 = vpop.f32.mrb[0].mxu0
  %v886 = vadd.f32 0.0, %v885
  %887 = vmatprep.mubr.f32.mxu0 %v400
  %888 = vmatmul.mubr.f32.gmra.mrb[0].mxu0 %v145
  %v889 = vpop.f32.mrb[0].mxu0
  %v890 = vadd.f32 0.0, %v889
  %v891 = vpop.f32.mrb[0].mxu0
  %v892 = vadd.f32 0.0, %v891
  %893 = vmatprep.mubr.f32.mxu0 %v403
  %894 = vmatmul.mubr.f32.gmra.mrb[0].mxu0 %v147
  %v895 = vpop.f32.mrb[0].mxu0
  %v896 = vadd.f32 0.0, %v895
  %v897 = vpop.f32.mrb[0].mxu0
  %v898 = vadd.f32 0.0, %v897
  %899 = vmatprep.mubr.f32.mxu0 %v406
  %900 = vmatmul.mubr.f32.gmra.mrb[0].mxu0 %v149
  %v901 = vpop.f32.mrb[0].mxu0
  %v902 = vadd.f32 0.0, %v901
  %v903 = vpop.f32.mrb[0].mxu0
  %v904 = vadd.f32 0.0, %v903
  %905 = vmatprep.mubr.f32.mxu0 %v409
  %906 = vmatmul.mubr.f32.gmra.mrb[0].mxu0 %v151
  %v907 = vpop.f32.mrb[0].mxu0
  %v908 = vadd.f32 0.0, %v907
  %v909 = vpop.f32.mrb[0].mxu0
  %v910 = vadd.f32 0.0, %v909
  %911 = vmatprep.mubr.f32.mxu0 %v412
  %912 = vmatmul.mubr.f32.gmra.mrb[0].mxu0 %v153
  %v913 = vpop.f32.mrb[0].mxu0
  %v914 = vadd.f32 0.0, %v913
  %v915 = vpop.f32.mrb[0].mxu0
  %v916 = vadd.f32 0.0, %v915
  %917 = vdwg.mxu0
  %v918 = vxor.u32 %v490, 2147483648
  %v919 = vxor.u32 %v496, 2147483648
  %v920 = vxor.u32 %v502, 2147483648
  %v921 = vxor.u32 %v508, 2147483648
  %v922 = vxor.u32 %v514, 2147483648
  %v923 = vxor.u32 %v520, 2147483648
  %v924 = vxor.u32 %v526, 2147483648
  %v925 = vxor.u32 %v532, 2147483648
  %v926 = vxor.u32 %v538, 2147483648
  %v927 = vxor.u32 %v544, 2147483648
  %v928 = vxor.u32 %v550, 2147483648
  %v929 = vxor.u32 %v556, 2147483648
  %v930 = vxor.u32 %v562, 2147483648
  %v931 = vxor.u32 %v568, 2147483648
  %v932 = vxor.u32 %v574, 2147483648
  %v933 = vxor.u32 %v580, 2147483648
  %v934 = vxor.u32 %v586, 2147483648
  %v935 = vxor.u32 %v592, 2147483648
  %v936 = vxor.u32 %v598, 2147483648
  %v937 = vxor.u32 %v604, 2147483648
  %v938 = vxor.u32 %v610, 2147483648
  %v939 = vxor.u32 %v616, 2147483648
  %v940 = vxor.u32 %v622, 2147483648
  %v941 = vxor.u32 %v628, 2147483648
  %v942 = vxor.u32 %v634, 2147483648
  %v943 = vxor.u32 %v640, 2147483648
  %v944 = vxor.u32 %v646, 2147483648
  %v945 = vxor.u32 %v652, 2147483648
  %v946 = vxor.u32 %v658, 2147483648
  %v947 = vxor.u32 %v664, 2147483648
  %v948 = vxor.u32 %v670, 2147483648
  %v949 = vxor.u32 %v676, 2147483648
  %v950 = vxor.u32 %v682, 2147483648
  %v951 = vxor.u32 %v688, 2147483648
  %v952 = vxor.u32 %v694, 2147483648
  %v953 = vxor.u32 %v700, 2147483648
  %v954 = vxor.u32 %v706, 2147483648
  %v955 = vxor.u32 %v712, 2147483648
  %v956 = vxor.u32 %v718, 2147483648
  %v957 = vxor.u32 %v724, 2147483648
  %v958 = vxor.u32 %v730, 2147483648
  %v959 = vxor.u32 %v736, 2147483648
  %v960 = vxor.u32 %v742, 2147483648
  %v961 = vxor.u32 %v748, 2147483648
  %v962 = vxor.u32 %v754, 2147483648
  %v963 = vxor.u32 %v760, 2147483648
  %v964 = vxor.u32 %v766, 2147483648
  %v965 = vxor.u32 %v772, 2147483648
  %v966 = vxor.u32 %v778, 2147483648
  %v967 = vxor.u32 %v784, 2147483648
  %v968 = vxor.u32 %v790, 2147483648
  %v969 = vxor.u32 %v796, 2147483648
  %v970 = vxor.u32 %v802, 2147483648
  %v971 = vxor.u32 %v808, 2147483648
  %v972 = vxor.u32 %v814, 2147483648
  %v973 = vxor.u32 %v820, 2147483648
  %v974 = vxor.u32 %v826, 2147483648
  %v975 = vxor.u32 %v832, 2147483648
  %v976 = vxor.u32 %v838, 2147483648
  %v977 = vxor.u32 %v844, 2147483648
  %v978 = vxor.u32 %v850, 2147483648
  %v979 = vxor.u32 %v856, 2147483648
  %v980 = vxor.u32 %v862, 2147483648
  %v981 = vxor.u32 %v868, 2147483648
  %v982 = vxor.u32 %v874, 2147483648
  %v983 = vxor.u32 %v880, 2147483648
  %v984 = vxor.u32 %v886, 2147483648
  %v985 = vxor.u32 %v892, 2147483648
  %v986 = vxor.u32 %v898, 2147483648
  %v987 = vxor.u32 %v904, 2147483648
  %v988 = vxor.u32 %v910, 2147483648
  %v989 = vxor.u32 %v916, 2147483648
  %v990 = vmul.f32 %v918, 1.442695
  %v991 = vpow.pop %v990
  %v992 = vmul.f32 %v919, 1.442695
  %v993 = vpow.pop %v992
  %v994 = vmul.f32 %v920, 1.442695
  %v995 = vpow.pop %v994
  %v996 = vmul.f32 %v921, 1.442695
  %v997 = vpow.pop %v996
  %v998 = vmul.f32 %v922, 1.442695
  %v999 = vpow.pop %v998
  %v1000 = vmul.f32 %v923, 1.442695
  %v1001 = vpow.pop %v1000
  %v1002 = vmul.f32 %v924, 1.442695
  %v1003 = vpow.pop %v1002
  %v1004 = vmul.f32 %v925, 1.442695
  %v1005 = vpow.pop %v1004
  %v1006 = vmul.f32 %v926, 1.442695
  %v1007 = vpow.pop %v1006
  %v1008 = vmul.f32 %v927, 1.442695
  %v1009 = vpow.pop %v1008
  %v1010 = vmul.f32 %v928, 1.442695
  %v1011 = vpow.pop %v1010
  %v1012 = vmul.f32 %v929, 1.442695
  %v1013 = vpow.pop %v1012
  %v1014 = vmul.f32 %v930, 1.442695
  %v1015 = vpow.pop %v1014
  %v1016 = vmul.f32 %v931, 1.442695
  %v1017 = vpow.pop %v1016
  %v1018 = vmul.f32 %v932, 1.442695
  %v1019 = vpow.pop %v1018
  %v1020 = vmul.f32 %v933, 1.442695
  %v1021 = vpow.pop %v1020
  %v1022 = vmul.f32 %v934, 1.442695
  %v1023 = vpow.pop %v1022
  %v1024 = vmul.f32 %v935, 1.442695
  %v1025 = vpow.pop %v1024
  %v1026 = vmul.f32 %v936, 1.442695
  %v1027 = vpow.pop %v1026
  %v1028 = vmul.f32 %v937, 1.442695
  %v1029 = vpow.pop %v1028
  %v1030 = vmul.f32 %v938, 1.442695
  %v1031 = vpow.pop %v1030
  %v1032 = vmul.f32 %v939, 1.442695
  %v1033 = vpow.pop %v1032
  %v1034 = vmul.f32 %v940, 1.442695
  %v1035 = vpow.pop %v1034
  %v1036 = vmul.f32 %v941, 1.442695
  %v1037 = vpow.pop %v1036
  %v1038 = vmul.f32 %v942, 1.442695
  %v1039 = vpow.pop %v1038
  %v1040 = vmul.f32 %v943, 1.442695
  %v1041 = vpow.pop %v1040
  %v1042 = vmul.f32 %v944, 1.442695
  %v1043 = vpow.pop %v1042
  %v1044 = vmul.f32 %v945, 1.442695
  %v1045 = vpow.pop %v1044
  %v1046 = vmul.f32 %v946, 1.442695
  %v1047 = vpow.pop %v1046
  %v1048 = vmul.f32 %v947, 1.442695
  %v1049 = vpow.pop %v1048
  %v1050 = vmul.f32 %v948, 1.442695
  %v1051 = vpow.pop %v1050
  %v1052 = vmul.f32 %v949, 1.442695
  %v1053 = vpow.pop %v1052
  %v1054 = vmul.f32 %v950, 1.442695
  %v1055 = vpow.pop %v1054
  %v1056 = vmul.f32 %v951, 1.442695
  %v1057 = vpow.pop %v1056
  %v1058 = vmul.f32 %v952, 1.442695
  %v1059 = vpow.pop %v1058
  %v1060 = vmul.f32 %v953, 1.442695
  %v1061 = vpow.pop %v1060
  %v1062 = vmul.f32 %v954, 1.442695
  %v1063 = vpow.pop %v1062
  %v1064 = vmul.f32 %v955, 1.442695
  %v1065 = vpow.pop %v1064
  %v1066 = vmul.f32 %v956, 1.442695
  %v1067 = vpow.pop %v1066
  %v1068 = vmul.f32 %v957, 1.442695
  %v1069 = vpow.pop %v1068
  %v1070 = vmul.f32 %v958, 1.442695
  %v1071 = vpow.pop %v1070
  %v1072 = vmul.f32 %v959, 1.442695
  %v1073 = vpow.pop %v1072
  %v1074 = vmul.f32 %v960, 1.442695
  %v1075 = vpow.pop %v1074
  %v1076 = vmul.f32 %v961, 1.442695
  %v1077 = vpow.pop %v1076
  %v1078 = vmul.f32 %v962, 1.442695
  %v1079 = vpow.pop %v1078
  %v1080 = vmul.f32 %v963, 1.442695
  %v1081 = vpow.pop %v1080
  %v1082 = vmul.f32 %v964, 1.442695
  %v1083 = vpow.pop %v1082
  %v1084 = vmul.f32 %v965, 1.442695
  %v1085 = vpow.pop %v1084
  %v1086 = vmul.f32 %v966, 1.442695
  %v1087 = vpow.pop %v1086
  %v1088 = vmul.f32 %v967, 1.442695
  %v1089 = vpow.pop %v1088
  %v1090 = vmul.f32 %v968, 1.442695
  %v1091 = vpow.pop %v1090
  %v1092 = vmul.f32 %v969, 1.442695
  %v1093 = vpow.pop %v1092
  %v1094 = vmul.f32 %v970, 1.442695
  %v1095 = vpow.pop %v1094
  %v1096 = vmul.f32 %v971, 1.442695
  %v1097 = vpow.pop %v1096
  %v1098 = vmul.f32 %v972, 1.442695
  %v1099 = vpow.pop %v1098
  %v1100 = vmul.f32 %v973, 1.442695
  %v1101 = vpow.pop %v1100
  %v1102 = vmul.f32 %v974, 1.442695
  %v1103 = vpow.pop %v1102
  %v1104 = vmul.f32 %v975, 1.442695
  %v1105 = vpow.pop %v1104
  %v1106 = vmul.f32 %v976, 1.442695
  %v1107 = vpow.pop %v1106
  %v1108 = vmul.f32 %v977, 1.442695
  %v1109 = vpow.pop %v1108
  %v1110 = vmul.f32 %v978, 1.442695
  %v1111 = vpow.pop %v1110
  %v1112 = vmul.f32 %v979, 1.442695
  %v1113 = vpow.pop %v1112
  %v1114 = vmul.f32 %v980, 1.442695
  %v1115 = vpow.pop %v1114
  %v1116 = vmul.f32 %v981, 1.442695
  %v1117 = vpow.pop %v1116
  %v1118 = vmul.f32 %v982, 1.442695
  %v1119 = vpow.pop %v1118
  %v1120 = vmul.f32 %v983, 1.442695
  %v1121 = vpow.pop %v1120
  %v1122 = vmul.f32 %v984, 1.442695
  %v1123 = vpow.pop %v1122
  %v1124 = vmul.f32 %v985, 1.442695
  %v1125 = vpow.pop %v1124
  %v1126 = vmul.f32 %v986, 1.442695
  %v1127 = vpow.pop %v1126
  %v1128 = vmul.f32 %v987, 1.442695
  %v1129 = vpow.pop %v1128
  %v1130 = vmul.f32 %v988, 1.442695
  %v1131 = vpow.pop %v1130
  %v1132 = vmul.f32 %v989, 1.442695
  %v1133 = vpow.pop %v1132
  %v1134 = vadd.f32 %v991, 1.0
  %v1135 = vadd.f32 %v993, 1.0
  %v1136 = vadd.f32 %v995, 1.0
  %v1137 = vadd.f32 %v997, 1.0
  %v1138 = vadd.f32 %v999, 1.0
  %v1139 = vadd.f32 %v1001, 1.0
  %v1140 = vadd.f32 %v1003, 1.0
  %v1141 = vadd.f32 %v1005, 1.0
  %v1142 = vadd.f32 %v1007, 1.0
  %v1143 = vadd.f32 %v1009, 1.0
  %v1144 = vadd.f32 %v1011, 1.0
  %v1145 = vadd.f32 %v1013, 1.0
  %v1146 = vadd.f32 %v1015, 1.0
  %v1147 = vadd.f32 %v1017, 1.0
  %v1148 = vadd.f32 %v1019, 1.0
  %v1149 = vadd.f32 %v1021, 1.0
  %v1150 = vadd.f32 %v1023, 1.0
  %v1151 = vadd.f32 %v1025, 1.0
  %v1152 = vadd.f32 %v1027, 1.0
  %v1153 = vadd.f32 %v1029, 1.0
  %v1154 = vadd.f32 %v1031, 1.0
  %v1155 = vadd.f32 %v1033, 1.0
  %v1156 = vadd.f32 %v1035, 1.0
  %v1157 = vadd.f32 %v1037, 1.0
  %v1158 = vadd.f32 %v1039, 1.0
  %v1159 = vadd.f32 %v1041, 1.0
  %v1160 = vadd.f32 %v1043, 1.0
  %v1161 = vadd.f32 %v1045, 1.0
  %v1162 = vadd.f32 %v1047, 1.0
  %v1163 = vadd.f32 %v1049, 1.0
  %v1164 = vadd.f32 %v1051, 1.0
  %v1165 = vadd.f32 %v1053, 1.0
  %v1166 = vadd.f32 %v1055, 1.0
  %v1167 = vadd.f32 %v1057, 1.0
  %v1168 = vadd.f32 %v1059, 1.0
  %v1169 = vadd.f32 %v1061, 1.0
  %v1170 = vadd.f32 %v1063, 1.0
  %v1171 = vadd.f32 %v1065, 1.0
  %v1172 = vadd.f32 %v1067, 1.0
  %v1173 = vadd.f32 %v1069, 1.0
  %v1174 = vadd.f32 %v1071, 1.0
  %v1175 = vadd.f32 %v1073, 1.0
  %v1176 = vadd.f32 %v1075, 1.0
  %v1177 = vadd.f32 %v1077, 1.0
  %v1178 = vadd.f32 %v1079, 1.0
  %v1179 = vadd.f32 %v1081, 1.0
  %v1180 = vadd.f32 %v1083, 1.0
  %v1181 = vadd.f32 %v1085, 1.0
  %v1182 = vadd.f32 %v1087, 1.0
  %v1183 = vadd.f32 %v1089, 1.0
  %v1184 = vadd.f32 %v1091, 1.0
  %v1185 = vadd.f32 %v1093, 1.0
  %v1186 = vadd.f32 %v1095, 1.0
  %v1187 = vadd.f32 %v1097, 1.0
  %v1188 = vadd.f32 %v1099, 1.0
  %v1189 = vadd.f32 %v1101, 1.0
  %v1190 = vadd.f32 %v1103, 1.0
  %v1191 = vadd.f32 %v1105, 1.0
  %v1192 = vadd.f32 %v1107, 1.0
  %v1193 = vadd.f32 %v1109, 1.0
  %v1194 = vadd.f32 %v1111, 1.0
  %v1195 = vadd.f32 %v1113, 1.0
  %v1196 = vadd.f32 %v1115, 1.0
  %v1197 = vadd.f32 %v1117, 1.0
  %v1198 = vadd.f32 %v1119, 1.0
  %v1199 = vadd.f32 %v1121, 1.0
  %v1200 = vadd.f32 %v1123, 1.0
  %v1201 = vadd.f32 %v1125, 1.0
  %v1202 = vadd.f32 %v1127, 1.0
  %v1203 = vadd.f32 %v1129, 1.0
  %v1204 = vadd.f32 %v1131, 1.0
  %v1205 = vadd.f32 %v1133, 1.0
  %v1206 = vrcp.pop %v1134
  %v1207 = vmul.f32 1.0, %v1206
  %v1208 = vrcp.pop %v1135
  %v1209 = vmul.f32 1.0, %v1208
  %v1210 = vrcp.pop %v1136
  %v1211 = vmul.f32 1.0, %v1210
  %v1212 = vrcp.pop %v1137
  %v1213 = vmul.f32 1.0, %v1212
  %v1214 = vrcp.pop %v1138
  %v1215 = vmul.f32 1.0, %v1214
  %v1216 = vrcp.pop %v1139
  %v1217 = vmul.f32 1.0, %v1216
  %v1218 = vrcp.pop %v1140
  %v1219 = vmul.f32 1.0, %v1218
  %v1220 = vrcp.pop %v1141
  %v1221 = vmul.f32 1.0, %v1220
  %v1222 = vrcp.pop %v1142
  %v1223 = vmul.f32 1.0, %v1222
  %v1224 = vrcp.pop %v1143
  %v1225 = vmul.f32 1.0, %v1224
  %v1226 = vrcp.pop %v1144
  %v1227 = vmul.f32 1.0, %v1226
  %v1228 = vrcp.pop %v1145
  %v1229 = vmul.f32 1.0, %v1228
  %v1230 = vrcp.pop %v1146
  %v1231 = vmul.f32 1.0, %v1230
  %v1232 = vrcp.pop %v1147
  %v1233 = vmul.f32 1.0, %v1232
  %v1234 = vrcp.pop %v1148
  %v1235 = vmul.f32 1.0, %v1234
  %v1236 = vrcp.pop %v1149
  %v1237 = vmul.f32 1.0, %v1236
  %v1238 = vrcp.pop %v1150
  %v1239 = vmul.f32 1.0, %v1238
  %v1240 = vrcp.pop %v1151
  %v1241 = vmul.f32 1.0, %v1240
  %v1242 = vrcp.pop %v1152
  %v1243 = vmul.f32 1.0, %v1242
  %v1244 = vrcp.pop %v1153
  %v1245 = vmul.f32 1.0, %v1244
  %v1246 = vrcp.pop %v1154
  %v1247 = vmul.f32 1.0, %v1246
  %v1248 = vrcp.pop %v1155
  %v1249 = vmul.f32 1.0, %v1248
  %v1250 = vrcp.pop %v1156
  %v1251 = vmul.f32 1.0, %v1250
  %v1252 = vrcp.pop %v1157
  %v1253 = vmul.f32 1.0, %v1252
  %v1254 = vrcp.pop %v1158
  %v1255 = vmul.f32 1.0, %v1254
  %v1256 = vrcp.pop %v1159
  %v1257 = vmul.f32 1.0, %v1256
  %v1258 = vrcp.pop %v1160
  %v1259 = vmul.f32 1.0, %v1258
  %v1260 = vrcp.pop %v1161
  %v1261 = vmul.f32 1.0, %v1260
  %v1262 = vrcp.pop %v1162
  %v1263 = vmul.f32 1.0, %v1262
  %v1264 = vrcp.pop %v1163
  %v1265 = vmul.f32 1.0, %v1264
  %v1266 = vrcp.pop %v1164
  %v1267 = vmul.f32 1.0, %v1266
  %v1268 = vrcp.pop %v1165
  %v1269 = vmul.f32 1.0, %v1268
  %v1270 = vrcp.pop %v1166
  %v1271 = vmul.f32 1.0, %v1270
  %v1272 = vrcp.pop %v1167
  %v1273 = vmul.f32 1.0, %v1272
  %v1274 = vrcp.pop %v1168
  %v1275 = vmul.f32 1.0, %v1274
  %v1276 = vrcp.pop %v1169
  %v1277 = vmul.f32 1.0, %v1276
  %v1278 = vrcp.pop %v1170
  %v1279 = vmul.f32 1.0, %v1278
  %v1280 = vrcp.pop %v1171
  %v1281 = vmul.f32 1.0, %v1280
  %v1282 = vrcp.pop %v1172
  %v1283 = vmul.f32 1.0, %v1282
  %v1284 = vrcp.pop %v1173
  %v1285 = vmul.f32 1.0, %v1284
  %v1286 = vrcp.pop %v1174
  %v1287 = vmul.f32 1.0, %v1286
  %v1288 = vrcp.pop %v1175
  %v1289 = vmul.f32 1.0, %v1288
  %v1290 = vrcp.pop %v1176
  %v1291 = vmul.f32 1.0, %v1290
  %v1292 = vrcp.pop %v1177
  %v1293 = vmul.f32 1.0, %v1292
  %v1294 = vrcp.pop %v1178
  %v1295 = vmul.f32 1.0, %v1294
  %v1296 = vrcp.pop %v1179
  %v1297 = vmul.f32 1.0, %v1296
  %v1298 = vrcp.pop %v1180
  %v1299 = vmul.f32 1.0, %v1298
  %v1300 = vrcp.pop %v1181
  %v1301 = vmul.f32 1.0, %v1300
  %v1302 = vrcp.pop %v1182
  %v1303 = vmul.f32 1.0, %v1302
  %v1304 = vrcp.pop %v1183
  %v1305 = vmul.f32 1.0, %v1304
  %v1306 = vrcp.pop %v1184
  %v1307 = vmul.f32 1.0, %v1306
  %v1308 = vrcp.pop %v1185
  %v1309 = vmul.f32 1.0, %v1308
  %v1310 = vrcp.pop %v1186
  %v1311 = vmul.f32 1.0, %v1310
  %v1312 = vrcp.pop %v1187
  %v1313 = vmul.f32 1.0, %v1312
  %v1314 = vrcp.pop %v1188
  %v1315 = vmul.f32 1.0, %v1314
  %v1316 = vrcp.pop %v1189
  %v1317 = vmul.f32 1.0, %v1316
  %v1318 = vrcp.pop %v1190
  %v1319 = vmul.f32 1.0, %v1318
  %v1320 = vrcp.pop %v1191
  %v1321 = vmul.f32 1.0, %v1320
  %v1322 = vrcp.pop %v1192
  %v1323 = vmul.f32 1.0, %v1322
  %v1324 = vrcp.pop %v1193
  %v1325 = vmul.f32 1.0, %v1324
  %v1326 = vrcp.pop %v1194
  %v1327 = vmul.f32 1.0, %v1326
  %v1328 = vrcp.pop %v1195
  %v1329 = vmul.f32 1.0, %v1328
  %v1330 = vrcp.pop %v1196
  %v1331 = vmul.f32 1.0, %v1330
  %v1332 = vrcp.pop %v1197
  %v1333 = vmul.f32 1.0, %v1332
  %v1334 = vrcp.pop %v1198
  %v1335 = vmul.f32 1.0, %v1334
  %v1336 = vrcp.pop %v1199
  %v1337 = vmul.f32 1.0, %v1336
  %v1338 = vrcp.pop %v1200
  %v1339 = vmul.f32 1.0, %v1338
  %v1340 = vrcp.pop %v1201
  %v1341 = vmul.f32 1.0, %v1340
  %v1342 = vrcp.pop %v1202
  %v1343 = vmul.f32 1.0, %v1342
  %v1344 = vrcp.pop %v1203
  %v1345 = vmul.f32 1.0, %v1344
  %v1346 = vrcp.pop %v1204
  %v1347 = vmul.f32 1.0, %v1346
  %v1348 = vrcp.pop %v1205
  %v1349 = vmul.f32 1.0, %v1348
  %v1350 = vmul.f32 %v488, %v1207
  %v1351 = vmul.f32 %v494, %v1209
  %v1352 = vmul.f32 %v500, %v1211
  %v1353 = vmul.f32 %v506, %v1213
  %v1354 = vmul.f32 %v512, %v1215
  %v1355 = vmul.f32 %v518, %v1217
  %v1356 = vmul.f32 %v524, %v1219
  %v1357 = vmul.f32 %v530, %v1221
  %v1358 = vmul.f32 %v536, %v1223
  %v1359 = vmul.f32 %v542, %v1225
  %v1360 = vmul.f32 %v548, %v1227
  %v1361 = vmul.f32 %v554, %v1229
  %v1362 = vmul.f32 %v560, %v1231
  %v1363 = vmul.f32 %v566, %v1233
  %v1364 = vmul.f32 %v572, %v1235
  %v1365 = vmul.f32 %v578, %v1237
  %v1366 = vmul.f32 %v584, %v1239
  %v1367 = vmul.f32 %v590, %v1241
  %v1368 = vmul.f32 %v596, %v1243
  %v1369 = vmul.f32 %v602, %v1245
  %v1370 = vmul.f32 %v608, %v1247
  %v1371 = vmul.f32 %v614, %v1249
  %v1372 = vmul.f32 %v620, %v1251
  %v1373 = vmul.f32 %v626, %v1253
  %v1374 = vmul.f32 %v632, %v1255
  %v1375 = vmul.f32 %v638, %v1257
  %v1376 = vmul.f32 %v644, %v1259
  %v1377 = vmul.f32 %v650, %v1261
  %v1378 = vmul.f32 %v656, %v1263
  %v1379 = vmul.f32 %v662, %v1265
  %v1380 = vmul.f32 %v668, %v1267
  %v1381 = vmul.f32 %v674, %v1269
  %v1382 = vmul.f32 %v680, %v1271
  %v1383 = vmul.f32 %v686, %v1273
  %v1384 = vmul.f32 %v692, %v1275
  %v1385 = vmul.f32 %v698, %v1277
  %v1386 = vmul.f32 %v704, %v1279
  %v1387 = vmul.f32 %v710, %v1281
  %v1388 = vmul.f32 %v716, %v1283
  %v1389 = vmul.f32 %v722, %v1285
  %v1390 = vmul.f32 %v728, %v1287
  %v1391 = vmul.f32 %v734, %v1289
  %v1392 = vmul.f32 %v740, %v1291
  %v1393 = vmul.f32 %v746, %v1293
  %v1394 = vmul.f32 %v752, %v1295
  %v1395 = vmul.f32 %v758, %v1297
  %v1396 = vmul.f32 %v764, %v1299
  %v1397 = vmul.f32 %v770, %v1301
  %v1398 = vmul.f32 %v776, %v1303
  %v1399 = vmul.f32 %v782, %v1305
  %v1400 = vmul.f32 %v788, %v1307
  %v1401 = vmul.f32 %v794, %v1309
  %v1402 = vmul.f32 %v800, %v1311
  %v1403 = vmul.f32 %v806, %v1313
  %v1404 = vmul.f32 %v812, %v1315
  %v1405 = vmul.f32 %v818, %v1317
  %v1406 = vmul.f32 %v824, %v1319
  %v1407 = vmul.f32 %v830, %v1321
  %v1408 = vmul.f32 %v836, %v1323
  %v1409 = vmul.f32 %v842, %v1325
  %v1410 = vmul.f32 %v848, %v1327
  %v1411 = vmul.f32 %v854, %v1329
  %v1412 = vmul.f32 %v860, %v1331
  %v1413 = vmul.f32 %v866, %v1333
  %v1414 = vmul.f32 %v872, %v1335
  %v1415 = vmul.f32 %v878, %v1337
  %v1416 = vmul.f32 %v884, %v1339
  %v1417 = vmul.f32 %v890, %v1341
  %v1418 = vmul.f32 %v896, %v1343
  %v1419 = vmul.f32 %v902, %v1345
  %v1420 = vmul.f32 %v908, %v1347
  %v1421 = vmul.f32 %v914, %v1349
  %1422 = vst [vmem:[%s2] sm:$0xff] %v1350
  %1423 = vst [vmem:[%s2 + $0x8] sm:$0xff] %v1351
  %1424 = vst [vmem:[%s2 + $0x10] sm:$0xff] %v1352
  %1425 = vst [vmem:[%s2 + $0x18] sm:$0xff] %v1353
  %1426 = vst [vmem:[%s2 + $0x20] sm:$0xff] %v1354
  %1427 = vst [vmem:[%s2 + $0x28] sm:$0xff] %v1355
  %1428 = vst [vmem:[%s2 + $0x30] sm:$0xff] %v1356
  %1429 = vst [vmem:[%s2 + $0x38] sm:$0xff] %v1357
  %1430 = vst [vmem:[%s2 + $0x40] sm:$0xff] %v1358
  %1431 = vst [vmem:[%s2 + $0x48] sm:$0xff] %v1359
  %1432 = vst [vmem:[%s2 + $0x50] sm:$0xff] %v1360
  %1433 = vst [vmem:[%s2 + $0x58] sm:$0xff] %v1361
  %1434 = vst [vmem:[%s2 + $0x60] sm:$0xff] %v1362
  %1435 = vst [vmem:[%s2 + $0x68] sm:$0xff] %v1363
  %1436 = vst [vmem:[%s2 + $0x70] sm:$0xff] %v1364
  %1437 = vst [vmem:[%s2 + $0x78] sm:$0xff] %v1365
  %1438 = vst [vmem:[%s2 + $0x80] sm:$0xff] %v1366
  %1439 = vst [vmem:[%s2 + $0x88] sm:$0xff] %v1367
  %1440 = vst [vmem:[%s2 + $0x90] sm:$0xff] %v1368
  %1441 = vst [vmem:[%s2 + $0x98] sm:$0xff] %v1369
  %1442 = vst [vmem:[%s2 + $0xa0] sm:$0xff] %v1370
  %1443 = vst [vmem:[%s2 + $0xa8] sm:$0xff] %v1371
  %1444 = vst [vmem:[%s2 + $0xb0] sm:$0xff] %v1372
  %1445 = vst [vmem:[%s2 + $0xb8] sm:$0xff] %v1373
  %1446 = vst [vmem:[%s2 + $0xc0] sm:$0xff] %v1374
  %1447 = vst [vmem:[%s2 + $0xc8] sm:$0xff] %v1375
  %1448 = vst [vmem:[%s2 + $0xd0] sm:$0xff] %v1376
  %1449 = vst [vmem:[%s2 + $0xd8] sm:$0xff] %v1377
  %1450 = vst [vmem:[%s2 + $0xe0] sm:$0xff] %v1378
  %1451 = vst [vmem:[%s2 + $0xe8] sm:$0xff] %v1379
  %1452 = vst [vmem:[%s2 + $0xf0] sm:$0xff] %v1380
  %1453 = vst [vmem:[%s2 + $0xf8] sm:$0xff] %v1381
  %1454 = vst [vmem:[%s2 + $0x100] sm:$0xff] %v1382
  %1455 = vst [vmem:[%s2 + $0x108] sm:$0xff] %v1383
  %1456 = vst [vmem:[%s2 + $0x110] sm:$0xff] %v1384
  %1457 = vst [vmem:[%s2 + $0x118] sm:$0xff] %v1385
  %1458 = vst [vmem:[%s2 + $0x120] sm:$0xff] %v1386
  %1459 = vst [vmem:[%s2 + $0x128] sm:$0xff] %v1387
  %1460 = vst [vmem:[%s2 + $0x130] sm:$0xff] %v1388
  %1461 = vst [vmem:[%s2 + $0x138] sm:$0xff] %v1389
  %1462 = vst [vmem:[%s2 + $0x140] sm:$0xff] %v1390
  %1463 = vst [vmem:[%s2 + $0x148] sm:$0xff] %v1391
  %1464 = vst [vmem:[%s2 + $0x150] sm:$0xff] %v1392
  %1465 = vst [vmem:[%s2 + $0x158] sm:$0xff] %v1393
  %1466 = vst [vmem:[%s2 + $0x160] sm:$0xff] %v1394
  %1467 = vst [vmem:[%s2 + $0x168] sm:$0xff] %v1395
  %1468 = vst [vmem:[%s2 + $0x170] sm:$0xff] %v1396
  %1469 = vst [vmem:[%s2 + $0x178] sm:$0xff] %v1397
  %1470 = vst [vmem:[%s2 + $0x180] sm:$0xff] %v1398
  %1471 = vst [vmem:[%s2 + $0x188] sm:$0xff] %v1399
  %1472 = vst [vmem:[%s2 + $0x190] sm:$0xff] %v1400
  %1473 = vst [vmem:[%s2 + $0x198] sm:$0xff] %v1401
  %1474 = vst [vmem:[%s2 + $0x1a0] sm:$0xff] %v1402
  %1475 = vst [vmem:[%s2 + $0x1a8] sm:$0xff] %v1403
  %1476 = vst [vmem:[%s2 + $0x1b0] sm:$0xff] %v1404
  %1477 = vst [vmem:[%s2 + $0x1b8] sm:$0xff] %v1405
  %1478 = vst [vmem:[%s2 + $0x1c0] sm:$0xff] %v1406
  %1479 = vst [vmem:[%s2 + $0x1c8] sm:$0xff] %v1407
  %1480 = vst [vmem:[%s2 + $0x1d0] sm:$0xff] %v1408
  %1481 = vst [vmem:[%s2 + $0x1d8] sm:$0xff] %v1409
  %1482 = vst [vmem:[%s2 + $0x1e0] sm:$0xff] %v1410
  %1483 = vst [vmem:[%s2 + $0x1e8] sm:$0xff] %v1411
  %1484 = vst [vmem:[%s2 + $0x1f0] sm:$0xff] %v1412
  %1485 = vst [vmem:[%s2 + $0x1f8] sm:$0xff] %v1413
  %1486 = vst [vmem:[%s2 + $0x200] sm:$0xff] %v1414
  %1487 = vst [vmem:[%s2 + $0x208] sm:$0xff] %v1415
  %1488 = vst [vmem:[%s2 + $0x210] sm:$0xff] %v1416
  %1489 = vst [vmem:[%s2 + $0x218] sm:$0xff] %v1417
  %1490 = vst [vmem:[%s2 + $0x220] sm:$0xff] %v1418
  %1491 = vst [vmem:[%s2 + $0x228] sm:$0xff] %v1419
  %1492 = vst [vmem:[%s2 + $0x230] sm:$0xff] %v1420
  %1493 = vst [vmem:[%s2 + $0x238] sm:$0xff] %v1421
  // Predicated region
  $region10: #{_lambda_.5} parent=0 // pred_check
    _
  $region11: #{_lambda_.5} parent=0 // pred_check_branch
    %1495 = sbr.rel (0) target = $region13
  $region12: #{_lambda_.5} parent=0 // pred_region
    _
  $region13: #{_lambda_.5} parent=0 // pred_fallthru
    _
  // Predicated region
  $region14: #{_lambda_.5} parent=0 // pred_check
    _
  $region15: #{_lambda_.5} parent=0 // pred_check_branch
    %1497 = sbr.rel (0) target = $region17
  $region16: #{_lambda_.5} parent=0 // pred_region
    _
  $region17: #{_lambda_.5} parent=0 // pred_fallthru
    _

// kernel: _lambda_.6
$region0: #{_lambda_.6}
  #allocation0 [shape = 'u32[]', space=smem, size = 0x4, offset = 0x4, fixed_abs, tag = 'smem constant byte address 0x4 - core index']
  #allocation1 [shape = 'u32[144,128]{1,0:T(1,128)}', space=vmem, size = 0x12000, scoped, tag = 'internal scratch']
  %s0 = inlined_call_operand.vmem [shape: f32[144,321], index: 0, kind: input, shape index: {}]
  %s1 = inlined_call_operand.vmem [shape: f32[321,256], index: 1, kind: input, shape index: {}]
  %s2 = inlined_call_operand.vmem [shape: f32[144,128], index: 2, kind: output, shape index: {}]
  %s3 = sld [smem:[#allocation0]]
  $region18: #{_lambda_.6} parent=0
    _
  %s5 = ssub.s32 1, %s3
  %s6 = scalar_select 0, %s5, %s3
  // Predicated region
  $region2: #{_lambda_.6} parent=0 // pred_check
    _
  $region3: #{_lambda_.6} parent=0 // pred_check_branch
    %8 = sbr.rel (0) target = $region5
  $region4: #{_lambda_.6} parent=0 // pred_region
    _
  $region5: #{_lambda_.6} parent=0 // pred_fallthru
    _
  // Predicated region
  $region6: #{_lambda_.6} parent=0 // pred_check
    _
  $region7: #{_lambda_.6} parent=0 // pred_check_branch
    %10 = sbr.rel (0) target = $region9
  $region8: #{_lambda_.6} parent=0 // pred_region
    _
  $region9: #{_lambda_.6} parent=0 // pred_fallthru
    _
  %v11 = vld [vmem:[%s0] sm:$0xff]
  %v12 = vld [vmem:[%s0 + $0x8] sm:$0xff]
  %v13 = vld [vmem:[%s0 + $0x10] sm:$0xff]
  %v14 = vld [vmem:[%s0 + $0x18] sm:$0xff]
  %v15 = vld [vmem:[%s0 + $0x20] sm:$0xff]
  %v16 = vld [vmem:[%s0 + $0x28] sm:$0xff]
  %v17 = vld [vmem:[%s0 + $0x30] sm:$0xff]
  %v18 = vld [vmem:[%s0 + $0x38] sm:$0xff]
  %v19 = vld [vmem:[%s0 + $0x40] sm:$0xff]
  %v20 = vld [vmem:[%s0 + $0x48] sm:$0xff]
  %v21 = vld [vmem:[%s0 + $0x50] sm:$0xff]
  %v22 = vld [vmem:[%s0 + $0x58] sm:$0xff]
  %v23 = vld [vmem:[%s0 + $0x60] sm:$0xff]
  %v24 = vld [vmem:[%s0 + $0x68] sm:$0xff]
  %v25 = vld [vmem:[%s0 + $0x70] sm:$0xff]
  %v26 = vld [vmem:[%s0 + $0x78] sm:$0xff]
  %v27 = vld [vmem:[%s0 + $0x80] sm:$0xff]
  %v28 = vld [vmem:[%s0 + $0x88] sm:$0xff]
  %v29 = vld [vmem:[%s0 + $0x90] sm:$0xff]
  %v30 = vld [vmem:[%s0 + $0x98] sm:$0xff]
  %v31 = vld [vmem:[%s0 + $0xa0] sm:$0xff]
  %v32 = vld [vmem:[%s0 + $0xa8] sm:$0xff]
  %v33 = vld [vmem:[%s0 + $0xb0] sm:$0xff]
  %v34 = vld [vmem:[%s0 + $0xb8] sm:$0xff]
  %v35 = vld [vmem:[%s0 + $0xc0] sm:$0xff]
  %v36 = vld [vmem:[%s0 + $0xc8] sm:$0xff]
  %v37 = vld [vmem:[%s0 + $0xd0] sm:$0xff]
  %v38 = vld [vmem:[%s0 + $0xd8] sm:$0xff]
  %v39 = vld [vmem:[%s0 + $0xe0] sm:$0xff]
  %v40 = vld [vmem:[%s0 + $0xe8] sm:$0xff]
  %v41 = vld [vmem:[%s0 + $0xf0] sm:$0xff]
  %v42 = vld [vmem:[%s0 + $0xf8] sm:$0xff]
  %v43 = vld [vmem:[%s0 + $0x100] sm:$0xff]
  %v44 = vld [vmem:[%s0 + $0x108] sm:$0xff]
  %v45 = vld [vmem:[%s0 + $0x110] sm:$0xff]
  %v46 = vld [vmem:[%s0 + $0x118] sm:$0xff]
  %v47 = vld [vmem:[%s0 + $0x120] sm:$0xff]
  %v48 = vld [vmem:[%s0 + $0x128] sm:$0xff]
  %v49 = vld [vmem:[%s0 + $0x130] sm:$0xff]
  %v50 = vld [vmem:[%s0 + $0x138] sm:$0xff]
  %v51 = vld [vmem:[%s0 + $0x140] sm:$0xff]
  %v52 = vld [vmem:[%s0 + $0x148] sm:$0xff]
  %v53 = vld [vmem:[%s0 + $0x150] sm:$0xff]
  %v54 = vld [vmem:[%s0 + $0x158] sm:$0xff]
  %v55 = vld [vmem:[%s0 + $0x160] sm:$0xff]
  %v56 = vld [vmem:[%s0 + $0x168] sm:$0xff]
  %v57 = vld [vmem:[%s0 + $0x170] sm:$0xff]
  %v58 = vld [vmem:[%s0 + $0x178] sm:$0xff]
  %v59 = vld [vmem:[%s0 + $0x180] sm:$0xff]
  %v60 = vld [vmem:[%s0 + $0x188] sm:$0xff]
  %v61 = vld [vmem:[%s0 + $0x190] sm:$0xff]
  %v62 = vld [vmem:[%s0 + $0x198] sm:$0xff]
  %v63 = vld [vmem:[%s0 + $0x1a0] sm:$0xff]
  %v64 = vld [vmem:[%s0 + $0x1a8] sm:$0xff]
  %v65 = vld [vmem:[%s1] sm:$0xff]
  %v66 = vld [vmem:[%s1 + $0x8] sm:$0xff]
  %v67 = vld [vmem:[%s1 + $0x10] sm:$0xff]
  %v68 = vld [vmem:[%s1 + $0x18] sm:$0xff]
  %v69 = vld [vmem:[%s1 + $0x20] sm:$0xff]
  %v70 = vld [vmem:[%s1 + $0x28] sm:$0xff]
  %v71 = vld [vmem:[%s1 + $0x30] sm:$0xff]
  %v72 = vld [vmem:[%s1 + $0x38] sm:$0xff]
  %v73 = vld [vmem:[%s1 + $0x40] sm:$0xff]
  %v74 = vld [vmem:[%s1 + $0x48] sm:$0xff]
  %v75 = vld [vmem:[%s1 + $0x50] sm:$0xff]
  %v76 = vld [vmem:[%s1 + $0x58] sm:$0xff]
  %v77 = vld [vmem:[%s1 + $0x60] sm:$0xff]
  %v78 = vld [vmem:[%s1 + $0x68] sm:$0xff]
  %v79 = vld [vmem:[%s1 + $0x70] sm:$0xff]
  %v80 = vld [vmem:[%s1 + $0x78] sm:$0xff]
  %v81 = vld [vmem:[%s1 + $0x80] sm:$0xff]
  %v82 = vld [vmem:[%s1 + $0x88] sm:$0xff]
  %v83 = vld [vmem:[%s1 + $0x90] sm:$0xff]
  %v84 = vld [vmem:[%s1 + $0x98] sm:$0xff]
  %v85 = vld [vmem:[%s1 + $0xa0] sm:$0xff]
  %v86 = vld [vmem:[%s1 + $0xa8] sm:$0xff]
  %v87 = vld [vmem:[%s1 + $0xb0] sm:$0xff]
  %v88 = vld [vmem:[%s1 + $0xb8] sm:$0xff]
  %v89 = vld [vmem:[%s1 + $0xc0] sm:$0xff]
  %v90 = vld [vmem:[%s1 + $0xc8] sm:$0xff]
  %v91 = vld [vmem:[%s1 + $0xd0] sm:$0xff]
  %v92 = vld [vmem:[%s1 + $0xd8] sm:$0xff]
  %v93 = vld [vmem:[%s1 + $0xe0] sm:$0xff]
  %v94 = vld [vmem:[%s1 + $0xe8] sm:$0xff]
  %v95 = vld [vmem:[%s1 + $0xf0] sm:$0xff]
  %v96 = vld [vmem:[%s1 + $0xf8] sm:$0xff]
  %v97 = vld [vmem:[%s1 + $0x100] sm:$0xff]
  %v98 = vld [vmem:[%s1 + $0x108] sm:$0xff]
  %v99 = vld [vmem:[%s1 + $0x110] sm:$0xff]
  %v100 = vld [vmem:[%s1 + $0x118] sm:$0xff]
  %v101 = vld [vmem:[%s1 + $0x120] sm:$0xff]
  %v102 = vld [vmem:[%s1 + $0x128] sm:$0xff]
  %v103 = vld [vmem:[%s1 + $0x130] sm:$0xff]
  %v104 = vld [vmem:[%s1 + $0x138] sm:$0xff]
  %v105 = vld [vmem:[%s1 + $0x140] sm:$0xff]
  %v106 = vld [vmem:[%s1 + $0x148] sm:$0xff]
  %v107 = vld [vmem:[%s1 + $0x150] sm:$0xff]
  %v108 = vld [vmem:[%s1 + $0x158] sm:$0xff]
  %v109 = vld [vmem:[%s1 + $0x160] sm:$0xff]
  %v110 = vld [vmem:[%s1 + $0x168] sm:$0xff]
  %v111 = vld [vmem:[%s1 + $0x170] sm:$0xff]
  %v112 = vld [vmem:[%s1 + $0x178] sm:$0xff]
  %v113 = vld [vmem:[%s1 + $0x180] sm:$0xff]
  %v114 = vld [vmem:[%s1 + $0x188] sm:$0xff]
  %v115 = vld [vmem:[%s1 + $0x190] sm:$0xff]
  %v116 = vld [vmem:[%s1 + $0x198] sm:$0xff]
  %v117 = vld [vmem:[%s1 + $0x1a0] sm:$0xff]
  %v118 = vld [vmem:[%s1 + $0x1a8] sm:$0xff]
  %v119 = vld [vmem:[%s1 + $0x1b0] sm:$0xff]
  %v120 = vld [vmem:[%s1 + $0x1b8] sm:$0xff]
  %v121 = vld [vmem:[%s1 + $0x1c0] sm:$0xff]
  %v122 = vld [vmem:[%s1 + $0x1c8] sm:$0xff]
  %v123 = vld [vmem:[%s1 + $0x1d0] sm:$0xff]
  %v124 = vld [vmem:[%s1 + $0x1d8] sm:$0xff]
  %v125 = vld [vmem:[%s1 + $0x1e0] sm:$0xff]
  %v126 = vld [vmem:[%s1 + $0x1e8] sm:$0xff]
  %v127 = vld [vmem:[%s1 + $0x1f0] sm:$0xff]
  %v128 = vld [vmem:[%s1 + $0x1f8] sm:$0xff]
  %v129 = vld [vmem:[%s1 + $0x200] sm:$0xff]
  %v130 = vld [vmem:[%s1 + $0x208] sm:$0xff]
  %v131 = vld [vmem:[%s1 + $0x210] sm:$0xff]
  %v132 = vld [vmem:[%s1 + $0x218] sm:$0xff]
  %v133 = vld [vmem:[%s1 + $0x220] sm:$0xff]
  %v134 = vld [vmem:[%s1 + $0x228] sm:$0xff]
  %v135 = vld [vmem:[%s1 + $0x230] sm:$0xff]
  %v136 = vld [vmem:[%s1 + $0x238] sm:$0xff]
  %v137 = vld [vmem:[%s1 + $0x240] sm:$0xff]
  %v138 = vld [vmem:[%s1 + $0x248] sm:$0xff]
  %v139 = vld [vmem:[%s1 + $0x250] sm:$0xff]
  %v140 = vld [vmem:[%s1 + $0x258] sm:$0xff]
  %v141 = vld [vmem:[%s1 + $0x260] sm:$0xff]
  %v142 = vld [vmem:[%s1 + $0x268] sm:$0xff]
  %v143 = vld [vmem:[%s1 + $0x270] sm:$0xff]
  %v144 = vld [vmem:[%s1 + $0x278] sm:$0xff]
  %v145 = vld [vmem:[%s1 + $0x280] sm:$0x1]
  %v146 = vld [vmem:[%s1 + $0x288] sm:$0x1]
  %vm147 = vcmask 531456
  %v149 = vsel %vm147, %v13, 0
  %v152 = vsel %vm147, %v16, 0
  %v155 = vsel %vm147, %v19, 0
  %v158 = vsel %vm147, %v22, 0
  %v161 = vsel %vm147, %v25, 0
  %v164 = vsel %vm147, %v28, 0
  %v167 = vsel %vm147, %v31, 0
  %v170 = vsel %vm147, %v34, 0
  %v173 = vsel %vm147, %v37, 0
  %v176 = vsel %vm147, %v40, 0
  %v179 = vsel %vm147, %v43, 0
  %v182 = vsel %vm147, %v46, 0
  %v185 = vsel %vm147, %v49, 0
  %v188 = vsel %vm147, %v52, 0
  %v191 = vsel %vm147, %v55, 0
  %v194 = vsel %vm147, %v58, 0
  %v197 = vsel %vm147, %v61, 0
  %v200 = vsel %vm147, %v64, 0
  %vm202 = vcmask 1040384
  %v204 = vsel %vm202, %v145, 0
  %v207 = vsel %vm202, %v146, 0
  %209 = vmatprep.subr.mxu0 %v66
  %210 = vmatpush1.msra.mxu0 %v65
  %211 = vmatprep.subr.mxu0 %v68
  %212 = vmatpush1.msra.mxu0 %v67
  %213 = vmatprep.subr.mxu0 %v70
  %214 = vmatpush1.msra.mxu0 %v69
  %215 = vmatprep.subr.mxu0 %v72
  %216 = vmatpush1.msra.mxu0 %v71
  %217 = vmatprep.subr.mxu0 %v74
  %218 = vmatpush1.msra.mxu0 %v73
  %219 = vmatprep.subr.mxu0 %v76
  %220 = vmatpush1.msra.mxu0 %v75
  %221 = vmatprep.subr.mxu0 %v78
  %222 = vmatpush1.msra.mxu0 %v77
  %223 = vmatprep.subr.mxu0 %v80
  %224 = vmatpush1.msra.mxu0 %v79
  %225 = vmatprep.subr.mxu0 %v82
  %226 = vmatpush1.msra.mxu0 %v81
  %227 = vmatprep.subr.mxu0 %v84
  %228 = vmatpush1.msra.mxu0 %v83
  %229 = vmatprep.subr.mxu0 %v86
  %230 = vmatpush1.msra.mxu0 %v85
  %231 = vmatprep.subr.mxu0 %v88
  %232 = vmatpush1.msra.mxu0 %v87
  %233 = vmatprep.subr.mxu0 %v90
  %234 = vmatpush1.msra.mxu0 %v89
  %235 = vmatprep.subr.mxu0 %v92
  %236 = vmatpush1.msra.mxu0 %v91
  %237 = vmatprep.subr.mxu0 %v94
  %238 = vmatpush1.msra.mxu0 %v93
  %239 = vmatprep.subr.mxu0 %v96
  %240 = vmatpush1.msra.mxu0 %v95
  %241 = vmatprep.subr.mxu0 %v98
  %242 = vmatpush1.msra.mxu0 %v97
  %243 = vmatprep.subr.mxu0 %v100
  %244 = vmatpush1.msra.mxu0 %v99
  %245 = vmatprep.subr.mxu0 %v102
  %246 = vmatpush1.msra.mxu0 %v101
  %247 = vmatprep.subr.mxu0 %v104
  %248 = vmatpush1.msra.mxu0 %v103
  %249 = vmatprep.subr.mxu0 %v106
  %250 = vmatpush1.msra.mxu0 %v105
  %251 = vmatprep.subr.mxu0 %v108
  %252 = vmatpush1.msra.mxu0 %v107
  %253 = vmatprep.subr.mxu0 %v110
  %254 = vmatpush1.msra.mxu0 %v109
  %255 = vmatprep.subr.mxu0 %v112
  %256 = vmatpush1.msra.mxu0 %v111
  %257 = vmatprep.subr.mxu0 %v114
  %258 = vmatpush1.msra.mxu0 %v113
  %259 = vmatprep.subr.mxu0 %v116
  %260 = vmatpush1.msra.mxu0 %v115
  %261 = vmatprep.subr.mxu0 %v118
  %262 = vmatpush1.msra.mxu0 %v117
  %263 = vmatprep.subr.mxu0 %v120
  %264 = vmatpush1.msra.mxu0 %v119
  %265 = vmatprep.subr.mxu0 %v122
  %266 = vmatpush1.msra.mxu0 %v121
  %267 = vmatprep.subr.mxu0 %v124
  %268 = vmatpush1.msra.mxu0 %v123
  %269 = vmatprep.subr.mxu0 %v126
  %270 = vmatpush1.msra.mxu0 %v125
  %271 = vmatprep.subr.mxu0 %v128
  %272 = vmatpush1.msra.mxu0 %v127
  %273 = vmatprep.mubr.f32.mxu0 %v12
  %274 = vmatmul.mubr.f32.gmra.mrb[0].mxu0 %v11
  %v275 = vpop.f32.mrb[0].mxu0
  %v276 = vadd.f32 0.0, %v275
  %v277 = vpop.f32.mrb[0].mxu0
  %v278 = vadd.f32 0.0, %v277
  %279 = vmatprep.mubr.f32.mxu0 %v15
  %280 = vmatmul.mubr.f32.gmra.mrb[0].mxu0 %v14
  %v281 = vpop.f32.mrb[0].mxu0
  %v282 = vadd.f32 0.0, %v281
  %v283 = vpop.f32.mrb[0].mxu0
  %v284 = vadd.f32 0.0, %v283
  %285 = vmatprep.mubr.f32.mxu0 %v18
  %286 = vmatmul.mubr.f32.gmra.mrb[0].mxu0 %v17
  %v287 = vpop.f32.mrb[0].mxu0
  %v288 = vadd.f32 0.0, %v287
  %v289 = vpop.f32.mrb[0].mxu0
  %v290 = vadd.f32 0.0, %v289
  %291 = vmatprep.mubr.f32.mxu0 %v21
  %292 = vmatmul.mubr.f32.gmra.mrb[0].mxu0 %v20
  %v293 = vpop.f32.mrb[0].mxu0
  %v294 = vadd.f32 0.0, %v293
  %v295 = vpop.f32.mrb[0].mxu0
  %v296 = vadd.f32 0.0, %v295
  %297 = vmatprep.mubr.f32.mxu0 %v24
  %298 = vmatmul.mubr.f32.gmra.mrb[0].mxu0 %v23
  %v299 = vpop.f32.mrb[0].mxu0
  %v300 = vadd.f32 0.0, %v299
  %v301 = vpop.f32.mrb[0].mxu0
  %v302 = vadd.f32 0.0, %v301
  %303 = vmatprep.mubr.f32.mxu0 %v27
  %304 = vmatmul.mubr.f32.gmra.mrb[0].mxu0 %v26
  %v305 = vpop.f32.mrb[0].mxu0
  %v306 = vadd.f32 0.0, %v305
  %v307 = vpop.f32.mrb[0].mxu0
  %v308 = vadd.f32 0.0, %v307
  %309 = vmatprep.mubr.f32.mxu0 %v30
  %310 = vmatmul.mubr.f32.gmra.mrb[0].mxu0 %v29
  %v311 = vpop.f32.mrb[0].mxu0
  %v312 = vadd.f32 0.0, %v311
  %v313 = vpop.f32.mrb[0].mxu0
  %v314 = vadd.f32 0.0, %v313
  %315 = vmatprep.mubr.f32.mxu0 %v33
  %316 = vmatmul.mubr.f32.gmra.mrb[0].mxu0 %v32
  %v317 = vpop.f32.mrb[0].mxu0
  %v318 = vadd.f32 0.0, %v317
  %v319 = vpop.f32.mrb[0].mxu0
  %v320 = vadd.f32 0.0, %v319
  %321 = vmatprep.mubr.f32.mxu0 %v36
  %322 = vmatmul.mubr.f32.gmra.mrb[0].mxu0 %v35
  %v323 = vpop.f32.mrb[0].mxu0
  %v324 = vadd.f32 0.0, %v323
  %v325 = vpop.f32.mrb[0].mxu0
  %v326 = vadd.f32 0.0, %v325
  %327 = vmatprep.mubr.f32.mxu0 %v39
  %328 = vmatmul.mubr.f32.gmra.mrb[0].mxu0 %v38
  %v329 = vpop.f32.mrb[0].mxu0
  %v330 = vadd.f32 0.0, %v329
  %v331 = vpop.f32.mrb[0].mxu0
  %v332 = vadd.f32 0.0, %v331
  %333 = vmatprep.mubr.f32.mxu0 %v42
  %334 = vmatmul.mubr.f32.gmra.mrb[0].mxu0 %v41
  %v335 = vpop.f32.mrb[0].mxu0
  %v336 = vadd.f32 0.0, %v335
  %v337 = vpop.f32.mrb[0].mxu0
  %v338 = vadd.f32 0.0, %v337
  %339 = vmatprep.mubr.f32.mxu0 %v45
  %340 = vmatmul.mubr.f32.gmra.mrb[0].mxu0 %v44
  %v341 = vpop.f32.mrb[0].mxu0
  %v342 = vadd.f32 0.0, %v341
  %v343 = vpop.f32.mrb[0].mxu0
  %v344 = vadd.f32 0.0, %v343
  %345 = vmatprep.mubr.f32.mxu0 %v48
  %346 = vmatmul.mubr.f32.gmra.mrb[0].mxu0 %v47
  %v347 = vpop.f32.mrb[0].mxu0
  %v348 = vadd.f32 0.0, %v347
  %v349 = vpop.f32.mrb[0].mxu0
  %v350 = vadd.f32 0.0, %v349
  %351 = vmatprep.mubr.f32.mxu0 %v51
  %352 = vmatmul.mubr.f32.gmra.mrb[0].mxu0 %v50
  %v353 = vpop.f32.mrb[0].mxu0
  %v354 = vadd.f32 0.0, %v353
  %v355 = vpop.f32.mrb[0].mxu0
  %v356 = vadd.f32 0.0, %v355
  %357 = vmatprep.mubr.f32.mxu0 %v54
  %358 = vmatmul.mubr.f32.gmra.mrb[0].mxu0 %v53
  %v359 = vpop.f32.mrb[0].mxu0
  %v360 = vadd.f32 0.0, %v359
  %v361 = vpop.f32.mrb[0].mxu0
  %v362 = vadd.f32 0.0, %v361
  %363 = vmatprep.mubr.f32.mxu0 %v57
  %364 = vmatmul.mubr.f32.gmra.mrb[0].mxu0 %v56
  %v365 = vpop.f32.mrb[0].mxu0
  %v366 = vadd.f32 0.0, %v365
  %v367 = vpop.f32.mrb[0].mxu0
  %v368 = vadd.f32 0.0, %v367
  %369 = vmatprep.mubr.f32.mxu0 %v60
  %370 = vmatmul.mubr.f32.gmra.mrb[0].mxu0 %v59
  %v371 = vpop.f32.mrb[0].mxu0
  %v372 = vadd.f32 0.0, %v371
  %v373 = vpop.f32.mrb[0].mxu0
  %v374 = vadd.f32 0.0, %v373
  %375 = vmatprep.mubr.f32.mxu0 %v63
  %376 = vmatmul.mubr.f32.gmra.mrb[0].mxu0 %v62
  %v377 = vpop.f32.mrb[0].mxu0
  %v378 = vadd.f32 0.0, %v377
  %v379 = vpop.f32.mrb[0].mxu0
  %v380 = vadd.f32 0.0, %v379
  %381 = vdwg.mxu0
  %382 = vmatprep.subr.mxu0 %v130
  %383 = vmatpush1.msra.mxu0 %v129
  %384 = vmatprep.subr.mxu0 %v132
  %385 = vmatpush1.msra.mxu0 %v131
  %386 = vmatprep.subr.mxu0 %v134
  %387 = vmatpush1.msra.mxu0 %v133
  %388 = vmatprep.subr.mxu0 %v136
  %389 = vmatpush1.msra.mxu0 %v135
  %390 = vmatprep.subr.mxu0 %v138
  %391 = vmatpush1.msra.mxu0 %v137
  %392 = vmatprep.subr.mxu0 %v140
  %393 = vmatpush1.msra.mxu0 %v139
  %394 = vmatprep.subr.mxu0 %v142
  %395 = vmatpush1.msra.mxu0 %v141
  %396 = vmatprep.subr.mxu0 %v144
  %397 = vmatpush1.msra.mxu0 %v143
  %398 = vmatprep.subr.mxu0 %v207
  %399 = vmatpush1.msra.mxu0 %v204
  %400 = vmatprep.subr.mxu0 0.0
  %401 = vmatpush1.msra.mxu0 0.0
  %402 = vmatprep.subr.mxu0 0.0
  %403 = vmatpush1.msra.mxu0 0.0
  %404 = vmatprep.subr.mxu0 0.0
  %405 = vmatpush1.msra.mxu0 0.0
  %406 = vmatprep.subr.mxu0 0.0
  %407 = vmatpush1.msra.mxu0 0.0
  %408 = vmatprep.subr.mxu0 0.0
  %409 = vmatpush1.msra.mxu0 0.0
  %410 = vmatprep.subr.mxu0 0.0
  %411 = vmatpush1.msra.mxu0 0.0
  %412 = vmatprep.subr.mxu0 0.0
  %413 = vmatpush1.msra.mxu0 0.0
  %414 = vmatprep.subr.mxu0 0.0
  %415 = vmatpush1.msra.mxu0 0.0
  %416 = vmatprep.subr.mxu0 0.0
  %417 = vmatpush1.msra.mxu0 0.0
  %418 = vmatprep.subr.mxu0 0.0
  %419 = vmatpush1.msra.mxu0 0.0
  %420 = vmatprep.subr.mxu0 0.0
  %421 = vmatpush1.msra.mxu0 0.0
  %422 = vmatprep.subr.mxu0 0.0
  %423 = vmatpush1.msra.mxu0 0.0
  %424 = vmatprep.subr.mxu0 0.0
  %425 = vmatpush1.msra.mxu0 0.0
  %426 = vmatprep.subr.mxu0 0.0
  %427 = vmatpush1.msra.mxu0 0.0
  %428 = vmatprep.subr.mxu0 0.0
  %429 = vmatpush1.msra.mxu0 0.0
  %430 = vmatprep.subr.mxu0 0.0
  %431 = vmatpush1.msra.mxu0 0.0
  %432 = vmatprep.subr.mxu0 0.0
  %433 = vmatpush1.msra.mxu0 0.0
  %434 = vmatprep.subr.mxu0 0.0
  %435 = vmatpush1.msra.mxu0 0.0
  %436 = vmatprep.subr.mxu0 0.0
  %437 = vmatpush1.msra.mxu0 0.0
  %438 = vmatprep.subr.mxu0 0.0
  %439 = vmatpush1.msra.mxu0 0.0
  %440 = vmatprep.subr.mxu0 0.0
  %441 = vmatpush1.msra.mxu0 0.0
  %442 = vmatprep.subr.mxu0 0.0
  %443 = vmatpush1.msra.mxu0 0.0
  %444 = vmatprep.subr.mxu0 0.0
  %445 = vmatpush1.msra.mxu0 0.0
  %446 = vmatprep.mubr.f32.mxu0 0.0
  %447 = vmatmul.mubr.f32.gmra.mrb[0].mxu0 %v149
  %v448 = vpop.f32.mrb[0].mxu0
  %v449 = vadd.f32 %v276, %v448
  %v450 = vpop.f32.mrb[0].mxu0
  %v451 = vadd.f32 %v278, %v450
  %452 = vmatprep.mubr.f32.mxu0 0.0
  %453 = vmatmul.mubr.f32.gmra.mrb[0].mxu0 %v152
  %v454 = vpop.f32.mrb[0].mxu0
  %v455 = vadd.f32 %v282, %v454
  %v456 = vpop.f32.mrb[0].mxu0
  %v457 = vadd.f32 %v284, %v456
  %458 = vmatprep.mubr.f32.mxu0 0.0
  %459 = vmatmul.mubr.f32.gmra.mrb[0].mxu0 %v155
  %v460 = vpop.f32.mrb[0].mxu0
  %v461 = vadd.f32 %v288, %v460
  %v462 = vpop.f32.mrb[0].mxu0
  %v463 = vadd.f32 %v290, %v462
  %464 = vmatprep.mubr.f32.mxu0 0.0
  %465 = vmatmul.mubr.f32.gmra.mrb[0].mxu0 %v158
  %v466 = vpop.f32.mrb[0].mxu0
  %v467 = vadd.f32 %v294, %v466
  %v468 = vpop.f32.mrb[0].mxu0
  %v469 = vadd.f32 %v296, %v468
  %470 = vmatprep.mubr.f32.mxu0 0.0
  %471 = vmatmul.mubr.f32.gmra.mrb[0].mxu0 %v161
  %v472 = vpop.f32.mrb[0].mxu0
  %v473 = vadd.f32 %v300, %v472
  %v474 = vpop.f32.mrb[0].mxu0
  %v475 = vadd.f32 %v302, %v474
  %476 = vmatprep.mubr.f32.mxu0 0.0
  %477 = vmatmul.mubr.f32.gmra.mrb[0].mxu0 %v164
  %v478 = vpop.f32.mrb[0].mxu0
  %v479 = vadd.f32 %v306, %v478
  %v480 = vpop.f32.mrb[0].mxu0
  %v481 = vadd.f32 %v308, %v480
  %482 = vmatprep.mubr.f32.mxu0 0.0
  %483 = vmatmul.mubr.f32.gmra.mrb[0].mxu0 %v167
  %v484 = vpop.f32.mrb[0].mxu0
  %v485 = vadd.f32 %v312, %v484
  %v486 = vpop.f32.mrb[0].mxu0
  %v487 = vadd.f32 %v314, %v486
  %488 = vmatprep.mubr.f32.mxu0 0.0
  %489 = vmatmul.mubr.f32.gmra.mrb[0].mxu0 %v170
  %v490 = vpop.f32.mrb[0].mxu0
  %v491 = vadd.f32 %v318, %v490
  %v492 = vpop.f32.mrb[0].mxu0
  %v493 = vadd.f32 %v320, %v492
  %494 = vmatprep.mubr.f32.mxu0 0.0
  %495 = vmatmul.mubr.f32.gmra.mrb[0].mxu0 %v173
  %v496 = vpop.f32.mrb[0].mxu0
  %v497 = vadd.f32 %v324, %v496
  %v498 = vpop.f32.mrb[0].mxu0
  %v499 = vadd.f32 %v326, %v498
  %500 = vmatprep.mubr.f32.mxu0 0.0
  %501 = vmatmul.mubr.f32.gmra.mrb[0].mxu0 %v176
  %v502 = vpop.f32.mrb[0].mxu0
  %v503 = vadd.f32 %v330, %v502
  %v504 = vpop.f32.mrb[0].mxu0
  %v505 = vadd.f32 %v332, %v504
  %506 = vmatprep.mubr.f32.mxu0 0.0
  %507 = vmatmul.mubr.f32.gmra.mrb[0].mxu0 %v179
  %v508 = vpop.f32.mrb[0].mxu0
  %v509 = vadd.f32 %v336, %v508
  %v510 = vpop.f32.mrb[0].mxu0
  %v511 = vadd.f32 %v338, %v510
  %512 = vmatprep.mubr.f32.mxu0 0.0
  %513 = vmatmul.mubr.f32.gmra.mrb[0].mxu0 %v182
  %v514 = vpop.f32.mrb[0].mxu0
  %v515 = vadd.f32 %v342, %v514
  %v516 = vpop.f32.mrb[0].mxu0
  %v517 = vadd.f32 %v344, %v516
  %518 = vmatprep.mubr.f32.mxu0 0.0
  %519 = vmatmul.mubr.f32.gmra.mrb[0].mxu0 %v185
  %v520 = vpop.f32.mrb[0].mxu0
  %v521 = vadd.f32 %v348, %v520
  %v522 = vpop.f32.mrb[0].mxu0
  %v523 = vadd.f32 %v350, %v522
  %524 = vmatprep.mubr.f32.mxu0 0.0
  %525 = vmatmul.mubr.f32.gmra.mrb[0].mxu0 %v188
  %v526 = vpop.f32.mrb[0].mxu0
  %v527 = vadd.f32 %v354, %v526
  %v528 = vpop.f32.mrb[0].mxu0
  %v529 = vadd.f32 %v356, %v528
  %530 = vmatprep.mubr.f32.mxu0 0.0
  %531 = vmatmul.mubr.f32.gmra.mrb[0].mxu0 %v191
  %v532 = vpop.f32.mrb[0].mxu0
  %v533 = vadd.f32 %v360, %v532
  %v534 = vpop.f32.mrb[0].mxu0
  %v535 = vadd.f32 %v362, %v534
  %536 = vmatprep.mubr.f32.mxu0 0.0
  %537 = vmatmul.mubr.f32.gmra.mrb[0].mxu0 %v194
  %v538 = vpop.f32.mrb[0].mxu0
  %v539 = vadd.f32 %v366, %v538
  %v540 = vpop.f32.mrb[0].mxu0
  %v541 = vadd.f32 %v368, %v540
  %542 = vmatprep.mubr.f32.mxu0 0.0
  %543 = vmatmul.mubr.f32.gmra.mrb[0].mxu0 %v197
  %v544 = vpop.f32.mrb[0].mxu0
  %v545 = vadd.f32 %v372, %v544
  %v546 = vpop.f32.mrb[0].mxu0
  %v547 = vadd.f32 %v374, %v546
  %548 = vmatprep.mubr.f32.mxu0 0.0
  %549 = vmatmul.mubr.f32.gmra.mrb[0].mxu0 %v200
  %v550 = vpop.f32.mrb[0].mxu0
  %v551 = vadd.f32 %v378, %v550
  %v552 = vpop.f32.mrb[0].mxu0
  %v553 = vadd.f32 %v380, %v552
  %554 = vdwg.mxu0
  %v555 = vxor.u32 %v451, 2147483648
  %v556 = vxor.u32 %v457, 2147483648
  %v557 = vxor.u32 %v463, 2147483648
  %v558 = vxor.u32 %v469, 2147483648
  %v559 = vxor.u32 %v475, 2147483648
  %v560 = vxor.u32 %v481, 2147483648
  %v561 = vxor.u32 %v487, 2147483648
  %v562 = vxor.u32 %v493, 2147483648
  %v563 = vxor.u32 %v499, 2147483648
  %v564 = vxor.u32 %v505, 2147483648
  %v565 = vxor.u32 %v511, 2147483648
  %v566 = vxor.u32 %v517, 2147483648
  %v567 = vxor.u32 %v523, 2147483648
  %v568 = vxor.u32 %v529, 2147483648
  %v569 = vxor.u32 %v535, 2147483648
  %v570 = vxor.u32 %v541, 2147483648
  %v571 = vxor.u32 %v547, 2147483648
  %v572 = vxor.u32 %v553, 2147483648
  %v573 = vmul.f32 %v555, 1.442695
  %v574 = vpow.pop %v573
  %v575 = vmul.f32 %v556, 1.442695
  %v576 = vpow.pop %v575
  %v577 = vmul.f32 %v557, 1.442695
  %v578 = vpow.pop %v577
  %v579 = vmul.f32 %v558, 1.442695
  %v580 = vpow.pop %v579
  %v581 = vmul.f32 %v559, 1.442695
  %v582 = vpow.pop %v581
  %v583 = vmul.f32 %v560, 1.442695
  %v584 = vpow.pop %v583
  %v585 = vmul.f32 %v561, 1.442695
  %v586 = vpow.pop %v585
  %v587 = vmul.f32 %v562, 1.442695
  %v588 = vpow.pop %v587
  %v589 = vmul.f32 %v563, 1.442695
  %v590 = vpow.pop %v589
  %v591 = vmul.f32 %v564, 1.442695
  %v592 = vpow.pop %v591
  %v593 = vmul.f32 %v565, 1.442695
  %v594 = vpow.pop %v593
  %v595 = vmul.f32 %v566, 1.442695
  %v596 = vpow.pop %v595
  %v597 = vmul.f32 %v567, 1.442695
  %v598 = vpow.pop %v597
  %v599 = vmul.f32 %v568, 1.442695
  %v600 = vpow.pop %v599
  %v601 = vmul.f32 %v569, 1.442695
  %v602 = vpow.pop %v601
  %v603 = vmul.f32 %v570, 1.442695
  %v604 = vpow.pop %v603
  %v605 = vmul.f32 %v571, 1.442695
  %v606 = vpow.pop %v605
  %v607 = vmul.f32 %v572, 1.442695
  %v608 = vpow.pop %v607
  %v609 = vadd.f32 %v574, 1.0
  %v610 = vadd.f32 %v576, 1.0
  %v611 = vadd.f32 %v578, 1.0
  %v612 = vadd.f32 %v580, 1.0
  %v613 = vadd.f32 %v582, 1.0
  %v614 = vadd.f32 %v584, 1.0
  %v615 = vadd.f32 %v586, 1.0
  %v616 = vadd.f32 %v588, 1.0
  %v617 = vadd.f32 %v590, 1.0
  %v618 = vadd.f32 %v592, 1.0
  %v619 = vadd.f32 %v594, 1.0
  %v620 = vadd.f32 %v596, 1.0
  %v621 = vadd.f32 %v598, 1.0
  %v622 = vadd.f32 %v600, 1.0
  %v623 = vadd.f32 %v602, 1.0
  %v624 = vadd.f32 %v604, 1.0
  %v625 = vadd.f32 %v606, 1.0
  %v626 = vadd.f32 %v608, 1.0
  %v627 = vrcp.pop %v609
  %v628 = vmul.f32 1.0, %v627
  %v629 = vrcp.pop %v610
  %v630 = vmul.f32 1.0, %v629
  %v631 = vrcp.pop %v611
  %v632 = vmul.f32 1.0, %v631
  %v633 = vrcp.pop %v612
  %v634 = vmul.f32 1.0, %v633
  %v635 = vrcp.pop %v613
  %v636 = vmul.f32 1.0, %v635
  %v637 = vrcp.pop %v614
  %v638 = vmul.f32 1.0, %v637
  %v639 = vrcp.pop %v615
  %v640 = vmul.f32 1.0, %v639
  %v641 = vrcp.pop %v616
  %v642 = vmul.f32 1.0, %v641
  %v643 = vrcp.pop %v617
  %v644 = vmul.f32 1.0, %v643
  %v645 = vrcp.pop %v618
  %v646 = vmul.f32 1.0, %v645
  %v647 = vrcp.pop %v619
  %v648 = vmul.f32 1.0, %v647
  %v649 = vrcp.pop %v620
  %v650 = vmul.f32 1.0, %v649
  %v651 = vrcp.pop %v621
  %v652 = vmul.f32 1.0, %v651
  %v653 = vrcp.pop %v622
  %v654 = vmul.f32 1.0, %v653
  %v655 = vrcp.pop %v623
  %v656 = vmul.f32 1.0, %v655
  %v657 = vrcp.pop %v624
  %v658 = vmul.f32 1.0, %v657
  %v659 = vrcp.pop %v625
  %v660 = vmul.f32 1.0, %v659
  %v661 = vrcp.pop %v626
  %v662 = vmul.f32 1.0, %v661
  %v663 = vmul.f32 %v449, %v628
  %v664 = vmul.f32 %v455, %v630
  %v665 = vmul.f32 %v461, %v632
  %v666 = vmul.f32 %v467, %v634
  %v667 = vmul.f32 %v473, %v636
  %v668 = vmul.f32 %v479, %v638
  %v669 = vmul.f32 %v485, %v640
  %v670 = vmul.f32 %v491, %v642
  %v671 = vmul.f32 %v497, %v644
  %v672 = vmul.f32 %v503, %v646
  %v673 = vmul.f32 %v509, %v648
  %v674 = vmul.f32 %v515, %v650
  %v675 = vmul.f32 %v521, %v652
  %v676 = vmul.f32 %v527, %v654
  %v677 = vmul.f32 %v533, %v656
  %v678 = vmul.f32 %v539, %v658
  %v679 = vmul.f32 %v545, %v660
  %v680 = vmul.f32 %v551, %v662
  %681 = vst [vmem:[%s2] sm:$0xff] %v663
  %682 = vst [vmem:[%s2 + $0x8] sm:$0xff] %v664
  %683 = vst [vmem:[%s2 + $0x10] sm:$0xff] %v665
  %684 = vst [vmem:[%s2 + $0x18] sm:$0xff] %v666
  %685 = vst [vmem:[%s2 + $0x20] sm:$0xff] %v667
  %686 = vst [vmem:[%s2 + $0x28] sm:$0xff] %v668
  %687 = vst [vmem:[%s2 + $0x30] sm:$0xff] %v669
  %688 = vst [vmem:[%s2 + $0x38] sm:$0xff] %v670
  %689 = vst [vmem:[%s2 + $0x40] sm:$0xff] %v671
  %690 = vst [vmem:[%s2 + $0x48] sm:$0xff] %v672
  %691 = vst [vmem:[%s2 + $0x50] sm:$0xff] %v673
  %692 = vst [vmem:[%s2 + $0x58] sm:$0xff] %v674
  %693 = vst [vmem:[%s2 + $0x60] sm:$0xff] %v675
  %694 = vst [vmem:[%s2 + $0x68] sm:$0xff] %v676
  %695 = vst [vmem:[%s2 + $0x70] sm:$0xff] %v677
  %696 = vst [vmem:[%s2 + $0x78] sm:$0xff] %v678
  %697 = vst [vmem:[%s2 + $0x80] sm:$0xff] %v679
  %698 = vst [vmem:[%s2 + $0x88] sm:$0xff] %v680
  // Predicated region
  $region10: #{_lambda_.6} parent=0 // pred_check
    _
  $region11: #{_lambda_.6} parent=0 // pred_check_branch
    %700 = sbr.rel (0) target = $region13
  $region12: #{_lambda_.6} parent=0 // pred_region
    _
  $region13: #{_lambda_.6} parent=0 // pred_fallthru
    _
  // Predicated region
  $region14: #{_lambda_.6} parent=0 // pred_check
    _
  $region15: #{_lambda_.6} parent=0 // pred_check_branch
    %702 = sbr.rel (0) target = $region17
  $region16: #{_lambda_.6} parent=0 // pred_region
    _
  $region17: #{_lambda_.6} parent=0 // pred_fallthru
    _

// kernel: _lambda_.7
$region0: #{_lambda_.7}
  #allocation0 [shape = 'u32[]', space=smem, size = 0x4, offset = 0x4, fixed_abs, tag = 'smem constant byte address 0x4 - core index']
  #allocation1 [shape = 'u32[144,128]{1,0:T(1,128)}', space=vmem, size = 0x12000, scoped, tag = 'internal scratch']
  %s0 = inlined_call_operand.vmem [shape: f32[16,451], index: 0, kind: input, shape index: {}]
  %s1 = inlined_call_operand.vmem [shape: f32[451,128], index: 1, kind: input, shape index: {}]
  %s2 = inlined_call_operand.vmem [shape: f32[16,128], index: 2, kind: output, shape index: {}]
  %s3 = sld [smem:[#allocation0]]
  $region18: #{_lambda_.7} parent=0
    _
  %s5 = ssub.s32 1, %s3
  %s6 = scalar_select 0, %s5, %s3
  // Predicated region
  $region2: #{_lambda_.7} parent=0 // pred_check
    _
  $region3: #{_lambda_.7} parent=0 // pred_check_branch
    %8 = sbr.rel (0) target = $region5
  $region4: #{_lambda_.7} parent=0 // pred_region
    _
  $region5: #{_lambda_.7} parent=0 // pred_fallthru
    _
  // Predicated region
  $region6: #{_lambda_.7} parent=0 // pred_check
    _
  $region7: #{_lambda_.7} parent=0 // pred_check_branch
    %10 = sbr.rel (0) target = $region9
  $region8: #{_lambda_.7} parent=0 // pred_region
    _
  $region9: #{_lambda_.7} parent=0 // pred_fallthru
    _
  %v11 = vld [vmem:[%s0] sm:$0xff]
  %v12 = vld [vmem:[%s0 + $0x8] sm:$0xff]
  %v13 = vld [vmem:[%s0 + $0x10] sm:$0xff]
  %v14 = vld [vmem:[%s0 + $0x18] sm:$0xff]
  %v15 = vld [vmem:[%s0 + $0x20] sm:$0xff]
  %v16 = vld [vmem:[%s0 + $0x28] sm:$0xff]
  %v17 = vld [vmem:[%s0 + $0x30] sm:$0xff]
  %v18 = vld [vmem:[%s0 + $0x38] sm:$0xff]
  %v19 = vld [vmem:[%s1] sm:$0xff]
  %v20 = vld [vmem:[%s1 + $0x8] sm:$0xff]
  %v21 = vld [vmem:[%s1 + $0x10] sm:$0xff]
  %v22 = vld [vmem:[%s1 + $0x18] sm:$0xff]
  %v23 = vld [vmem:[%s1 + $0x20] sm:$0xff]
  %v24 = vld [vmem:[%s1 + $0x28] sm:$0xff]
  %v25 = vld [vmem:[%s1 + $0x30] sm:$0xff]
  %v26 = vld [vmem:[%s1 + $0x38] sm:$0xff]
  %v27 = vld [vmem:[%s1 + $0x40] sm:$0xff]
  %v28 = vld [vmem:[%s1 + $0x48] sm:$0xff]
  %v29 = vld [vmem:[%s1 + $0x50] sm:$0xff]
  %v30 = vld [vmem:[%s1 + $0x58] sm:$0xff]
  %v31 = vld [vmem:[%s1 + $0x60] sm:$0xff]
  %v32 = vld [vmem:[%s1 + $0x68] sm:$0xff]
  %v33 = vld [vmem:[%s1 + $0x70] sm:$0xff]
  %v34 = vld [vmem:[%s1 + $0x78] sm:$0xff]
  %v35 = vld [vmem:[%s1 + $0x80] sm:$0xff]
  %v36 = vld [vmem:[%s1 + $0x88] sm:$0xff]
  %v37 = vld [vmem:[%s1 + $0x90] sm:$0xff]
  %v38 = vld [vmem:[%s1 + $0x98] sm:$0xff]
  %v39 = vld [vmem:[%s1 + $0xa0] sm:$0xff]
  %v40 = vld [vmem:[%s1 + $0xa8] sm:$0xff]
  %v41 = vld [vmem:[%s1 + $0xb0] sm:$0xff]
  %v42 = vld [vmem:[%s1 + $0xb8] sm:$0xff]
  %v43 = vld [vmem:[%s1 + $0xc0] sm:$0xff]
  %v44 = vld [vmem:[%s1 + $0xc8] sm:$0xff]
  %v45 = vld [vmem:[%s1 + $0xd0] sm:$0xff]
  %v46 = vld [vmem:[%s1 + $0xd8] sm:$0xff]
  %v47 = vld [vmem:[%s1 + $0xe0] sm:$0xff]
  %v48 = vld [vmem:[%s1 + $0xe8] sm:$0xff]
  %v49 = vld [vmem:[%s1 + $0xf0] sm:$0xff]
  %v50 = vld [vmem:[%s1 + $0xf8] sm:$0xff]
  %v51 = vld [vmem:[%s1 + $0x100] sm:$0xff]
  %v52 = vld [vmem:[%s1 + $0x108] sm:$0xff]
  %v53 = vld [vmem:[%s1 + $0x110] sm:$0xff]
  %v54 = vld [vmem:[%s1 + $0x118] sm:$0xff]
  %v55 = vld [vmem:[%s1 + $0x120] sm:$0xff]
  %v56 = vld [vmem:[%s1 + $0x128] sm:$0xff]
  %v57 = vld [vmem:[%s1 + $0x130] sm:$0xff]
  %v58 = vld [vmem:[%s1 + $0x138] sm:$0xff]
  %v59 = vld [vmem:[%s1 + $0x140] sm:$0xff]
  %v60 = vld [vmem:[%s1 + $0x148] sm:$0xff]
  %v61 = vld [vmem:[%s1 + $0x150] sm:$0xff]
  %v62 = vld [vmem:[%s1 + $0x158] sm:$0xff]
  %v63 = vld [vmem:[%s1 + $0x160] sm:$0xff]
  %v64 = vld [vmem:[%s1 + $0x168] sm:$0xff]
  %v65 = vld [vmem:[%s1 + $0x170] sm:$0xff]
  %v66 = vld [vmem:[%s1 + $0x178] sm:$0xff]
  %v67 = vld [vmem:[%s1 + $0x180] sm:$0xff]
  %v68 = vld [vmem:[%s1 + $0x188] sm:$0xff]
  %v69 = vld [vmem:[%s1 + $0x190] sm:$0xff]
  %v70 = vld [vmem:[%s1 + $0x198] sm:$0xff]
  %v71 = vld [vmem:[%s1 + $0x1a0] sm:$0xff]
  %v72 = vld [vmem:[%s1 + $0x1a8] sm:$0xff]
  %v73 = vld [vmem:[%s1 + $0x1b0] sm:$0xff]
  %v74 = vld [vmem:[%s1 + $0x1b8] sm:$0xff]
  %v75 = vld [vmem:[%s1 + $0x1c0] sm:$0x7]
  %vm76 = vcmask 547840
  %v78 = vsel %vm76, %v14, 0
  %v81 = vsel %vm76, %v18, 0
  %vm83 = vcmask 1042432
  %v85 = vsel %vm83, %v75, 0
  %87 = vmatprep.subr.mxu0 0.0
  %88 = vmatpush1.msra.mxu0 %v19
  %89 = vmatprep.subr.mxu0 0.0
  %90 = vmatpush1.msra.mxu0 %v20
  %91 = vmatprep.subr.mxu0 0.0
  %92 = vmatpush1.msra.mxu0 %v21
  %93 = vmatprep.subr.mxu0 0.0
  %94 = vmatpush1.msra.mxu0 %v22
  %95 = vmatprep.subr.mxu0 0.0
  %96 = vmatpush1.msra.mxu0 %v23
  %97 = vmatprep.subr.mxu0 0.0
  %98 = vmatpush1.msra.mxu0 %v24
  %99 = vmatprep.subr.mxu0 0.0
  %100 = vmatpush1.msra.mxu0 %v25
  %101 = vmatprep.subr.mxu0 0.0
  %102 = vmatpush1.msra.mxu0 %v26
  %103 = vmatprep.subr.mxu0 0.0
  %104 = vmatpush1.msra.mxu0 %v27
  %105 = vmatprep.subr.mxu0 0.0
  %106 = vmatpush1.msra.mxu0 %v28
  %107 = vmatprep.subr.mxu0 0.0
  %108 = vmatpush1.msra.mxu0 %v29
  %109 = vmatprep.subr.mxu0 0.0
  %110 = vmatpush1.msra.mxu0 %v30
  %111 = vmatprep.subr.mxu0 0.0
  %112 = vmatpush1.msra.mxu0 %v31
  %113 = vmatprep.subr.mxu0 0.0
  %114 = vmatpush1.msra.mxu0 %v32
  %115 = vmatprep.subr.mxu0 0.0
  %116 = vmatpush1.msra.mxu0 %v33
  %117 = vmatprep.subr.mxu0 0.0
  %118 = vmatpush1.msra.mxu0 %v34
  %119 = vmatprep.subr.mxu0 0.0
  %120 = vmatpush1.msra.mxu0 %v35
  %121 = vmatprep.subr.mxu0 0.0
  %122 = vmatpush1.msra.mxu0 %v36
  %123 = vmatprep.subr.mxu0 0.0
  %124 = vmatpush1.msra.mxu0 %v37
  %125 = vmatprep.subr.mxu0 0.0
  %126 = vmatpush1.msra.mxu0 %v38
  %127 = vmatprep.subr.mxu0 0.0
  %128 = vmatpush1.msra.mxu0 %v39
  %129 = vmatprep.subr.mxu0 0.0
  %130 = vmatpush1.msra.mxu0 %v40
  %131 = vmatprep.subr.mxu0 0.0
  %132 = vmatpush1.msra.mxu0 %v41
  %133 = vmatprep.subr.mxu0 0.0
  %134 = vmatpush1.msra.mxu0 %v42
  %135 = vmatprep.subr.mxu0 0.0
  %136 = vmatpush1.msra.mxu0 %v43
  %137 = vmatprep.subr.mxu0 0.0
  %138 = vmatpush1.msra.mxu0 %v44
  %139 = vmatprep.subr.mxu0 0.0
  %140 = vmatpush1.msra.mxu0 %v45
  %141 = vmatprep.subr.mxu0 0.0
  %142 = vmatpush1.msra.mxu0 %v46
  %143 = vmatprep.subr.mxu0 0.0
  %144 = vmatpush1.msra.mxu0 %v47
  %145 = vmatprep.subr.mxu0 0.0
  %146 = vmatpush1.msra.mxu0 %v48
  %147 = vmatprep.subr.mxu0 0.0
  %148 = vmatpush1.msra.mxu0 %v49
  %149 = vmatprep.subr.mxu0 0.0
  %150 = vmatpush1.msra.mxu0 %v50
  %151 = vmatprep.mubr.f32.mxu0 %v12
  %152 = vmatmul.mubr.f32.gmra.mrb[0].mxu0 %v11
  %v153 = vpop.f32.mrb[0].mxu0
  %v154 = vadd.f32 0.0, %v153
  %v155 = vpop.f32.mrb[0].mxu0
  %156 = vmatprep.mubr.f32.mxu0 %v16
  %157 = vmatmul.mubr.f32.gmra.mrb[0].mxu0 %v15
  %v158 = vpop.f32.mrb[0].mxu0
  %v159 = vadd.f32 0.0, %v158
  %v160 = vpop.f32.mrb[0].mxu0
  %161 = vdwg.mxu0
  %162 = vmatprep.subr.mxu0 0.0
  %163 = vmatpush1.msra.mxu0 %v51
  %164 = vmatprep.subr.mxu0 0.0
  %165 = vmatpush1.msra.mxu0 %v52
  %166 = vmatprep.subr.mxu0 0.0
  %167 = vmatpush1.msra.mxu0 %v53
  %168 = vmatprep.subr.mxu0 0.0
  %169 = vmatpush1.msra.mxu0 %v54
  %170 = vmatprep.subr.mxu0 0.0
  %171 = vmatpush1.msra.mxu0 %v55
  %172 = vmatprep.subr.mxu0 0.0
  %173 = vmatpush1.msra.mxu0 %v56
  %174 = vmatprep.subr.mxu0 0.0
  %175 = vmatpush1.msra.mxu0 %v57
  %176 = vmatprep.subr.mxu0 0.0
  %177 = vmatpush1.msra.mxu0 %v58
  %178 = vmatprep.subr.mxu0 0.0
  %179 = vmatpush1.msra.mxu0 %v59
  %180 = vmatprep.subr.mxu0 0.0
  %181 = vmatpush1.msra.mxu0 %v60
  %182 = vmatprep.subr.mxu0 0.0
  %183 = vmatpush1.msra.mxu0 %v61
  %184 = vmatprep.subr.mxu0 0.0
  %185 = vmatpush1.msra.mxu0 %v62
  %186 = vmatprep.subr.mxu0 0.0
  %187 = vmatpush1.msra.mxu0 %v63
  %188 = vmatprep.subr.mxu0 0.0
  %189 = vmatpush1.msra.mxu0 %v64
  %190 = vmatprep.subr.mxu0 0.0
  %191 = vmatpush1.msra.mxu0 %v65
  %192 = vmatprep.subr.mxu0 0.0
  %193 = vmatpush1.msra.mxu0 %v66
  %194 = vmatprep.subr.mxu0 0.0
  %195 = vmatpush1.msra.mxu0 %v67
  %196 = vmatprep.subr.mxu0 0.0
  %197 = vmatpush1.msra.mxu0 %v68
  %198 = vmatprep.subr.mxu0 0.0
  %199 = vmatpush1.msra.mxu0 %v69
  %200 = vmatprep.subr.mxu0 0.0
  %201 = vmatpush1.msra.mxu0 %v70
  %202 = vmatprep.subr.mxu0 0.0
  %203 = vmatpush1.msra.mxu0 %v71
  %204 = vmatprep.subr.mxu0 0.0
  %205 = vmatpush1.msra.mxu0 %v72
  %206 = vmatprep.subr.mxu0 0.0
  %207 = vmatpush1.msra.mxu0 %v73
  %208 = vmatprep.subr.mxu0 0.0
  %209 = vmatpush1.msra.mxu0 %v74
  %210 = vmatprep.subr.mxu0 0.0
  %211 = vmatpush1.msra.mxu0 %v85
  %212 = vmatprep.subr.mxu0 0.0
  %213 = vmatpush1.msra.mxu0 0.0
  %214 = vmatprep.subr.mxu0 0.0
  %215 = vmatpush1.msra.mxu0 0.0
  %216 = vmatprep.subr.mxu0 0.0
  %217 = vmatpush1.msra.mxu0 0.0
  %218 = vmatprep.subr.mxu0 0.0
  %219 = vmatpush1.msra.mxu0 0.0
  %220 = vmatprep.subr.mxu0 0.0
  %221 = vmatpush1.msra.mxu0 0.0
  %222 = vmatprep.subr.mxu0 0.0
  %223 = vmatpush1.msra.mxu0 0.0
  %224 = vmatprep.subr.mxu0 0.0
  %225 = vmatpush1.msra.mxu0 0.0
  %226 = vmatprep.mubr.f32.mxu0 %v78
  %227 = vmatmul.mubr.f32.gmra.mrb[0].mxu0 %v13
  %v228 = vpop.f32.mrb[0].mxu0
  %v229 = vadd.f32 %v154, %v228
  %v230 = vpop.f32.mrb[0].mxu0
  %231 = vmatprep.mubr.f32.mxu0 %v81
  %232 = vmatmul.mubr.f32.gmra.mrb[0].mxu0 %v17
  %v233 = vpop.f32.mrb[0].mxu0
  %v234 = vadd.f32 %v159, %v233
  %v235 = vpop.f32.mrb[0].mxu0
  %236 = vdwg.mxu0
  %237 = vst [vmem:[%s2] sm:$0xff] %v229
  %238 = vst [vmem:[%s2 + $0x8] sm:$0xff] %v234
  // Predicated region
  $region10: #{_lambda_.7} parent=0 // pred_check
    _
  $region11: #{_lambda_.7} parent=0 // pred_check_branch
    %240 = sbr.rel (0) target = $region13
  $region12: #{_lambda_.7} parent=0 // pred_region
    _
  $region13: #{_lambda_.7} parent=0 // pred_fallthru
    _
  // Predicated region
  $region14: #{_lambda_.7} parent=0 // pred_check
    _
  $region15: #{_lambda_.7} parent=0 // pred_check_branch
    %242 = sbr.rel (0) target = $region17
  $region16: #{_lambda_.7} parent=0 // pred_region
    _
  $region17: #{_lambda_.7} parent=0 // pred_fallthru
    _

</llo_original>
